<compile_context>
chip_gen: v7x
topology: tpu7x:2x2x1
jax: 0.10.0
libtpu: 0.0.40
codegen_flags: <defaults>
</compile_context>

<pallas_src>
import numpy as np
import jax
import jax.numpy as jnp
from jax.experimental import pallas as pl
from jax.experimental.pallas import tpu as pltpu

HIDDEN_DIM = 50
INPUT_DIM = 2
NUM_LAYERS = 2
OUTPUT_DIM = 2
HP = 128                 # per-gate lane-aligned (padded) hidden width


def _lstm_kernel(x_ref,       # (T*B, D_in)   time-major input, flattened
                 wih0_ref,    # (D_in, 4*HP)  gate-padded
                 whh0_ref,    # (HP, 4*HP)
                 b0_ref,      # (1, 4*HP)     b_ih0 + b_hh0, gate-padded
                 w1_ref,      # (2*HP, 4*HP)  stacked [W_ih1; W_hh1]
                 b1_ref,      # (1, 4*HP)     b_ih1 + b_hh1, gate-padded
                 wfc_ref,     # (HP, OUT)
                 bfc_ref,     # (1, OUT)
                 o_ref):      # (B, OUT)
    TB, _ = x_ref.shape
    B = o_ref.shape[0]
    T = TB // B
    HPk = whh0_ref.shape[0]
    G4 = 4 * HPk

    # --- hoisted: layer-0 input projection for all T steps in ONE matmul ---
    gates0_all = (jnp.dot(x_ref[...], wih0_ref[...],
                          preferred_element_type=jnp.float32)
                  + b0_ref[...])                              # (T*B, 4*HP)

    # hoist weight loads / bias broadcast out of the unrolled loop
    whh0 = whh0_ref[...]
    w1 = w1_ref[...]
    b1 = jnp.broadcast_to(b1_ref[...], (B, G4))

    def apply_gates(gates, c):
        # 128-lane-aligned static slices (PyTorch gate order i, f, g, o)
        i = jax.nn.sigmoid(gates[:, 0 * HPk:1 * HPk])
        f = jax.nn.sigmoid(gates[:, 1 * HPk:2 * HPk])
        g = jnp.tanh(gates[:, 2 * HPk:3 * HPk])
        o = jax.nn.sigmoid(gates[:, 3 * HPk:4 * HPk])
        c_new = f * c + i * g
        h_new = o * jnp.tanh(c_new)
        return h_new, c_new

    zeros = jnp.zeros((B, HPk), jnp.float32)
    h0, c0, h1, c1 = zeros, zeros, zeros, zeros

    # Fully unrolled time loop (T is small and static).
    for t in range(T):
        # layer 0: single recurrent matmul (input projection precomputed)
        g0 = gates0_all[t * B:(t + 1) * B, :] + jnp.dot(
            h0, whh0, preferred_element_type=jnp.float32)
        h0, c0 = apply_gates(g0, c0)

        # layer 1: one fused matmul of [h0, h1] against stacked [W_ih1; W_hh1]
        xh = jnp.concatenate([h0, h1], axis=1)                # (B, 2*HP)
        g1 = jnp.dot(xh, w1, preferred_element_type=jnp.float32) + b1
        h1, c1 = apply_gates(g1, c1)

    # final Linear head on the last hidden state of the top layer
    o_ref[...] = (jnp.dot(h1, wfc_ref[...], preferred_element_type=jnp.float32)
                  + bfc_ref[...])


def _pad_gate_cols(w, H=HIDDEN_DIM, hp=HP):
    """(in, 4H) -> (in, 4*HP): zero-pad each gate block from H to HP columns."""
    blocks = [jnp.pad(w[:, g * H:(g + 1) * H], ((0, 0), (0, hp - H)))
              for g in range(4)]
    return jnp.concatenate(blocks, axis=1)


def _pad_rows(w, H=HIDDEN_DIM, hp=HP):
    """(H, n) -> (HP, n): zero-pad the contraction (hidden) rows."""
    return jnp.pad(w, ((0, hp - H), (0, 0)))


@jax.jit
def lstm_forward(x, params):
    """x: (B, T, INPUT_DIM) float32, batch_first like the PyTorch module."""
    B, T, D_in = x.shape
    wih0, whh0, b0, wih1, whh1, b1, wfc, bfc = params

    # Layout plumbing in the wrapper (cheap, off the serial recurrence):
    # time-major + flattened so the kernel can do one big layer-0 projection.
    x_flat = jnp.transpose(x, (1, 0, 2)).reshape(T * B, D_in)

    # Gate-padded / stacked weights for the kernel (zero padding keeps the
    # padded hidden lanes identically zero for all t).
    wih0_p = _pad_gate_cols(wih0)                                # (D_in, 4HP)
    whh0_p = _pad_rows(_pad_gate_cols(whh0))                     # (HP, 4HP)
    b0_p = _pad_gate_cols(b0)                                    # (1, 4HP)
    w1_p = jnp.concatenate([_pad_rows(_pad_gate_cols(wih1)),
                            _pad_rows(_pad_gate_cols(whh1))],
                           axis=0)                               # (2HP, 4HP)
    b1_p = _pad_gate_cols(b1)                                    # (1, 4HP)
    wfc_p = _pad_rows(wfc)                                       # (HP, OUT)

    vmem = pl.BlockSpec(memory_space=pltpu.MemorySpace.VMEM)
    out = pl.pallas_call(
        _lstm_kernel,
        out_shape=jax.ShapeDtypeStruct((B, OUTPUT_DIM), jnp.float32),
        in_specs=[vmem] * 8,
        out_specs=vmem,
    )(x_flat, wih0_p, whh0_p, b0_p, w1_p, b1_p, wfc_p, bfc)
    # TODO(synk): for large batches, add a batch grid axis with
    # dimension_semantics=("parallel",) to use both v7x TensorCores.
    return out


def init_params(key):
    """Deterministic init matching PyTorch nn.LSTM/nn.Linear shapes.

    PyTorch stores W_ih as (4H, in), W_hh as (4H, H), fc.weight as (out, H);
    we pre-transpose everything to (in, out) layout (math layout, unpadded).
    """
    H = HIDDEN_DIM
    k = 1.0 / np.sqrt(H)
    keys = jax.random.split(key, 12)

    def u(kk, shape):
        return jax.random.uniform(kk, shape, jnp.float32, -k, k)

    # layer 0
    w_ih0 = u(keys[0], (4 * H, INPUT_DIM))
    w_hh0 = u(keys[1], (4 * H, H))
    b_ih0 = u(keys[2], (4 * H,))
    b_hh0 = u(keys[3], (4 * H,))
    # layer 1
    w_ih1 = u(keys[4], (4 * H, H))
    w_hh1 = u(keys[5], (4 * H, H))
    b_ih1 = u(keys[6], (4 * H,))
    b_hh1 = u(keys[7], (4 * H,))
    # fc
    kf = 1.0 / np.sqrt(H)
    w_fc = jax.random.uniform(keys[8], (OUTPUT_DIM, H), jnp.float32, -kf, kf)
    b_fc = jax.random.uniform(keys[9], (OUTPUT_DIM,), jnp.float32, -kf, kf)

    params = (
        w_ih0.T,                                 # (D_in, 4H)
        w_hh0.T,                                 # (H, 4H)
        (b_ih0 + b_hh0).reshape(1, 4 * H),       # (1, 4H)
        w_ih1.T,                                 # (H, 4H)
        w_hh1.T,                                 # (H, 4H)
        (b_ih1 + b_hh1).reshape(1, 4 * H),       # (1, 4H)
        w_fc.T,                                  # (H, OUT)
        b_fc.reshape(1, OUTPUT_DIM),             # (1, OUT)
    )
    return params


def reference_forward(x, params):
    """Pure-JAX reference of the same math (for a sanity check)."""
    wih0, whh0, b0, wih1, whh1, b1, wfc, bfc = params
    B, T, _ = x.shape
    H = HIDDEN_DIM

    def cell(x_t, h, c, wih, whh, b):
        gates = x_t @ wih + h @ whh + b
        i = jax.nn.sigmoid(gates[:, 0 * H:1 * H])
        f = jax.nn.sigmoid(gates[:, 1 * H:2 * H])
        g = jnp.tanh(gates[:, 2 * H:3 * H])
        o = jax.nn.sigmoid(gates[:, 3 * H:4 * H])
        c = f * c + i * g
        h = o * jnp.tanh(c)
        return h, c

    h0 = c0 = h1 = c1 = jnp.zeros((B, H), jnp.float32)
    for t in range(T):
        x_t = x[:, t, :]
        h0, c0 = cell(x_t, h0, c0, wih0, whh0, b0)
        h1, c1 = cell(h0, h1, c1, wih1, whh1, b1)
    return h1 @ wfc + bfc


if __name__ == "__main__":
    key = jax.random.PRNGKey(0)
    k_param, k_x = jax.random.split(key)

    B, T = 2, 8
    x = jax.random.normal(k_x, (B, T, INPUT_DIM), jnp.float32)
    params = init_params(k_param)

    out = lstm_forward(x, params)
    out = jax.block_until_ready(out)

    ref = reference_forward(x, params)
    assert out.shape == (B, OUTPUT_DIM)
    assert np.allclose(np.asarray(out), np.asarray(ref), rtol=1e-3, atol=1e-3)

    print("KERNEL_OK")
</pallas_src>

<mosaic_0001>
module attributes {stable_mosaic.version = 11 : i64} {
  func.func @_lstm_kernel(%arg0: memref<16x2xf32, #tpu.memory_space<vmem>>, %arg1: memref<2x512xf32, #tpu.memory_space<vmem>>, %arg2: memref<128x512xf32, #tpu.memory_space<vmem>>, %arg3: memref<1x512xf32, #tpu.memory_space<vmem>>, %arg4: memref<256x512xf32, #tpu.memory_space<vmem>>, %arg5: memref<1x512xf32, #tpu.memory_space<vmem>>, %arg6: memref<128x2xf32, #tpu.memory_space<vmem>>, %arg7: memref<1x2xf32, #tpu.memory_space<vmem>>, %arg8: memref<2x2xf32, #tpu.memory_space<vmem>>) attributes {dimension_semantics = [], scalar_prefetch = 0 : i64, scratch_operands = 0 : i64, tpu.core_type = #tpu.core_type<tc>} {
    %c0 = arith.constant 0 : index
    %c0_0 = arith.constant 0 : index
    %0 = vector.load %arg0[%c0, %c0_0] : memref<16x2xf32, #tpu.memory_space<vmem>>, vector<16x2xf32>
    %c0_1 = arith.constant 0 : index
    %c0_2 = arith.constant 0 : index
    %1 = vector.load %arg1[%c0_1, %c0_2] : memref<2x512xf32, #tpu.memory_space<vmem>>, vector<2x512xf32>
    %cst = arith.constant dense<0.000000e+00> : vector<16x512xf32>
    %2 = tpu.matmul %0, %1, %cst {dimension_numbers = #tpu.dot_dimension_numbers<[1], [0], [0], [1], [0, 0, 1, 1], [], []>} : vector<16x2xf32>, vector<2x512xf32>, vector<16x512xf32> -> vector<16x512xf32>
    %c0_3 = arith.constant 0 : index
    %c0_4 = arith.constant 0 : index
    %3 = vector.load %arg3[%c0_3, %c0_4] : memref<1x512xf32, #tpu.memory_space<vmem>>, vector<1x512xf32>
    %4 = vector.broadcast %3 : vector<1x512xf32> to vector<16x512xf32>
    %5 = arith.addf %2, %4 : vector<16x512xf32>
    %c0_5 = arith.constant 0 : index
    %c0_6 = arith.constant 0 : index
    %6 = vector.load %arg2[%c0_5, %c0_6] : memref<128x512xf32, #tpu.memory_space<vmem>>, vector<128x512xf32>
    %c0_7 = arith.constant 0 : index
    %c0_8 = arith.constant 0 : index
    %7 = vector.load %arg4[%c0_7, %c0_8] : memref<256x512xf32, #tpu.memory_space<vmem>>, vector<256x512xf32>
    %c0_9 = arith.constant 0 : index
    %c0_10 = arith.constant 0 : index
    %8 = vector.load %arg5[%c0_9, %c0_10] : memref<1x512xf32, #tpu.memory_space<vmem>>, vector<1x512xf32>
    %9 = vector.shape_cast %8 : vector<1x512xf32> to vector<1x512xf32>
    %10 = vector.broadcast %9 : vector<1x512xf32> to vector<2x512xf32>
    %cst_11 = arith.constant 0.000000e+00 : f32
    %11 = vector.broadcast %cst_11 : f32 to vector<2x128xf32>
    %12 = vector.extract_strided_slice %5 {offsets = [0, 0], sizes = [2, 512], strides = [1, 1]} : vector<16x512xf32> to vector<2x512xf32>
    %cst_12 = arith.constant dense<0.000000e+00> : vector<2x512xf32>
    %13 = tpu.matmul %11, %6, %cst_12 {dimension_numbers = #tpu.dot_dimension_numbers<[1], [0], [0], [1], [0, 0, 1, 1], [], []>} : vector<2x128xf32>, vector<128x512xf32>, vector<2x512xf32> -> vector<2x512xf32>
    %14 = arith.addf %12, %13 : vector<2x512xf32>
    %15 = vector.extract_strided_slice %14 {offsets = [0, 0], sizes = [2, 128], strides = [1, 1]} : vector<2x512xf32> to vector<2x128xf32>
    %16 = arith.negf %15 : vector<2x128xf32>
    %17 = math.exp %16 : vector<2x128xf32>
    %cst_13 = arith.constant 1.000000e+00 : f32
    %18 = vector.broadcast %cst_13 : f32 to vector<2x128xf32>
    %19 = arith.addf %18, %17 : vector<2x128xf32>
    %20 = arith.divf %18, %19 : vector<2x128xf32>
    %21 = vector.extract_strided_slice %14 {offsets = [0, 128], sizes = [2, 128], strides = [1, 1]} : vector<2x512xf32> to vector<2x128xf32>
    %22 = arith.negf %21 : vector<2x128xf32>
    %23 = math.exp %22 : vector<2x128xf32>
    %cst_14 = arith.constant 1.000000e+00 : f32
    %24 = vector.broadcast %cst_14 : f32 to vector<2x128xf32>
    %25 = arith.addf %24, %23 : vector<2x128xf32>
    %26 = arith.divf %24, %25 : vector<2x128xf32>
    %27 = vector.extract_strided_slice %14 {offsets = [0, 256], sizes = [2, 128], strides = [1, 1]} : vector<2x512xf32> to vector<2x128xf32>
    %28 = math.tanh %27 : vector<2x128xf32>
    %29 = vector.extract_strided_slice %14 {offsets = [0, 384], sizes = [2, 128], strides = [1, 1]} : vector<2x512xf32> to vector<2x128xf32>
    %30 = arith.negf %29 : vector<2x128xf32>
    %31 = math.exp %30 : vector<2x128xf32>
    %cst_15 = arith.constant 1.000000e+00 : f32
    %32 = vector.broadcast %cst_15 : f32 to vector<2x128xf32>
    %33 = arith.addf %32, %31 : vector<2x128xf32>
    %34 = arith.divf %32, %33 : vector<2x128xf32>
    %35 = arith.mulf %26, %11 : vector<2x128xf32>
    %36 = arith.mulf %20, %28 : vector<2x128xf32>
    %37 = arith.addf %35, %36 : vector<2x128xf32>
    %38 = math.tanh %37 : vector<2x128xf32>
    %39 = arith.mulf %34, %38 : vector<2x128xf32>
    %40 = tpu.concatenate %39, %11 in 1 : vector<2x128xf32>, vector<2x128xf32> -> vector<2x256xf32>
    %cst_16 = arith.constant dense<0.000000e+00> : vector<2x512xf32>
    %41 = tpu.matmul %40, %7, %cst_16 {dimension_numbers = #tpu.dot_dimension_numbers<[1], [0], [0], [1], [0, 0, 1, 1], [], []>} : vector<2x256xf32>, vector<256x512xf32>, vector<2x512xf32> -> vector<2x512xf32>
    %42 = arith.addf %41, %10 : vector<2x512xf32>
    %43 = vector.extract_strided_slice %42 {offsets = [0, 0], sizes = [2, 128], strides = [1, 1]} : vector<2x512xf32> to vector<2x128xf32>
    %44 = arith.negf %43 : vector<2x128xf32>
    %45 = math.exp %44 : vector<2x128xf32>
    %cst_17 = arith.constant 1.000000e+00 : f32
    %46 = vector.broadcast %cst_17 : f32 to vector<2x128xf32>
    %47 = arith.addf %46, %45 : vector<2x128xf32>
    %48 = arith.divf %46, %47 : vector<2x128xf32>
    %49 = vector.extract_strided_slice %42 {offsets = [0, 128], sizes = [2, 128], strides = [1, 1]} : vector<2x512xf32> to vector<2x128xf32>
    %50 = arith.negf %49 : vector<2x128xf32>
    %51 = math.exp %50 : vector<2x128xf32>
    %cst_18 = arith.constant 1.000000e+00 : f32
    %52 = vector.broadcast %cst_18 : f32 to vector<2x128xf32>
    %53 = arith.addf %52, %51 : vector<2x128xf32>
    %54 = arith.divf %52, %53 : vector<2x128xf32>
    %55 = vector.extract_strided_slice %42 {offsets = [0, 256], sizes = [2, 128], strides = [1, 1]} : vector<2x512xf32> to vector<2x128xf32>
    %56 = math.tanh %55 : vector<2x128xf32>
    %57 = vector.extract_strided_slice %42 {offsets = [0, 384], sizes = [2, 128], strides = [1, 1]} : vector<2x512xf32> to vector<2x128xf32>
    %58 = arith.negf %57 : vector<2x128xf32>
    %59 = math.exp %58 : vector<2x128xf32>
    %cst_19 = arith.constant 1.000000e+00 : f32
    %60 = vector.broadcast %cst_19 : f32 to vector<2x128xf32>
    %61 = arith.addf %60, %59 : vector<2x128xf32>
    %62 = arith.divf %60, %61 : vector<2x128xf32>
    %63 = arith.mulf %54, %11 : vector<2x128xf32>
    %64 = arith.mulf %48, %56 : vector<2x128xf32>
    %65 = arith.addf %63, %64 : vector<2x128xf32>
    %66 = math.tanh %65 : vector<2x128xf32>
    %67 = arith.mulf %62, %66 : vector<2x128xf32>
    %68 = vector.extract_strided_slice %5 {offsets = [2, 0], sizes = [2, 512], strides = [1, 1]} : vector<16x512xf32> to vector<2x512xf32>
    %cst_20 = arith.constant dense<0.000000e+00> : vector<2x512xf32>
    %69 = tpu.matmul %39, %6, %cst_20 {dimension_numbers = #tpu.dot_dimension_numbers<[1], [0], [0], [1], [0, 0, 1, 1], [], []>} : vector<2x128xf32>, vector<128x512xf32>, vector<2x512xf32> -> vector<2x512xf32>
    %70 = arith.addf %68, %69 : vector<2x512xf32>
    %71 = vector.extract_strided_slice %70 {offsets = [0, 0], sizes = [2, 128], strides = [1, 1]} : vector<2x512xf32> to vector<2x128xf32>
    %72 = arith.negf %71 : vector<2x128xf32>
    %73 = math.exp %72 : vector<2x128xf32>
    %cst_21 = arith.constant 1.000000e+00 : f32
    %74 = vector.broadcast %cst_21 : f32 to vector<2x128xf32>
    %75 = arith.addf %74, %73 : vector<2x128xf32>
    %76 = arith.divf %74, %75 : vector<2x128xf32>
    %77 = vector.extract_strided_slice %70 {offsets = [0, 128], sizes = [2, 128], strides = [1, 1]} : vector<2x512xf32> to vector<2x128xf32>
    %78 = arith.negf %77 : vector<2x128xf32>
    %79 = math.exp %78 : vector<2x128xf32>
    %cst_22 = arith.constant 1.000000e+00 : f32
    %80 = vector.broadcast %cst_22 : f32 to vector<2x128xf32>
    %81 = arith.addf %80, %79 : vector<2x128xf32>
    %82 = arith.divf %80, %81 : vector<2x128xf32>
    %83 = vector.extract_strided_slice %70 {offsets = [0, 256], sizes = [2, 128], strides = [1, 1]} : vector<2x512xf32> to vector<2x128xf32>
    %84 = math.tanh %83 : vector<2x128xf32>
    %85 = vector.extract_strided_slice %70 {offsets = [0, 384], sizes = [2, 128], strides = [1, 1]} : vector<2x512xf32> to vector<2x128xf32>
    %86 = arith.negf %85 : vector<2x128xf32>
    %87 = math.exp %86 : vector<2x128xf32>
    %cst_23 = arith.constant 1.000000e+00 : f32
    %88 = vector.broadcast %cst_23 : f32 to vector<2x128xf32>
    %89 = arith.addf %88, %87 : vector<2x128xf32>
    %90 = arith.divf %88, %89 : vector<2x128xf32>
    %91 = arith.mulf %82, %37 : vector<2x128xf32>
    %92 = arith.mulf %76, %84 : vector<2x128xf32>
    %93 = arith.addf %91, %92 : vector<2x128xf32>
    %94 = math.tanh %93 : vector<2x128xf32>
    %95 = arith.mulf %90, %94 : vector<2x128xf32>
    %96 = tpu.concatenate %95, %67 in 1 : vector<2x128xf32>, vector<2x128xf32> -> vector<2x256xf32>
    %cst_24 = arith.constant dense<0.000000e+00> : vector<2x512xf32>
    %97 = tpu.matmul %96, %7, %cst_24 {dimension_numbers = #tpu.dot_dimension_numbers<[1], [0], [0], [1], [0, 0, 1, 1], [], []>} : vector<2x256xf32>, vector<256x512xf32>, vector<2x512xf32> -> vector<2x512xf32>
    %98 = arith.addf %97, %10 : vector<2x512xf32>
    %99 = vector.extract_strided_slice %98 {offsets = [0, 0], sizes = [2, 128], strides = [1, 1]} : vector<2x512xf32> to vector<2x128xf32>
    %100 = arith.negf %99 : vector<2x128xf32>
    %101 = math.exp %100 : vector<2x128xf32>
    %cst_25 = arith.constant 1.000000e+00 : f32
    %102 = vector.broadcast %cst_25 : f32 to vector<2x128xf32>
    %103 = arith.addf %102, %101 : vector<2x128xf32>
    %104 = arith.divf %102, %103 : vector<2x128xf32>
    %105 = vector.extract_strided_slice %98 {offsets = [0, 128], sizes = [2, 128], strides = [1, 1]} : vector<2x512xf32> to vector<2x128xf32>
    %106 = arith.negf %105 : vector<2x128xf32>
    %107 = math.exp %106 : vector<2x128xf32>
    %cst_26 = arith.constant 1.000000e+00 : f32
    %108 = vector.broadcast %cst_26 : f32 to vector<2x128xf32>
    %109 = arith.addf %108, %107 : vector<2x128xf32>
    %110 = arith.divf %108, %109 : vector<2x128xf32>
    %111 = vector.extract_strided_slice %98 {offsets = [0, 256], sizes = [2, 128], strides = [1, 1]} : vector<2x512xf32> to vector<2x128xf32>
    %112 = math.tanh %111 : vector<2x128xf32>
    %113 = vector.extract_strided_slice %98 {offsets = [0, 384], sizes = [2, 128], strides = [1, 1]} : vector<2x512xf32> to vector<2x128xf32>
    %114 = arith.negf %113 : vector<2x128xf32>
    %115 = math.exp %114 : vector<2x128xf32>
    %cst_27 = arith.constant 1.000000e+00 : f32
    %116 = vector.broadcast %cst_27 : f32 to vector<2x128xf32>
    %117 = arith.addf %116, %115 : vector<2x128xf32>
    %118 = arith.divf %116, %117 : vector<2x128xf32>
    %119 = arith.mulf %110, %65 : vector<2x128xf32>
    %120 = arith.mulf %104, %112 : vector<2x128xf32>
    %121 = arith.addf %119, %120 : vector<2x128xf32>
    %122 = math.tanh %121 : vector<2x128xf32>
    %123 = arith.mulf %118, %122 : vector<2x128xf32>
    %124 = vector.extract_strided_slice %5 {offsets = [4, 0], sizes = [2, 512], strides = [1, 1]} : vector<16x512xf32> to vector<2x512xf32>
    %cst_28 = arith.constant dense<0.000000e+00> : vector<2x512xf32>
    %125 = tpu.matmul %95, %6, %cst_28 {dimension_numbers = #tpu.dot_dimension_numbers<[1], [0], [0], [1], [0, 0, 1, 1], [], []>} : vector<2x128xf32>, vector<128x512xf32>, vector<2x512xf32> -> vector<2x512xf32>
    %126 = arith.addf %124, %125 : vector<2x512xf32>
    %127 = vector.extract_strided_slice %126 {offsets = [0, 0], sizes = [2, 128], strides = [1, 1]} : vector<2x512xf32> to vector<2x128xf32>
    %128 = arith.negf %127 : vector<2x128xf32>
    %129 = math.exp %128 : vector<2x128xf32>
    %cst_29 = arith.constant 1.000000e+00 : f32
    %130 = vector.broadcast %cst_29 : f32 to vector<2x128xf32>
    %131 = arith.addf %130, %129 : vector<2x128xf32>
    %132 = arith.divf %130, %131 : vector<2x128xf32>
    %133 = vector.extract_strided_slice %126 {offsets = [0, 128], sizes = [2, 128], strides = [1, 1]} : vector<2x512xf32> to vector<2x128xf32>
    %134 = arith.negf %133 : vector<2x128xf32>
    %135 = math.exp %134 : vector<2x128xf32>
    %cst_30 = arith.constant 1.000000e+00 : f32
    %136 = vector.broadcast %cst_30 : f32 to vector<2x128xf32>
    %137 = arith.addf %136, %135 : vector<2x128xf32>
    %138 = arith.divf %136, %137 : vector<2x128xf32>
    %139 = vector.extract_strided_slice %126 {offsets = [0, 256], sizes = [2, 128], strides = [1, 1]} : vector<2x512xf32> to vector<2x128xf32>
    %140 = math.tanh %139 : vector<2x128xf32>
    %141 = vector.extract_strided_slice %126 {offsets = [0, 384], sizes = [2, 128], strides = [1, 1]} : vector<2x512xf32> to vector<2x128xf32>
    %142 = arith.negf %141 : vector<2x128xf32>
    %143 = math.exp %142 : vector<2x128xf32>
    %cst_31 = arith.constant 1.000000e+00 : f32
    %144 = vector.broadcast %cst_31 : f32 to vector<2x128xf32>
    %145 = arith.addf %144, %143 : vector<2x128xf32>
    %146 = arith.divf %144, %145 : vector<2x128xf32>
    %147 = arith.mulf %138, %93 : vector<2x128xf32>
    %148 = arith.mulf %132, %140 : vector<2x128xf32>
    %149 = arith.addf %147, %148 : vector<2x128xf32>
    %150 = math.tanh %149 : vector<2x128xf32>
    %151 = arith.mulf %146, %150 : vector<2x128xf32>
    %152 = tpu.concatenate %151, %123 in 1 : vector<2x128xf32>, vector<2x128xf32> -> vector<2x256xf32>
    %cst_32 = arith.constant dense<0.000000e+00> : vector<2x512xf32>
    %153 = tpu.matmul %152, %7, %cst_32 {dimension_numbers = #tpu.dot_dimension_numbers<[1], [0], [0], [1], [0, 0, 1, 1], [], []>} : vector<2x256xf32>, vector<256x512xf32>, vector<2x512xf32> -> vector<2x512xf32>
    %154 = arith.addf %153, %10 : vector<2x512xf32>
    %155 = vector.extract_strided_slice %154 {offsets = [0, 0], sizes = [2, 128], strides = [1, 1]} : vector<2x512xf32> to vector<2x128xf32>
    %156 = arith.negf %155 : vector<2x128xf32>
    %157 = math.exp %156 : vector<2x128xf32>
    %cst_33 = arith.constant 1.000000e+00 : f32
    %158 = vector.broadcast %cst_33 : f32 to vector<2x128xf32>
    %159 = arith.addf %158, %157 : vector<2x128xf32>
    %160 = arith.divf %158, %159 : vector<2x128xf32>
    %161 = vector.extract_strided_slice %154 {offsets = [0, 128], sizes = [2, 128], strides = [1, 1]} : vector<2x512xf32> to vector<2x128xf32>
    %162 = arith.negf %161 : vector<2x128xf32>
    %163 = math.exp %162 : vector<2x128xf32>
    %cst_34 = arith.constant 1.000000e+00 : f32
    %164 = vector.broadcast %cst_34 : f32 to vector<2x128xf32>
    %165 = arith.addf %164, %163 : vector<2x128xf32>
    %166 = arith.divf %164, %165 : vector<2x128xf32>
    %167 = vector.extract_strided_slice %154 {offsets = [0, 256], sizes = [2, 128], strides = [1, 1]} : vector<2x512xf32> to vector<2x128xf32>
    %168 = math.tanh %167 : vector<2x128xf32>
    %169 = vector.extract_strided_slice %154 {offsets = [0, 384], sizes = [2, 128], strides = [1, 1]} : vector<2x512xf32> to vector<2x128xf32>
    %170 = arith.negf %169 : vector<2x128xf32>
    %171 = math.exp %170 : vector<2x128xf32>
    %cst_35 = arith.constant 1.000000e+00 : f32
    %172 = vector.broadcast %cst_35 : f32 to vector<2x128xf32>
    %173 = arith.addf %172, %171 : vector<2x128xf32>
    %174 = arith.divf %172, %173 : vector<2x128xf32>
    %175 = arith.mulf %166, %121 : vector<2x128xf32>
    %176 = arith.mulf %160, %168 : vector<2x128xf32>
    %177 = arith.addf %175, %176 : vector<2x128xf32>
    %178 = math.tanh %177 : vector<2x128xf32>
    %179 = arith.mulf %174, %178 : vector<2x128xf32>
    %180 = vector.extract_strided_slice %5 {offsets = [6, 0], sizes = [2, 512], strides = [1, 1]} : vector<16x512xf32> to vector<2x512xf32>
    %cst_36 = arith.constant dense<0.000000e+00> : vector<2x512xf32>
    %181 = tpu.matmul %151, %6, %cst_36 {dimension_numbers = #tpu.dot_dimension_numbers<[1], [0], [0], [1], [0, 0, 1, 1], [], []>} : vector<2x128xf32>, vector<128x512xf32>, vector<2x512xf32> -> vector<2x512xf32>
    %182 = arith.addf %180, %181 : vector<2x512xf32>
    %183 = vector.extract_strided_slice %182 {offsets = [0, 0], sizes = [2, 128], strides = [1, 1]} : vector<2x512xf32> to vector<2x128xf32>
    %184 = arith.negf %183 : vector<2x128xf32>
    %185 = math.exp %184 : vector<2x128xf32>
    %cst_37 = arith.constant 1.000000e+00 : f32
    %186 = vector.broadcast %cst_37 : f32 to vector<2x128xf32>
    %187 = arith.addf %186, %185 : vector<2x128xf32>
    %188 = arith.divf %186, %187 : vector<2x128xf32>
    %189 = vector.extract_strided_slice %182 {offsets = [0, 128], sizes = [2, 128], strides = [1, 1]} : vector<2x512xf32> to vector<2x128xf32>
    %190 = arith.negf %189 : vector<2x128xf32>
    %191 = math.exp %190 : vector<2x128xf32>
    %cst_38 = arith.constant 1.000000e+00 : f32
    %192 = vector.broadcast %cst_38 : f32 to vector<2x128xf32>
    %193 = arith.addf %192, %191 : vector<2x128xf32>
    %194 = arith.divf %192, %193 : vector<2x128xf32>
    %195 = vector.extract_strided_slice %182 {offsets = [0, 256], sizes = [2, 128], strides = [1, 1]} : vector<2x512xf32> to vector<2x128xf32>
    %196 = math.tanh %195 : vector<2x128xf32>
    %197 = vector.extract_strided_slice %182 {offsets = [0, 384], sizes = [2, 128], strides = [1, 1]} : vector<2x512xf32> to vector<2x128xf32>
    %198 = arith.negf %197 : vector<2x128xf32>
    %199 = math.exp %198 : vector<2x128xf32>
    %cst_39 = arith.constant 1.000000e+00 : f32
    %200 = vector.broadcast %cst_39 : f32 to vector<2x128xf32>
    %201 = arith.addf %200, %199 : vector<2x128xf32>
    %202 = arith.divf %200, %201 : vector<2x128xf32>
    %203 = arith.mulf %194, %149 : vector<2x128xf32>
    %204 = arith.mulf %188, %196 : vector<2x128xf32>
    %205 = arith.addf %203, %204 : vector<2x128xf32>
    %206 = math.tanh %205 : vector<2x128xf32>
    %207 = arith.mulf %202, %206 : vector<2x128xf32>
    %208 = tpu.concatenate %207, %179 in 1 : vector<2x128xf32>, vector<2x128xf32> -> vector<2x256xf32>
    %cst_40 = arith.constant dense<0.000000e+00> : vector<2x512xf32>
    %209 = tpu.matmul %208, %7, %cst_40 {dimension_numbers = #tpu.dot_dimension_numbers<[1], [0], [0], [1], [0, 0, 1, 1], [], []>} : vector<2x256xf32>, vector<256x512xf32>, vector<2x512xf32> -> vector<2x512xf32>
    %210 = arith.addf %209, %10 : vector<2x512xf32>
    %211 = vector.extract_strided_slice %210 {offsets = [0, 0], sizes = [2, 128], strides = [1, 1]} : vector<2x512xf32> to vector<2x128xf32>
    %212 = arith.negf %211 : vector<2x128xf32>
    %213 = math.exp %212 : vector<2x128xf32>
    %cst_41 = arith.constant 1.000000e+00 : f32
    %214 = vector.broadcast %cst_41 : f32 to vector<2x128xf32>
    %215 = arith.addf %214, %213 : vector<2x128xf32>
    %216 = arith.divf %214, %215 : vector<2x128xf32>
    %217 = vector.extract_strided_slice %210 {offsets = [0, 128], sizes = [2, 128], strides = [1, 1]} : vector<2x512xf32> to vector<2x128xf32>
    %218 = arith.negf %217 : vector<2x128xf32>
    %219 = math.exp %218 : vector<2x128xf32>
    %cst_42 = arith.constant 1.000000e+00 : f32
    %220 = vector.broadcast %cst_42 : f32 to vector<2x128xf32>
    %221 = arith.addf %220, %219 : vector<2x128xf32>
    %222 = arith.divf %220, %221 : vector<2x128xf32>
    %223 = vector.extract_strided_slice %210 {offsets = [0, 256], sizes = [2, 128], strides = [1, 1]} : vector<2x512xf32> to vector<2x128xf32>
    %224 = math.tanh %223 : vector<2x128xf32>
    %225 = vector.extract_strided_slice %210 {offsets = [0, 384], sizes = [2, 128], strides = [1, 1]} : vector<2x512xf32> to vector<2x128xf32>
    %226 = arith.negf %225 : vector<2x128xf32>
    %227 = math.exp %226 : vector<2x128xf32>
    %cst_43 = arith.constant 1.000000e+00 : f32
    %228 = vector.broadcast %cst_43 : f32 to vector<2x128xf32>
    %229 = arith.addf %228, %227 : vector<2x128xf32>
    %230 = arith.divf %228, %229 : vector<2x128xf32>
    %231 = arith.mulf %222, %177 : vector<2x128xf32>
    %232 = arith.mulf %216, %224 : vector<2x128xf32>
    %233 = arith.addf %231, %232 : vector<2x128xf32>
    %234 = math.tanh %233 : vector<2x128xf32>
    %235 = arith.mulf %230, %234 : vector<2x128xf32>
    %236 = vector.extract_strided_slice %5 {offsets = [8, 0], sizes = [2, 512], strides = [1, 1]} : vector<16x512xf32> to vector<2x512xf32>
    %cst_44 = arith.constant dense<0.000000e+00> : vector<2x512xf32>
    %237 = tpu.matmul %207, %6, %cst_44 {dimension_numbers = #tpu.dot_dimension_numbers<[1], [0], [0], [1], [0, 0, 1, 1], [], []>} : vector<2x128xf32>, vector<128x512xf32>, vector<2x512xf32> -> vector<2x512xf32>
    %238 = arith.addf %236, %237 : vector<2x512xf32>
    %239 = vector.extract_strided_slice %238 {offsets = [0, 0], sizes = [2, 128], strides = [1, 1]} : vector<2x512xf32> to vector<2x128xf32>
    %240 = arith.negf %239 : vector<2x128xf32>
    %241 = math.exp %240 : vector<2x128xf32>
    %cst_45 = arith.constant 1.000000e+00 : f32
    %242 = vector.broadcast %cst_45 : f32 to vector<2x128xf32>
    %243 = arith.addf %242, %241 : vector<2x128xf32>
    %244 = arith.divf %242, %243 : vector<2x128xf32>
    %245 = vector.extract_strided_slice %238 {offsets = [0, 128], sizes = [2, 128], strides = [1, 1]} : vector<2x512xf32> to vector<2x128xf32>
    %246 = arith.negf %245 : vector<2x128xf32>
    %247 = math.exp %246 : vector<2x128xf32>
    %cst_46 = arith.constant 1.000000e+00 : f32
    %248 = vector.broadcast %cst_46 : f32 to vector<2x128xf32>
    %249 = arith.addf %248, %247 : vector<2x128xf32>
    %250 = arith.divf %248, %249 : vector<2x128xf32>
    %251 = vector.extract_strided_slice %238 {offsets = [0, 256], sizes = [2, 128], strides = [1, 1]} : vector<2x512xf32> to vector<2x128xf32>
    %252 = math.tanh %251 : vector<2x128xf32>
    %253 = vector.extract_strided_slice %238 {offsets = [0, 384], sizes = [2, 128], strides = [1, 1]} : vector<2x512xf32> to vector<2x128xf32>
    %254 = arith.negf %253 : vector<2x128xf32>
    %255 = math.exp %254 : vector<2x128xf32>
    %cst_47 = arith.constant 1.000000e+00 : f32
    %256 = vector.broadcast %cst_47 : f32 to vector<2x128xf32>
    %257 = arith.addf %256, %255 : vector<2x128xf32>
    %258 = arith.divf %256, %257 : vector<2x128xf32>
    %259 = arith.mulf %250, %205 : vector<2x128xf32>
    %260 = arith.mulf %244, %252 : vector<2x128xf32>
    %261 = arith.addf %259, %260 : vector<2x128xf32>
    %262 = math.tanh %261 : vector<2x128xf32>
    %263 = arith.mulf %258, %262 : vector<2x128xf32>
    %264 = tpu.concatenate %263, %235 in 1 : vector<2x128xf32>, vector<2x128xf32> -> vector<2x256xf32>
    %cst_48 = arith.constant dense<0.000000e+00> : vector<2x512xf32>
    %265 = tpu.matmul %264, %7, %cst_48 {dimension_numbers = #tpu.dot_dimension_numbers<[1], [0], [0], [1], [0, 0, 1, 1], [], []>} : vector<2x256xf32>, vector<256x512xf32>, vector<2x512xf32> -> vector<2x512xf32>
    %266 = arith.addf %265, %10 : vector<2x512xf32>
    %267 = vector.extract_strided_slice %266 {offsets = [0, 0], sizes = [2, 128], strides = [1, 1]} : vector<2x512xf32> to vector<2x128xf32>
    %268 = arith.negf %267 : vector<2x128xf32>
    %269 = math.exp %268 : vector<2x128xf32>
    %cst_49 = arith.constant 1.000000e+00 : f32
    %270 = vector.broadcast %cst_49 : f32 to vector<2x128xf32>
    %271 = arith.addf %270, %269 : vector<2x128xf32>
    %272 = arith.divf %270, %271 : vector<2x128xf32>
    %273 = vector.extract_strided_slice %266 {offsets = [0, 128], sizes = [2, 128], strides = [1, 1]} : vector<2x512xf32> to vector<2x128xf32>
    %274 = arith.negf %273 : vector<2x128xf32>
    %275 = math.exp %274 : vector<2x128xf32>
    %cst_50 = arith.constant 1.000000e+00 : f32
    %276 = vector.broadcast %cst_50 : f32 to vector<2x128xf32>
    %277 = arith.addf %276, %275 : vector<2x128xf32>
    %278 = arith.divf %276, %277 : vector<2x128xf32>
    %279 = vector.extract_strided_slice %266 {offsets = [0, 256], sizes = [2, 128], strides = [1, 1]} : vector<2x512xf32> to vector<2x128xf32>
    %280 = math.tanh %279 : vector<2x128xf32>
    %281 = vector.extract_strided_slice %266 {offsets = [0, 384], sizes = [2, 128], strides = [1, 1]} : vector<2x512xf32> to vector<2x128xf32>
    %282 = arith.negf %281 : vector<2x128xf32>
    %283 = math.exp %282 : vector<2x128xf32>
    %cst_51 = arith.constant 1.000000e+00 : f32
    %284 = vector.broadcast %cst_51 : f32 to vector<2x128xf32>
    %285 = arith.addf %284, %283 : vector<2x128xf32>
    %286 = arith.divf %284, %285 : vector<2x128xf32>
    %287 = arith.mulf %278, %233 : vector<2x128xf32>
    %288 = arith.mulf %272, %280 : vector<2x128xf32>
    %289 = arith.addf %287, %288 : vector<2x128xf32>
    %290 = math.tanh %289 : vector<2x128xf32>
    %291 = arith.mulf %286, %290 : vector<2x128xf32>
    %292 = vector.extract_strided_slice %5 {offsets = [10, 0], sizes = [2, 512], strides = [1, 1]} : vector<16x512xf32> to vector<2x512xf32>
    %cst_52 = arith.constant dense<0.000000e+00> : vector<2x512xf32>
    %293 = tpu.matmul %263, %6, %cst_52 {dimension_numbers = #tpu.dot_dimension_numbers<[1], [0], [0], [1], [0, 0, 1, 1], [], []>} : vector<2x128xf32>, vector<128x512xf32>, vector<2x512xf32> -> vector<2x512xf32>
    %294 = arith.addf %292, %293 : vector<2x512xf32>
    %295 = vector.extract_strided_slice %294 {offsets = [0, 0], sizes = [2, 128], strides = [1, 1]} : vector<2x512xf32> to vector<2x128xf32>
    %296 = arith.negf %295 : vector<2x128xf32>
    %297 = math.exp %296 : vector<2x128xf32>
    %cst_53 = arith.constant 1.000000e+00 : f32
    %298 = vector.broadcast %cst_53 : f32 to vector<2x128xf32>
    %299 = arith.addf %298, %297 : vector<2x128xf32>
    %300 = arith.divf %298, %299 : vector<2x128xf32>
    %301 = vector.extract_strided_slice %294 {offsets = [0, 128], sizes = [2, 128], strides = [1, 1]} : vector<2x512xf32> to vector<2x128xf32>
    %302 = arith.negf %301 : vector<2x128xf32>
    %303 = math.exp %302 : vector<2x128xf32>
    %cst_54 = arith.constant 1.000000e+00 : f32
    %304 = vector.broadcast %cst_54 : f32 to vector<2x128xf32>
    %305 = arith.addf %304, %303 : vector<2x128xf32>
    %306 = arith.divf %304, %305 : vector<2x128xf32>
    %307 = vector.extract_strided_slice %294 {offsets = [0, 256], sizes = [2, 128], strides = [1, 1]} : vector<2x512xf32> to vector<2x128xf32>
    %308 = math.tanh %307 : vector<2x128xf32>
    %309 = vector.extract_strided_slice %294 {offsets = [0, 384], sizes = [2, 128], strides = [1, 1]} : vector<2x512xf32> to vector<2x128xf32>
    %310 = arith.negf %309 : vector<2x128xf32>
    %311 = math.exp %310 : vector<2x128xf32>
    %cst_55 = arith.constant 1.000000e+00 : f32
    %312 = vector.broadcast %cst_55 : f32 to vector<2x128xf32>
    %313 = arith.addf %312, %311 : vector<2x128xf32>
    %314 = arith.divf %312, %313 : vector<2x128xf32>
    %315 = arith.mulf %306, %261 : vector<2x128xf32>
    %316 = arith.mulf %300, %308 : vector<2x128xf32>
    %317 = arith.addf %315, %316 : vector<2x128xf32>
    %318 = math.tanh %317 : vector<2x128xf32>
    %319 = arith.mulf %314, %318 : vector<2x128xf32>
    %320 = tpu.concatenate %319, %291 in 1 : vector<2x128xf32>, vector<2x128xf32> -> vector<2x256xf32>
    %cst_56 = arith.constant dense<0.000000e+00> : vector<2x512xf32>
    %321 = tpu.matmul %320, %7, %cst_56 {dimension_numbers = #tpu.dot_dimension_numbers<[1], [0], [0], [1], [0, 0, 1, 1], [], []>} : vector<2x256xf32>, vector<256x512xf32>, vector<2x512xf32> -> vector<2x512xf32>
    %322 = arith.addf %321, %10 : vector<2x512xf32>
    %323 = vector.extract_strided_slice %322 {offsets = [0, 0], sizes = [2, 128], strides = [1, 1]} : vector<2x512xf32> to vector<2x128xf32>
    %324 = arith.negf %323 : vector<2x128xf32>
    %325 = math.exp %324 : vector<2x128xf32>
    %cst_57 = arith.constant 1.000000e+00 : f32
    %326 = vector.broadcast %cst_57 : f32 to vector<2x128xf32>
    %327 = arith.addf %326, %325 : vector<2x128xf32>
    %328 = arith.divf %326, %327 : vector<2x128xf32>
    %329 = vector.extract_strided_slice %322 {offsets = [0, 128], sizes = [2, 128], strides = [1, 1]} : vector<2x512xf32> to vector<2x128xf32>
    %330 = arith.negf %329 : vector<2x128xf32>
    %331 = math.exp %330 : vector<2x128xf32>
    %cst_58 = arith.constant 1.000000e+00 : f32
    %332 = vector.broadcast %cst_58 : f32 to vector<2x128xf32>
    %333 = arith.addf %332, %331 : vector<2x128xf32>
    %334 = arith.divf %332, %333 : vector<2x128xf32>
    %335 = vector.extract_strided_slice %322 {offsets = [0, 256], sizes = [2, 128], strides = [1, 1]} : vector<2x512xf32> to vector<2x128xf32>
    %336 = math.tanh %335 : vector<2x128xf32>
    %337 = vector.extract_strided_slice %322 {offsets = [0, 384], sizes = [2, 128], strides = [1, 1]} : vector<2x512xf32> to vector<2x128xf32>
    %338 = arith.negf %337 : vector<2x128xf32>
    %339 = math.exp %338 : vector<2x128xf32>
    %cst_59 = arith.constant 1.000000e+00 : f32
    %340 = vector.broadcast %cst_59 : f32 to vector<2x128xf32>
    %341 = arith.addf %340, %339 : vector<2x128xf32>
    %342 = arith.divf %340, %341 : vector<2x128xf32>
    %343 = arith.mulf %334, %289 : vector<2x128xf32>
    %344 = arith.mulf %328, %336 : vector<2x128xf32>
    %345 = arith.addf %343, %344 : vector<2x128xf32>
    %346 = math.tanh %345 : vector<2x128xf32>
    %347 = arith.mulf %342, %346 : vector<2x128xf32>
    %348 = vector.extract_strided_slice %5 {offsets = [12, 0], sizes = [2, 512], strides = [1, 1]} : vector<16x512xf32> to vector<2x512xf32>
    %cst_60 = arith.constant dense<0.000000e+00> : vector<2x512xf32>
    %349 = tpu.matmul %319, %6, %cst_60 {dimension_numbers = #tpu.dot_dimension_numbers<[1], [0], [0], [1], [0, 0, 1, 1], [], []>} : vector<2x128xf32>, vector<128x512xf32>, vector<2x512xf32> -> vector<2x512xf32>
    %350 = arith.addf %348, %349 : vector<2x512xf32>
    %351 = vector.extract_strided_slice %350 {offsets = [0, 0], sizes = [2, 128], strides = [1, 1]} : vector<2x512xf32> to vector<2x128xf32>
    %352 = arith.negf %351 : vector<2x128xf32>
    %353 = math.exp %352 : vector<2x128xf32>
    %cst_61 = arith.constant 1.000000e+00 : f32
    %354 = vector.broadcast %cst_61 : f32 to vector<2x128xf32>
    %355 = arith.addf %354, %353 : vector<2x128xf32>
    %356 = arith.divf %354, %355 : vector<2x128xf32>
    %357 = vector.extract_strided_slice %350 {offsets = [0, 128], sizes = [2, 128], strides = [1, 1]} : vector<2x512xf32> to vector<2x128xf32>
    %358 = arith.negf %357 : vector<2x128xf32>
    %359 = math.exp %358 : vector<2x128xf32>
    %cst_62 = arith.constant 1.000000e+00 : f32
    %360 = vector.broadcast %cst_62 : f32 to vector<2x128xf32>
    %361 = arith.addf %360, %359 : vector<2x128xf32>
    %362 = arith.divf %360, %361 : vector<2x128xf32>
    %363 = vector.extract_strided_slice %350 {offsets = [0, 256], sizes = [2, 128], strides = [1, 1]} : vector<2x512xf32> to vector<2x128xf32>
    %364 = math.tanh %363 : vector<2x128xf32>
    %365 = vector.extract_strided_slice %350 {offsets = [0, 384], sizes = [2, 128], strides = [1, 1]} : vector<2x512xf32> to vector<2x128xf32>
    %366 = arith.negf %365 : vector<2x128xf32>
    %367 = math.exp %366 : vector<2x128xf32>
    %cst_63 = arith.constant 1.000000e+00 : f32
    %368 = vector.broadcast %cst_63 : f32 to vector<2x128xf32>
    %369 = arith.addf %368, %367 : vector<2x128xf32>
    %370 = arith.divf %368, %369 : vector<2x128xf32>
    %371 = arith.mulf %362, %317 : vector<2x128xf32>
    %372 = arith.mulf %356, %364 : vector<2x128xf32>
    %373 = arith.addf %371, %372 : vector<2x128xf32>
    %374 = math.tanh %373 : vector<2x128xf32>
    %375 = arith.mulf %370, %374 : vector<2x128xf32>
    %376 = tpu.concatenate %375, %347 in 1 : vector<2x128xf32>, vector<2x128xf32> -> vector<2x256xf32>
    %cst_64 = arith.constant dense<0.000000e+00> : vector<2x512xf32>
    %377 = tpu.matmul %376, %7, %cst_64 {dimension_numbers = #tpu.dot_dimension_numbers<[1], [0], [0], [1], [0, 0, 1, 1], [], []>} : vector<2x256xf32>, vector<256x512xf32>, vector<2x512xf32> -> vector<2x512xf32>
    %378 = arith.addf %377, %10 : vector<2x512xf32>
    %379 = vector.extract_strided_slice %378 {offsets = [0, 0], sizes = [2, 128], strides = [1, 1]} : vector<2x512xf32> to vector<2x128xf32>
    %380 = arith.negf %379 : vector<2x128xf32>
    %381 = math.exp %380 : vector<2x128xf32>
    %cst_65 = arith.constant 1.000000e+00 : f32
    %382 = vector.broadcast %cst_65 : f32 to vector<2x128xf32>
    %383 = arith.addf %382, %381 : vector<2x128xf32>
    %384 = arith.divf %382, %383 : vector<2x128xf32>
    %385 = vector.extract_strided_slice %378 {offsets = [0, 128], sizes = [2, 128], strides = [1, 1]} : vector<2x512xf32> to vector<2x128xf32>
    %386 = arith.negf %385 : vector<2x128xf32>
    %387 = math.exp %386 : vector<2x128xf32>
    %cst_66 = arith.constant 1.000000e+00 : f32
    %388 = vector.broadcast %cst_66 : f32 to vector<2x128xf32>
    %389 = arith.addf %388, %387 : vector<2x128xf32>
    %390 = arith.divf %388, %389 : vector<2x128xf32>
    %391 = vector.extract_strided_slice %378 {offsets = [0, 256], sizes = [2, 128], strides = [1, 1]} : vector<2x512xf32> to vector<2x128xf32>
    %392 = math.tanh %391 : vector<2x128xf32>
    %393 = vector.extract_strided_slice %378 {offsets = [0, 384], sizes = [2, 128], strides = [1, 1]} : vector<2x512xf32> to vector<2x128xf32>
    %394 = arith.negf %393 : vector<2x128xf32>
    %395 = math.exp %394 : vector<2x128xf32>
    %cst_67 = arith.constant 1.000000e+00 : f32
    %396 = vector.broadcast %cst_67 : f32 to vector<2x128xf32>
    %397 = arith.addf %396, %395 : vector<2x128xf32>
    %398 = arith.divf %396, %397 : vector<2x128xf32>
    %399 = arith.mulf %390, %345 : vector<2x128xf32>
    %400 = arith.mulf %384, %392 : vector<2x128xf32>
    %401 = arith.addf %399, %400 : vector<2x128xf32>
    %402 = math.tanh %401 : vector<2x128xf32>
    %403 = arith.mulf %398, %402 : vector<2x128xf32>
    %404 = vector.extract_strided_slice %5 {offsets = [14, 0], sizes = [2, 512], strides = [1, 1]} : vector<16x512xf32> to vector<2x512xf32>
    %cst_68 = arith.constant dense<0.000000e+00> : vector<2x512xf32>
    %405 = tpu.matmul %375, %6, %cst_68 {dimension_numbers = #tpu.dot_dimension_numbers<[1], [0], [0], [1], [0, 0, 1, 1], [], []>} : vector<2x128xf32>, vector<128x512xf32>, vector<2x512xf32> -> vector<2x512xf32>
    %406 = arith.addf %404, %405 : vector<2x512xf32>
    %407 = vector.extract_strided_slice %406 {offsets = [0, 0], sizes = [2, 128], strides = [1, 1]} : vector<2x512xf32> to vector<2x128xf32>
    %408 = arith.negf %407 : vector<2x128xf32>
    %409 = math.exp %408 : vector<2x128xf32>
    %cst_69 = arith.constant 1.000000e+00 : f32
    %410 = vector.broadcast %cst_69 : f32 to vector<2x128xf32>
    %411 = arith.addf %410, %409 : vector<2x128xf32>
    %412 = arith.divf %410, %411 : vector<2x128xf32>
    %413 = vector.extract_strided_slice %406 {offsets = [0, 128], sizes = [2, 128], strides = [1, 1]} : vector<2x512xf32> to vector<2x128xf32>
    %414 = arith.negf %413 : vector<2x128xf32>
    %415 = math.exp %414 : vector<2x128xf32>
    %cst_70 = arith.constant 1.000000e+00 : f32
    %416 = vector.broadcast %cst_70 : f32 to vector<2x128xf32>
    %417 = arith.addf %416, %415 : vector<2x128xf32>
    %418 = arith.divf %416, %417 : vector<2x128xf32>
    %419 = vector.extract_strided_slice %406 {offsets = [0, 256], sizes = [2, 128], strides = [1, 1]} : vector<2x512xf32> to vector<2x128xf32>
    %420 = math.tanh %419 : vector<2x128xf32>
    %421 = vector.extract_strided_slice %406 {offsets = [0, 384], sizes = [2, 128], strides = [1, 1]} : vector<2x512xf32> to vector<2x128xf32>
    %422 = arith.negf %421 : vector<2x128xf32>
    %423 = math.exp %422 : vector<2x128xf32>
    %cst_71 = arith.constant 1.000000e+00 : f32
    %424 = vector.broadcast %cst_71 : f32 to vector<2x128xf32>
    %425 = arith.addf %424, %423 : vector<2x128xf32>
    %426 = arith.divf %424, %425 : vector<2x128xf32>
    %427 = arith.mulf %418, %373 : vector<2x128xf32>
    %428 = arith.mulf %412, %420 : vector<2x128xf32>
    %429 = arith.addf %427, %428 : vector<2x128xf32>
    %430 = math.tanh %429 : vector<2x128xf32>
    %431 = arith.mulf %426, %430 : vector<2x128xf32>
    %432 = tpu.concatenate %431, %403 in 1 : vector<2x128xf32>, vector<2x128xf32> -> vector<2x256xf32>
    %cst_72 = arith.constant dense<0.000000e+00> : vector<2x512xf32>
    %433 = tpu.matmul %432, %7, %cst_72 {dimension_numbers = #tpu.dot_dimension_numbers<[1], [0], [0], [1], [0, 0, 1, 1], [], []>} : vector<2x256xf32>, vector<256x512xf32>, vector<2x512xf32> -> vector<2x512xf32>
    %434 = arith.addf %433, %10 : vector<2x512xf32>
    %435 = vector.extract_strided_slice %434 {offsets = [0, 0], sizes = [2, 128], strides = [1, 1]} : vector<2x512xf32> to vector<2x128xf32>
    %436 = arith.negf %435 : vector<2x128xf32>
    %437 = math.exp %436 : vector<2x128xf32>
    %cst_73 = arith.constant 1.000000e+00 : f32
    %438 = vector.broadcast %cst_73 : f32 to vector<2x128xf32>
    %439 = arith.addf %438, %437 : vector<2x128xf32>
    %440 = arith.divf %438, %439 : vector<2x128xf32>
    %441 = vector.extract_strided_slice %434 {offsets = [0, 128], sizes = [2, 128], strides = [1, 1]} : vector<2x512xf32> to vector<2x128xf32>
    %442 = arith.negf %441 : vector<2x128xf32>
    %443 = math.exp %442 : vector<2x128xf32>
    %cst_74 = arith.constant 1.000000e+00 : f32
    %444 = vector.broadcast %cst_74 : f32 to vector<2x128xf32>
    %445 = arith.addf %444, %443 : vector<2x128xf32>
    %446 = arith.divf %444, %445 : vector<2x128xf32>
    %447 = vector.extract_strided_slice %434 {offsets = [0, 256], sizes = [2, 128], strides = [1, 1]} : vector<2x512xf32> to vector<2x128xf32>
    %448 = math.tanh %447 : vector<2x128xf32>
    %449 = vector.extract_strided_slice %434 {offsets = [0, 384], sizes = [2, 128], strides = [1, 1]} : vector<2x512xf32> to vector<2x128xf32>
    %450 = arith.negf %449 : vector<2x128xf32>
    %451 = math.exp %450 : vector<2x128xf32>
    %cst_75 = arith.constant 1.000000e+00 : f32
    %452 = vector.broadcast %cst_75 : f32 to vector<2x128xf32>
    %453 = arith.addf %452, %451 : vector<2x128xf32>
    %454 = arith.divf %452, %453 : vector<2x128xf32>
    %455 = arith.mulf %446, %401 : vector<2x128xf32>
    %456 = arith.mulf %440, %448 : vector<2x128xf32>
    %457 = arith.addf %455, %456 : vector<2x128xf32>
    %458 = math.tanh %457 : vector<2x128xf32>
    %459 = arith.mulf %454, %458 : vector<2x128xf32>
    %c0_76 = arith.constant 0 : index
    %c0_77 = arith.constant 0 : index
    %460 = vector.load %arg6[%c0_76, %c0_77] : memref<128x2xf32, #tpu.memory_space<vmem>>, vector<128x2xf32>
    %cst_78 = arith.constant dense<0.000000e+00> : vector<2x2xf32>
    %461 = tpu.matmul %459, %460, %cst_78 {dimension_numbers = #tpu.dot_dimension_numbers<[1], [0], [0], [1], [0, 0, 1, 1], [], []>} : vector<2x128xf32>, vector<128x2xf32>, vector<2x2xf32> -> vector<2x2xf32>
    %c0_79 = arith.constant 0 : index
    %c0_80 = arith.constant 0 : index
    %462 = vector.load %arg7[%c0_79, %c0_80] : memref<1x2xf32, #tpu.memory_space<vmem>>, vector<1x2xf32>
    %463 = vector.broadcast %462 : vector<1x2xf32> to vector<2x2xf32>
    %464 = arith.addf %461, %463 : vector<2x2xf32>
    %c0_81 = arith.constant 0 : index
    %c0_82 = arith.constant 0 : index
    %465 = vector.load %arg8[%c0_81, %c0_82] : memref<2x2xf32, #tpu.memory_space<vmem>>, vector<2x2xf32>
    tpu.vector_store %arg8[%c0_81, %c0_82], %464 {strides = array<i32>} : memref<2x2xf32, #tpu.memory_space<vmem>>, vector<2x2xf32>,
    return
  }
}

</mosaic_0001>

<llo_original>
// kernel: lstm_forward.1
$region0: #{lstm_forward.1}
  #allocation0 [shape = 'u32[]', space=smem, size = 0x4, offset = 0x4, fixed_abs, tag = 'smem constant byte address 0x4 - core index']
  #allocation1 [shape = 'u32[144,128]{1,0:T(1,128)}', space=vmem, size = 0x12000, scoped, tag = 'internal scratch']
  %s0 = inlined_call_operand.vmem [shape: f32[16,2], index: 0, kind: input, shape index: {}]
  %s1 = inlined_call_operand.vmem [shape: f32[2,512], index: 1, kind: input, shape index: {}]
  %s2 = inlined_call_operand.vmem [shape: f32[128,512], index: 2, kind: input, shape index: {}]
  %s3 = inlined_call_operand.vmem [shape: f32[1,512], index: 3, kind: input, shape index: {}]
  %s4 = inlined_call_operand.vmem [shape: f32[256,512], index: 4, kind: input, shape index: {}]
  %s5 = inlined_call_operand.vmem [shape: f32[1,512], index: 5, kind: input, shape index: {}]
  %s6 = inlined_call_operand.vmem [shape: f32[128,2], index: 6, kind: input, shape index: {}]
  %s7 = inlined_call_operand.vmem [shape: f32[1,2], index: 7, kind: input, shape index: {}]
  %s8 = inlined_call_operand.hbm [shape: f32[2,2], index: 8, kind: output, shape index: {}]
  %s9 = sld [smem:[#allocation0]]
  $region42: #{lstm_forward.1} parent=0
    _
  %s11 = ssub.s32 1, %s9
  %s12 = scalar_select 0, %s11, %s9
  $region1: #{lstm_forward.1} parent=0
    #allocation2 [shape = 'u8[1024]{0}', space=vmem, size = 0x400, scoped, tag = 'output window, operand 0, single buffered']
    #allocation3 [shape = 's32[1]{0}', space=sflag, size = 0x4, scoped, tag = 'scoped memory for lstm_forward.1']
    %13 = vsyncpa [#allocation3], 0
    // Predicated region
    $region2: #{lstm_forward.1} parent=1 // pred_check
      _
    $region3: #{lstm_forward.1} parent=1 // pred_check_branch
      %15 = sbr.rel (0) target = $region5
    $region4: #{lstm_forward.1} parent=1 // pred_region
      _
    $region5: #{lstm_forward.1} parent=1 // pred_fallthru
      _
    // Predicated region
    $region6: #{lstm_forward.1} parent=1 // pred_check
      _
    $region7: #{lstm_forward.1} parent=1 // pred_check_branch
      %17 = sbr.rel (0) target = $region9
    $region8: #{lstm_forward.1} parent=1 // pred_region
      _
    $region9: #{lstm_forward.1} parent=1 // pred_fallthru
      _
    // Predicated region
    $region10: #{lstm_forward.1} parent=1 // pred_check
      _
    $region11: #{lstm_forward.1} parent=1 // pred_check_branch
      %19 = sbr.rel (0) target = $region13
    $region12: #{lstm_forward.1} parent=1 // pred_region
      _
    $region13: #{lstm_forward.1} parent=1 // pred_fallthru
      _
    // Predicated region
    $region14: #{lstm_forward.1} parent=1 // pred_check
      _
    $region15: #{lstm_forward.1} parent=1 // pred_check_branch
      %21 = sbr.rel (0) target = $region17
    $region16: #{lstm_forward.1} parent=1 // pred_region
      _
    $region17: #{lstm_forward.1} parent=1 // pred_fallthru
      _
    // Predicated region
    $region18: #{lstm_forward.1} parent=1 // pred_check
      _
    $region19: #{lstm_forward.1} parent=1 // pred_check_branch
      %23 = sbr.rel (0) target = $region21
    $region20: #{lstm_forward.1} parent=1 // pred_region
      _
    $region21: #{lstm_forward.1} parent=1 // pred_fallthru
      _
    // Predicated region
    $region22: #{lstm_forward.1} parent=1 // pred_check
      _
    $region23: #{lstm_forward.1} parent=1 // pred_check_branch
      %25 = sbr.rel (0) target = $region25
    $region24: #{lstm_forward.1} parent=1 // pred_region
      _
    $region25: #{lstm_forward.1} parent=1 // pred_fallthru
      _
    // Predicated region
    $region26: #{lstm_forward.1} parent=1 // pred_check
      _
    $region27: #{lstm_forward.1} parent=1 // pred_check_branch
      %27 = sbr.rel (0) target = $region29
    $region28: #{lstm_forward.1} parent=1 // pred_region
      _
    $region29: #{lstm_forward.1} parent=1 // pred_fallthru
      _
    // Predicated region
    $region30: #{lstm_forward.1} parent=1 // pred_check
      _
    $region31: #{lstm_forward.1} parent=1 // pred_check_branch
      %29 = sbr.rel (0) target = $region33
    $region32: #{lstm_forward.1} parent=1 // pred_region
      _
    $region33: #{lstm_forward.1} parent=1 // pred_fallthru
      _
    %v30 = vld [vmem:[%s0] sm:$0xff]
    %v31 = vld [vmem:[%s0 + $0x8] sm:$0xff]
    %v32 = vld [vmem:[%s1] sm:$0xff]
    %v33 = vld [vmem:[%s3] sm:$0xf]
    %v35 = vlaneseq
    %v36 = vshrl.u32 %v35, 7
    %v37 = vsub.s32 0, %v36
    %v38 = vrot.slane %v33, %v37
    %v39 = vlaneseq
    %v40 = vshrl.u32 %v39, 7
    %v41 = vsub.s32 1, %v40
    %v42 = vrot.slane %v33, %v41
    %v43 = vlaneseq
    %v44 = vshrl.u32 %v43, 7
    %v45 = vsub.s32 2, %v44
    %v46 = vrot.slane %v33, %v45
    %v47 = vlaneseq
    %v48 = vshrl.u32 %v47, 7
    %v49 = vsub.s32 3, %v48
    %v50 = vrot.slane %v33, %v49
    %v56 = vcombine.high %v32, %v32
    %v58 = vunpack.c.l.s4 1983009808
    %v59 = vunpack.c.0.s8 %v58
    %v60 = vlaneseq
    %v61 = vshrl.u32 %v60, 7
    %v62 = vsub.s32 %v59, %v61
    %v63 = vrot.slane %v32, %v62
    %v65 = vunpack.c.l.s4 1983009808
    %v66 = vunpack.c.0.s8 %v65
    %v67 = vlaneseq
    %v68 = vshrl.u32 %v67, 7
    %v69 = vsub.s32 %v66, %v68
    %v70 = vrot.slane %v56, %v69
    %v71 = vcombine.high %v63, %v63
    %v72 = vcombine.high %v70, %v70
    %vm73 = vcmask 15360
    %v75 = vsel %vm73, %v30, 0
    %v78 = vsel %vm73, %v31, 0
    %vm80 = vcmask 1041408
    %v81 = vsel %vm80, %v63, 0
    %v83 = vsel %vm80, %v71, 0
    %v85 = vsel %vm80, %v70, 0
    %v87 = vsel %vm80, %v72, 0
    %89 = vmatprep.subr.mxu0 %v83
    %90 = vmatpush1.msra.mxu0 %v81
    %91 = vmatprep.subr.mxu0 0.0
    %92 = vmatpush1.msra.mxu0 0.0
    %93 = vmatprep.subr.mxu0 0.0
    %94 = vmatpush1.msra.mxu0 0.0
    %95 = vmatprep.subr.mxu0 0.0
    %96 = vmatpush1.msra.mxu0 0.0
    %97 = vmatprep.subr.mxu0 0.0
    %98 = vmatpush1.msra.mxu0 0.0
    %99 = vmatprep.subr.mxu0 0.0
    %100 = vmatpush1.msra.mxu0 0.0
    %101 = vmatprep.subr.mxu0 0.0
    %102 = vmatpush1.msra.mxu0 0.0
    %103 = vmatprep.subr.mxu0 0.0
    %104 = vmatpush1.msra.mxu0 0.0
    %105 = vmatprep.subr.mxu0 0.0
    %106 = vmatpush1.msra.mxu0 0.0
    %107 = vmatprep.subr.mxu0 0.0
    %108 = vmatpush1.msra.mxu0 0.0
    %109 = vmatprep.subr.mxu0 0.0
    %110 = vmatpush1.msra.mxu0 0.0
    %111 = vmatprep.subr.mxu0 0.0
    %112 = vmatpush1.msra.mxu0 0.0
    %113 = vmatprep.subr.mxu0 0.0
    %114 = vmatpush1.msra.mxu0 0.0
    %115 = vmatprep.subr.mxu0 0.0
    %116 = vmatpush1.msra.mxu0 0.0
    %117 = vmatprep.subr.mxu0 0.0
    %118 = vmatpush1.msra.mxu0 0.0
    %119 = vmatprep.subr.mxu0 0.0
    %120 = vmatpush1.msra.mxu0 0.0
    %121 = vmatprep.subr.mxu0 0.0
    %122 = vmatpush1.msra.mxu0 0.0
    %123 = vmatprep.subr.mxu0 0.0
    %124 = vmatpush1.msra.mxu0 0.0
    %125 = vmatprep.subr.mxu0 0.0
    %126 = vmatpush1.msra.mxu0 0.0
    %127 = vmatprep.subr.mxu0 0.0
    %128 = vmatpush1.msra.mxu0 0.0
    %129 = vmatprep.subr.mxu0 0.0
    %130 = vmatpush1.msra.mxu0 0.0
    %131 = vmatprep.subr.mxu0 0.0
    %132 = vmatpush1.msra.mxu0 0.0
    %133 = vmatprep.subr.mxu0 0.0
    %134 = vmatpush1.msra.mxu0 0.0
    %135 = vmatprep.subr.mxu0 0.0
    %136 = vmatpush1.msra.mxu0 0.0
    %137 = vmatprep.subr.mxu0 0.0
    %138 = vmatpush1.msra.mxu0 0.0
    %139 = vmatprep.subr.mxu0 0.0
    %140 = vmatpush1.msra.mxu0 0.0
    %141 = vmatprep.subr.mxu0 0.0
    %142 = vmatpush1.msra.mxu0 0.0
    %143 = vmatprep.subr.mxu0 0.0
    %144 = vmatpush1.msra.mxu0 0.0
    %145 = vmatprep.subr.mxu0 0.0
    %146 = vmatpush1.msra.mxu0 0.0
    %147 = vmatprep.subr.mxu0 0.0
    %148 = vmatpush1.msra.mxu0 0.0
    %149 = vmatprep.subr.mxu0 0.0
    %150 = vmatpush1.msra.mxu0 0.0
    %151 = vmatprep.subr.mxu0 0.0
    %152 = vmatpush1.msra.mxu0 0.0
    %153 = vmatprep.mubr.f32.mxu0 0.0
    %154 = vmatmul.mubr.f32.gmra.mrb[0].mxu0 %v75
    %v155 = vpop.f32.mrb[0].mxu0
    %v156 = vadd.f32 %v38, %v155
    %v157 = vpop.f32.mrb[0].mxu0
    %v158 = vadd.f32 %v42, %v157
    %159 = vmatprep.mubr.f32.mxu0 0.0
    %160 = vmatmul.mubr.f32.gmra.mrb[0].mxu0 %v78
    %v161 = vpop.f32.mrb[0].mxu0
    %v162 = vadd.f32 %v38, %v161
    %v163 = vpop.f32.mrb[0].mxu0
    %v164 = vadd.f32 %v42, %v163
    %165 = vdwg.mxu0
    %166 = vmatprep.subr.mxu0 %v87
    %167 = vmatpush1.msra.mxu0 %v85
    %168 = vmatprep.subr.mxu0 0.0
    %169 = vmatpush1.msra.mxu0 0.0
    %170 = vmatprep.subr.mxu0 0.0
    %171 = vmatpush1.msra.mxu0 0.0
    %172 = vmatprep.subr.mxu0 0.0
    %173 = vmatpush1.msra.mxu0 0.0
    %174 = vmatprep.subr.mxu0 0.0
    %175 = vmatpush1.msra.mxu0 0.0
    %176 = vmatprep.subr.mxu0 0.0
    %177 = vmatpush1.msra.mxu0 0.0
    %178 = vmatprep.subr.mxu0 0.0
    %179 = vmatpush1.msra.mxu0 0.0
    %180 = vmatprep.subr.mxu0 0.0
    %181 = vmatpush1.msra.mxu0 0.0
    %182 = vmatprep.subr.mxu0 0.0
    %183 = vmatpush1.msra.mxu0 0.0
    %184 = vmatprep.subr.mxu0 0.0
    %185 = vmatpush1.msra.mxu0 0.0
    %186 = vmatprep.subr.mxu0 0.0
    %187 = vmatpush1.msra.mxu0 0.0
    %188 = vmatprep.subr.mxu0 0.0
    %189 = vmatpush1.msra.mxu0 0.0
    %190 = vmatprep.subr.mxu0 0.0
    %191 = vmatpush1.msra.mxu0 0.0
    %192 = vmatprep.subr.mxu0 0.0
    %193 = vmatpush1.msra.mxu0 0.0
    %194 = vmatprep.subr.mxu0 0.0
    %195 = vmatpush1.msra.mxu0 0.0
    %196 = vmatprep.subr.mxu0 0.0
    %197 = vmatpush1.msra.mxu0 0.0
    %198 = vmatprep.subr.mxu0 0.0
    %199 = vmatpush1.msra.mxu0 0.0
    %200 = vmatprep.subr.mxu0 0.0
    %201 = vmatpush1.msra.mxu0 0.0
    %202 = vmatprep.subr.mxu0 0.0
    %203 = vmatpush1.msra.mxu0 0.0
    %204 = vmatprep.subr.mxu0 0.0
    %205 = vmatpush1.msra.mxu0 0.0
    %206 = vmatprep.subr.mxu0 0.0
    %207 = vmatpush1.msra.mxu0 0.0
    %208 = vmatprep.subr.mxu0 0.0
    %209 = vmatpush1.msra.mxu0 0.0
    %210 = vmatprep.subr.mxu0 0.0
    %211 = vmatpush1.msra.mxu0 0.0
    %212 = vmatprep.subr.mxu0 0.0
    %213 = vmatpush1.msra.mxu0 0.0
    %214 = vmatprep.subr.mxu0 0.0
    %215 = vmatpush1.msra.mxu0 0.0
    %216 = vmatprep.subr.mxu0 0.0
    %217 = vmatpush1.msra.mxu0 0.0
    %218 = vmatprep.subr.mxu0 0.0
    %219 = vmatpush1.msra.mxu0 0.0
    %220 = vmatprep.subr.mxu0 0.0
    %221 = vmatpush1.msra.mxu0 0.0
    %222 = vmatprep.subr.mxu0 0.0
    %223 = vmatpush1.msra.mxu0 0.0
    %224 = vmatprep.subr.mxu0 0.0
    %225 = vmatpush1.msra.mxu0 0.0
    %226 = vmatprep.subr.mxu0 0.0
    %227 = vmatpush1.msra.mxu0 0.0
    %228 = vmatprep.subr.mxu0 0.0
    %229 = vmatpush1.msra.mxu0 0.0
    %230 = vmatprep.mubr.f32.mxu0 0.0
    %231 = vmatmul.mubr.f32.gmra.mrb[0].mxu0 %v75
    %v232 = vpop.f32.mrb[0].mxu0
    %v233 = vadd.f32 %v46, %v232
    %v234 = vpop.f32.mrb[0].mxu0
    %v235 = vadd.f32 %v50, %v234
    %236 = vmatprep.mubr.f32.mxu0 0.0
    %237 = vmatmul.mubr.f32.gmra.mrb[0].mxu0 %v78
    %v238 = vpop.f32.mrb[0].mxu0
    %v239 = vadd.f32 %v46, %v238
    %v240 = vpop.f32.mrb[0].mxu0
    %v241 = vadd.f32 %v50, %v240
    %242 = vdwg.mxu0
    %v243 = vld [vmem:[%s2] sm:$0xff]
    %v244 = vld [vmem:[%s2 + $0x8] sm:$0xff]
    %v245 = vld [vmem:[%s2 + $0x10] sm:$0xff]
    %v246 = vld [vmem:[%s2 + $0x18] sm:$0xff]
    %v247 = vld [vmem:[%s2 + $0x20] sm:$0xff]
    %v248 = vld [vmem:[%s2 + $0x28] sm:$0xff]
    %v249 = vld [vmem:[%s2 + $0x30] sm:$0xff]
    %v250 = vld [vmem:[%s2 + $0x38] sm:$0xff]
    %v251 = vld [vmem:[%s2 + $0x40] sm:$0xff]
    %v252 = vld [vmem:[%s2 + $0x48] sm:$0xff]
    %v253 = vld [vmem:[%s2 + $0x50] sm:$0xff]
    %v254 = vld [vmem:[%s2 + $0x58] sm:$0xff]
    %v255 = vld [vmem:[%s2 + $0x60] sm:$0xff]
    %v256 = vld [vmem:[%s2 + $0x68] sm:$0xff]
    %v257 = vld [vmem:[%s2 + $0x70] sm:$0xff]
    %v258 = vld [vmem:[%s2 + $0x78] sm:$0xff]
    %v259 = vld [vmem:[%s2 + $0x80] sm:$0xff]
    %v260 = vld [vmem:[%s2 + $0x88] sm:$0xff]
    %v261 = vld [vmem:[%s2 + $0x90] sm:$0xff]
    %v262 = vld [vmem:[%s2 + $0x98] sm:$0xff]
    %v263 = vld [vmem:[%s2 + $0xa0] sm:$0xff]
    %v264 = vld [vmem:[%s2 + $0xa8] sm:$0xff]
    %v265 = vld [vmem:[%s2 + $0xb0] sm:$0xff]
    %v266 = vld [vmem:[%s2 + $0xb8] sm:$0xff]
    %v267 = vld [vmem:[%s2 + $0xc0] sm:$0xff]
    %v268 = vld [vmem:[%s2 + $0xc8] sm:$0xff]
    %v269 = vld [vmem:[%s2 + $0xd0] sm:$0xff]
    %v270 = vld [vmem:[%s2 + $0xd8] sm:$0xff]
    %v271 = vld [vmem:[%s2 + $0xe0] sm:$0xff]
    %v272 = vld [vmem:[%s2 + $0xe8] sm:$0xff]
    %v273 = vld [vmem:[%s2 + $0xf0] sm:$0xff]
    %v274 = vld [vmem:[%s2 + $0xf8] sm:$0xff]
    %v275 = vld [vmem:[%s2 + $0x100] sm:$0xff]
    %v276 = vld [vmem:[%s2 + $0x108] sm:$0xff]
    %v277 = vld [vmem:[%s2 + $0x110] sm:$0xff]
    %v278 = vld [vmem:[%s2 + $0x118] sm:$0xff]
    %v279 = vld [vmem:[%s2 + $0x120] sm:$0xff]
    %v280 = vld [vmem:[%s2 + $0x128] sm:$0xff]
    %v281 = vld [vmem:[%s2 + $0x130] sm:$0xff]
    %v282 = vld [vmem:[%s2 + $0x138] sm:$0xff]
    %v283 = vld [vmem:[%s2 + $0x140] sm:$0xff]
    %v284 = vld [vmem:[%s2 + $0x148] sm:$0xff]
    %v285 = vld [vmem:[%s2 + $0x150] sm:$0xff]
    %v286 = vld [vmem:[%s2 + $0x158] sm:$0xff]
    %v287 = vld [vmem:[%s2 + $0x160] sm:$0xff]
    %v288 = vld [vmem:[%s2 + $0x168] sm:$0xff]
    %v289 = vld [vmem:[%s2 + $0x170] sm:$0xff]
    %v290 = vld [vmem:[%s2 + $0x178] sm:$0xff]
    %v291 = vld [vmem:[%s2 + $0x180] sm:$0xff]
    %v292 = vld [vmem:[%s2 + $0x188] sm:$0xff]
    %v293 = vld [vmem:[%s2 + $0x190] sm:$0xff]
    %v294 = vld [vmem:[%s2 + $0x198] sm:$0xff]
    %v295 = vld [vmem:[%s2 + $0x1a0] sm:$0xff]
    %v296 = vld [vmem:[%s2 + $0x1a8] sm:$0xff]
    %v297 = vld [vmem:[%s2 + $0x1b0] sm:$0xff]
    %v298 = vld [vmem:[%s2 + $0x1b8] sm:$0xff]
    %v299 = vld [vmem:[%s2 + $0x1c0] sm:$0xff]
    %v300 = vld [vmem:[%s2 + $0x1c8] sm:$0xff]
    %v301 = vld [vmem:[%s2 + $0x1d0] sm:$0xff]
    %v302 = vld [vmem:[%s2 + $0x1d8] sm:$0xff]
    %v303 = vld [vmem:[%s2 + $0x1e0] sm:$0xff]
    %v304 = vld [vmem:[%s2 + $0x1e8] sm:$0xff]
    %v305 = vld [vmem:[%s2 + $0x1f0] sm:$0xff]
    %v306 = vld [vmem:[%s2 + $0x1f8] sm:$0xff]
    %v307 = vld [vmem:[%s4] sm:$0xff]
    %v308 = vld [vmem:[%s4 + $0x8] sm:$0xff]
    %v309 = vld [vmem:[%s4 + $0x10] sm:$0xff]
    %v310 = vld [vmem:[%s4 + $0x18] sm:$0xff]
    %v311 = vld [vmem:[%s4 + $0x20] sm:$0xff]
    %v312 = vld [vmem:[%s4 + $0x28] sm:$0xff]
    %v313 = vld [vmem:[%s4 + $0x30] sm:$0xff]
    %v314 = vld [vmem:[%s4 + $0x38] sm:$0xff]
    %v315 = vld [vmem:[%s4 + $0x40] sm:$0xff]
    %v316 = vld [vmem:[%s4 + $0x48] sm:$0xff]
    %v317 = vld [vmem:[%s4 + $0x50] sm:$0xff]
    %v318 = vld [vmem:[%s4 + $0x58] sm:$0xff]
    %v319 = vld [vmem:[%s4 + $0x60] sm:$0xff]
    %v320 = vld [vmem:[%s4 + $0x68] sm:$0xff]
    %v321 = vld [vmem:[%s4 + $0x70] sm:$0xff]
    %v322 = vld [vmem:[%s4 + $0x78] sm:$0xff]
    %v323 = vld [vmem:[%s4 + $0x80] sm:$0xff]
    %v324 = vld [vmem:[%s4 + $0x88] sm:$0xff]
    %v325 = vld [vmem:[%s4 + $0x90] sm:$0xff]
    %v326 = vld [vmem:[%s4 + $0x98] sm:$0xff]
    %v327 = vld [vmem:[%s4 + $0xa0] sm:$0xff]
    %v328 = vld [vmem:[%s4 + $0xa8] sm:$0xff]
    %v329 = vld [vmem:[%s4 + $0xb0] sm:$0xff]
    %v330 = vld [vmem:[%s4 + $0xb8] sm:$0xff]
    %v331 = vld [vmem:[%s4 + $0xc0] sm:$0xff]
    %v332 = vld [vmem:[%s4 + $0xc8] sm:$0xff]
    %v333 = vld [vmem:[%s4 + $0xd0] sm:$0xff]
    %v334 = vld [vmem:[%s4 + $0xd8] sm:$0xff]
    %v335 = vld [vmem:[%s4 + $0xe0] sm:$0xff]
    %v336 = vld [vmem:[%s4 + $0xe8] sm:$0xff]
    %v337 = vld [vmem:[%s4 + $0xf0] sm:$0xff]
    %v338 = vld [vmem:[%s4 + $0xf8] sm:$0xff]
    %v339 = vld [vmem:[%s4 + $0x100] sm:$0xff]
    %v340 = vld [vmem:[%s4 + $0x108] sm:$0xff]
    %v341 = vld [vmem:[%s4 + $0x110] sm:$0xff]
    %v342 = vld [vmem:[%s4 + $0x118] sm:$0xff]
    %v343 = vld [vmem:[%s4 + $0x120] sm:$0xff]
    %v344 = vld [vmem:[%s4 + $0x128] sm:$0xff]
    %v345 = vld [vmem:[%s4 + $0x130] sm:$0xff]
    %v346 = vld [vmem:[%s4 + $0x138] sm:$0xff]
    %v347 = vld [vmem:[%s4 + $0x140] sm:$0xff]
    %v348 = vld [vmem:[%s4 + $0x148] sm:$0xff]
    %v349 = vld [vmem:[%s4 + $0x150] sm:$0xff]
    %v350 = vld [vmem:[%s4 + $0x158] sm:$0xff]
    %v351 = vld [vmem:[%s4 + $0x160] sm:$0xff]
    %v352 = vld [vmem:[%s4 + $0x168] sm:$0xff]
    %v353 = vld [vmem:[%s4 + $0x170] sm:$0xff]
    %v354 = vld [vmem:[%s4 + $0x178] sm:$0xff]
    %v355 = vld [vmem:[%s4 + $0x180] sm:$0xff]
    %v356 = vld [vmem:[%s4 + $0x188] sm:$0xff]
    %v357 = vld [vmem:[%s4 + $0x190] sm:$0xff]
    %v358 = vld [vmem:[%s4 + $0x198] sm:$0xff]
    %v359 = vld [vmem:[%s4 + $0x1a0] sm:$0xff]
    %v360 = vld [vmem:[%s4 + $0x1a8] sm:$0xff]
    %v361 = vld [vmem:[%s4 + $0x1b0] sm:$0xff]
    %v362 = vld [vmem:[%s4 + $0x1b8] sm:$0xff]
    %v363 = vld [vmem:[%s4 + $0x1c0] sm:$0xff]
    %v364 = vld [vmem:[%s4 + $0x1c8] sm:$0xff]
    %v365 = vld [vmem:[%s4 + $0x1d0] sm:$0xff]
    %v366 = vld [vmem:[%s4 + $0x1d8] sm:$0xff]
    %v367 = vld [vmem:[%s4 + $0x1e0] sm:$0xff]
    %v368 = vld [vmem:[%s4 + $0x1e8] sm:$0xff]
    %v369 = vld [vmem:[%s4 + $0x1f0] sm:$0xff]
    %v370 = vld [vmem:[%s4 + $0x1f8] sm:$0xff]
    %v371 = vld [vmem:[%s4 + $0x200] sm:$0xff]
    %v372 = vld [vmem:[%s4 + $0x208] sm:$0xff]
    %v373 = vld [vmem:[%s4 + $0x210] sm:$0xff]
    %v374 = vld [vmem:[%s4 + $0x218] sm:$0xff]
    %v375 = vld [vmem:[%s4 + $0x220] sm:$0xff]
    %v376 = vld [vmem:[%s4 + $0x228] sm:$0xff]
    %v377 = vld [vmem:[%s4 + $0x230] sm:$0xff]
    %v378 = vld [vmem:[%s4 + $0x238] sm:$0xff]
    %v379 = vld [vmem:[%s4 + $0x240] sm:$0xff]
    %v380 = vld [vmem:[%s4 + $0x248] sm:$0xff]
    %v381 = vld [vmem:[%s4 + $0x250] sm:$0xff]
    %v382 = vld [vmem:[%s4 + $0x258] sm:$0xff]
    %v383 = vld [vmem:[%s4 + $0x260] sm:$0xff]
    %v384 = vld [vmem:[%s4 + $0x268] sm:$0xff]
    %v385 = vld [vmem:[%s4 + $0x270] sm:$0xff]
    %v386 = vld [vmem:[%s4 + $0x278] sm:$0xff]
    %v387 = vld [vmem:[%s4 + $0x280] sm:$0xff]
    %v388 = vld [vmem:[%s4 + $0x288] sm:$0xff]
    %v389 = vld [vmem:[%s4 + $0x290] sm:$0xff]
    %v390 = vld [vmem:[%s4 + $0x298] sm:$0xff]
    %v391 = vld [vmem:[%s4 + $0x2a0] sm:$0xff]
    %v392 = vld [vmem:[%s4 + $0x2a8] sm:$0xff]
    %v393 = vld [vmem:[%s4 + $0x2b0] sm:$0xff]
    %v394 = vld [vmem:[%s4 + $0x2b8] sm:$0xff]
    %v395 = vld [vmem:[%s4 + $0x2c0] sm:$0xff]
    %v396 = vld [vmem:[%s4 + $0x2c8] sm:$0xff]
    %v397 = vld [vmem:[%s4 + $0x2d0] sm:$0xff]
    %v398 = vld [vmem:[%s4 + $0x2d8] sm:$0xff]
    %v399 = vld [vmem:[%s4 + $0x2e0] sm:$0xff]
    %v400 = vld [vmem:[%s4 + $0x2e8] sm:$0xff]
    %v401 = vld [vmem:[%s4 + $0x2f0] sm:$0xff]
    %v402 = vld [vmem:[%s4 + $0x2f8] sm:$0xff]
    %v403 = vld [vmem:[%s4 + $0x300] sm:$0xff]
    %v404 = vld [vmem:[%s4 + $0x308] sm:$0xff]
    %v405 = vld [vmem:[%s4 + $0x310] sm:$0xff]
    %v406 = vld [vmem:[%s4 + $0x318] sm:$0xff]
    %v407 = vld [vmem:[%s4 + $0x320] sm:$0xff]
    %v408 = vld [vmem:[%s4 + $0x328] sm:$0xff]
    %v409 = vld [vmem:[%s4 + $0x330] sm:$0xff]
    %v410 = vld [vmem:[%s4 + $0x338] sm:$0xff]
    %v411 = vld [vmem:[%s4 + $0x340] sm:$0xff]
    %v412 = vld [vmem:[%s4 + $0x348] sm:$0xff]
    %v413 = vld [vmem:[%s4 + $0x350] sm:$0xff]
    %v414 = vld [vmem:[%s4 + $0x358] sm:$0xff]
    %v415 = vld [vmem:[%s4 + $0x360] sm:$0xff]
    %v416 = vld [vmem:[%s4 + $0x368] sm:$0xff]
    %v417 = vld [vmem:[%s4 + $0x370] sm:$0xff]
    %v418 = vld [vmem:[%s4 + $0x378] sm:$0xff]
    %v419 = vld [vmem:[%s4 + $0x380] sm:$0xff]
    %v420 = vld [vmem:[%s4 + $0x388] sm:$0xff]
    %v421 = vld [vmem:[%s4 + $0x390] sm:$0xff]
    %v422 = vld [vmem:[%s4 + $0x398] sm:$0xff]
    %v423 = vld [vmem:[%s4 + $0x3a0] sm:$0xff]
    %v424 = vld [vmem:[%s4 + $0x3a8] sm:$0xff]
    %v425 = vld [vmem:[%s4 + $0x3b0] sm:$0xff]
    %v426 = vld [vmem:[%s4 + $0x3b8] sm:$0xff]
    %v427 = vld [vmem:[%s4 + $0x3c0] sm:$0xff]
    %v428 = vld [vmem:[%s4 + $0x3c8] sm:$0xff]
    %v429 = vld [vmem:[%s4 + $0x3d0] sm:$0xff]
    %v430 = vld [vmem:[%s4 + $0x3d8] sm:$0xff]
    %v431 = vld [vmem:[%s4 + $0x3e0] sm:$0xff]
    %v432 = vld [vmem:[%s4 + $0x3e8] sm:$0xff]
    %v433 = vld [vmem:[%s4 + $0x3f0] sm:$0xff]
    %v434 = vld [vmem:[%s4 + $0x3f8] sm:$0xff]
    %v435 = vld [vmem:[%s5] sm:$0xf]
    %v437 = vlaneseq
    %v438 = vshrl.u32 %v437, 7
    %v439 = vsub.s32 0, %v438
    %v440 = vrot.slane %v435, %v439
    %v441 = vlaneseq
    %v442 = vshrl.u32 %v441, 7
    %v443 = vsub.s32 1, %v442
    %v444 = vrot.slane %v435, %v443
    %v445 = vlaneseq
    %v446 = vshrl.u32 %v445, 7
    %v447 = vsub.s32 2, %v446
    %v448 = vrot.slane %v435, %v447
    %v449 = vlaneseq
    %v450 = vshrl.u32 %v449, 7
    %v451 = vsub.s32 3, %v450
    %v452 = vrot.slane %v435, %v451
    %457 = vmatprep.subr.mxu0 %v244
    %458 = vmatpush1.msra.mxu0 %v243
    %459 = vmatprep.subr.mxu0 %v248
    %460 = vmatpush1.msra.mxu0 %v247
    %461 = vmatprep.subr.mxu0 %v252
    %462 = vmatpush1.msra.mxu0 %v251
    %463 = vmatprep.subr.mxu0 %v256
    %464 = vmatpush1.msra.mxu0 %v255
    %465 = vmatprep.subr.mxu0 %v260
    %466 = vmatpush1.msra.mxu0 %v259
    %467 = vmatprep.subr.mxu0 %v264
    %468 = vmatpush1.msra.mxu0 %v263
    %469 = vmatprep.subr.mxu0 %v268
    %470 = vmatpush1.msra.mxu0 %v267
    %471 = vmatprep.subr.mxu0 %v272
    %472 = vmatpush1.msra.mxu0 %v271
    %473 = vmatprep.subr.mxu0 %v276
    %474 = vmatpush1.msra.mxu0 %v275
    %475 = vmatprep.subr.mxu0 %v280
    %476 = vmatpush1.msra.mxu0 %v279
    %477 = vmatprep.subr.mxu0 %v284
    %478 = vmatpush1.msra.mxu0 %v283
    %479 = vmatprep.subr.mxu0 %v288
    %480 = vmatpush1.msra.mxu0 %v287
    %481 = vmatprep.subr.mxu0 %v292
    %482 = vmatpush1.msra.mxu0 %v291
    %483 = vmatprep.subr.mxu0 %v296
    %484 = vmatpush1.msra.mxu0 %v295
    %485 = vmatprep.subr.mxu0 %v300
    %486 = vmatpush1.msra.mxu0 %v299
    %487 = vmatprep.subr.mxu0 %v304
    %488 = vmatpush1.msra.mxu0 %v303
    %489 = vmatprep.subr.mxu0 0.0
    %490 = vmatpush1.msra.mxu0 0.0
    %491 = vmatprep.subr.mxu0 0.0
    %492 = vmatpush1.msra.mxu0 0.0
    %493 = vmatprep.subr.mxu0 0.0
    %494 = vmatpush1.msra.mxu0 0.0
    %495 = vmatprep.subr.mxu0 0.0
    %496 = vmatpush1.msra.mxu0 0.0
    %497 = vmatprep.subr.mxu0 0.0
    %498 = vmatpush1.msra.mxu0 0.0
    %499 = vmatprep.subr.mxu0 0.0
    %500 = vmatpush1.msra.mxu0 0.0
    %501 = vmatprep.subr.mxu0 0.0
    %502 = vmatpush1.msra.mxu0 0.0
    %503 = vmatprep.subr.mxu0 0.0
    %504 = vmatpush1.msra.mxu0 0.0
    %505 = vmatprep.subr.mxu0 0.0
    %506 = vmatpush1.msra.mxu0 0.0
    %507 = vmatprep.subr.mxu0 0.0
    %508 = vmatpush1.msra.mxu0 0.0
    %509 = vmatprep.subr.mxu0 0.0
    %510 = vmatpush1.msra.mxu0 0.0
    %511 = vmatprep.subr.mxu0 0.0
    %512 = vmatpush1.msra.mxu0 0.0
    %513 = vmatprep.subr.mxu0 0.0
    %514 = vmatpush1.msra.mxu0 0.0
    %515 = vmatprep.subr.mxu0 0.0
    %516 = vmatpush1.msra.mxu0 0.0
    %517 = vmatprep.subr.mxu0 0.0
    %518 = vmatpush1.msra.mxu0 0.0
    %519 = vmatprep.subr.mxu0 0.0
    %520 = vmatpush1.msra.mxu0 0.0
    %521 = vmatprep.mubr.f32.mxu0 0.0
    %522 = vmatmul.mubr.f32.gmra.mrb[0].mxu0 0.0
    %v523 = vpop.f32.mrb[0].mxu0
    %v524 = vadd.f32 0.0, %v523
    %v525 = vpop.f32.mrb[0].mxu0
    %v526 = vadd.f32 0.0, %v525
    %527 = vdwg.mxu0
    %528 = vmatprep.subr.mxu0 %v246
    %529 = vmatpush1.msra.mxu0 %v245
    %530 = vmatprep.subr.mxu0 %v250
    %531 = vmatpush1.msra.mxu0 %v249
    %532 = vmatprep.subr.mxu0 %v254
    %533 = vmatpush1.msra.mxu0 %v253
    %534 = vmatprep.subr.mxu0 %v258
    %535 = vmatpush1.msra.mxu0 %v257
    %536 = vmatprep.subr.mxu0 %v262
    %537 = vmatpush1.msra.mxu0 %v261
    %538 = vmatprep.subr.mxu0 %v266
    %539 = vmatpush1.msra.mxu0 %v265
    %540 = vmatprep.subr.mxu0 %v270
    %541 = vmatpush1.msra.mxu0 %v269
    %542 = vmatprep.subr.mxu0 %v274
    %543 = vmatpush1.msra.mxu0 %v273
    %544 = vmatprep.subr.mxu0 %v278
    %545 = vmatpush1.msra.mxu0 %v277
    %546 = vmatprep.subr.mxu0 %v282
    %547 = vmatpush1.msra.mxu0 %v281
    %548 = vmatprep.subr.mxu0 %v286
    %549 = vmatpush1.msra.mxu0 %v285
    %550 = vmatprep.subr.mxu0 %v290
    %551 = vmatpush1.msra.mxu0 %v289
    %552 = vmatprep.subr.mxu0 %v294
    %553 = vmatpush1.msra.mxu0 %v293
    %554 = vmatprep.subr.mxu0 %v298
    %555 = vmatpush1.msra.mxu0 %v297
    %556 = vmatprep.subr.mxu0 %v302
    %557 = vmatpush1.msra.mxu0 %v301
    %558 = vmatprep.subr.mxu0 %v306
    %559 = vmatpush1.msra.mxu0 %v305
    %560 = vmatprep.subr.mxu0 0.0
    %561 = vmatpush1.msra.mxu0 0.0
    %562 = vmatprep.subr.mxu0 0.0
    %563 = vmatpush1.msra.mxu0 0.0
    %564 = vmatprep.subr.mxu0 0.0
    %565 = vmatpush1.msra.mxu0 0.0
    %566 = vmatprep.subr.mxu0 0.0
    %567 = vmatpush1.msra.mxu0 0.0
    %568 = vmatprep.subr.mxu0 0.0
    %569 = vmatpush1.msra.mxu0 0.0
    %570 = vmatprep.subr.mxu0 0.0
    %571 = vmatpush1.msra.mxu0 0.0
    %572 = vmatprep.subr.mxu0 0.0
    %573 = vmatpush1.msra.mxu0 0.0
    %574 = vmatprep.subr.mxu0 0.0
    %575 = vmatpush1.msra.mxu0 0.0
    %576 = vmatprep.subr.mxu0 0.0
    %577 = vmatpush1.msra.mxu0 0.0
    %578 = vmatprep.subr.mxu0 0.0
    %579 = vmatpush1.msra.mxu0 0.0
    %580 = vmatprep.subr.mxu0 0.0
    %581 = vmatpush1.msra.mxu0 0.0
    %582 = vmatprep.subr.mxu0 0.0
    %583 = vmatpush1.msra.mxu0 0.0
    %584 = vmatprep.subr.mxu0 0.0
    %585 = vmatpush1.msra.mxu0 0.0
    %586 = vmatprep.subr.mxu0 0.0
    %587 = vmatpush1.msra.mxu0 0.0
    %588 = vmatprep.subr.mxu0 0.0
    %589 = vmatpush1.msra.mxu0 0.0
    %590 = vmatprep.subr.mxu0 0.0
    %591 = vmatpush1.msra.mxu0 0.0
    %592 = vmatprep.mubr.f32.mxu0 0.0
    %593 = vmatmul.mubr.f32.gmra.mrb[0].mxu0 0.0
    %v594 = vpop.f32.mrb[0].mxu0
    %v595 = vadd.f32 0.0, %v594
    %v596 = vpop.f32.mrb[0].mxu0
    %v597 = vadd.f32 0.0, %v596
    %598 = vdwg.mxu0
    %v599 = vadd.f32 %v156, %v524
    %v600 = vadd.f32 %v158, %v526
    %v601 = vadd.f32 %v233, %v595
    %v602 = vadd.f32 %v235, %v597
    %v603 = vxor.u32 %v599, 2147483648
    %v604 = vmul.f32 %v603, 1.442695
    %v605 = vpow.pop %v604
    %v606 = vadd.f32 %v605, 1.0
    %v607 = vrcp.pop %v606
    %v608 = vmul.f32 1.0, %v607
    %v609 = vxor.u32 %v600, 2147483648
    %v610 = vmul.f32 %v609, 1.442695
    %v611 = vpow.pop %v610
    %v612 = vadd.f32 %v611, 1.0
    %v613 = vrcp.pop %v612
    %v614 = vmul.f32 1.0, %v613
    %v615 = vtanh.pop %v601
    %v616 = vxor.u32 %v602, 2147483648
    %v617 = vmul.f32 %v616, 1.442695
    %v618 = vpow.pop %v617
    %v619 = vadd.f32 %v618, 1.0
    %v620 = vrcp.pop %v619
    %v621 = vmul.f32 1.0, %v620
    %v622 = vmul.f32 %v614, 0.0
    %v623 = vmul.f32 %v608, %v615
    %v624 = vadd.f32 %v622, %v623
    %v625 = vtanh.pop %v624
    %v626 = vmul.f32 %v621, %v625
    %627 = vmatprep.subr.mxu0 %v308
    %628 = vmatpush1.msra.mxu0 %v307
    %629 = vmatprep.subr.mxu0 %v312
    %630 = vmatpush1.msra.mxu0 %v311
    %631 = vmatprep.subr.mxu0 %v316
    %632 = vmatpush1.msra.mxu0 %v315
    %633 = vmatprep.subr.mxu0 %v320
    %634 = vmatpush1.msra.mxu0 %v319
    %635 = vmatprep.subr.mxu0 %v324
    %636 = vmatpush1.msra.mxu0 %v323
    %637 = vmatprep.subr.mxu0 %v328
    %638 = vmatpush1.msra.mxu0 %v327
    %639 = vmatprep.subr.mxu0 %v332
    %640 = vmatpush1.msra.mxu0 %v331
    %641 = vmatprep.subr.mxu0 %v336
    %642 = vmatpush1.msra.mxu0 %v335
    %643 = vmatprep.subr.mxu0 %v340
    %644 = vmatpush1.msra.mxu0 %v339
    %645 = vmatprep.subr.mxu0 %v344
    %646 = vmatpush1.msra.mxu0 %v343
    %647 = vmatprep.subr.mxu0 %v348
    %648 = vmatpush1.msra.mxu0 %v347
    %649 = vmatprep.subr.mxu0 %v352
    %650 = vmatpush1.msra.mxu0 %v351
    %651 = vmatprep.subr.mxu0 %v356
    %652 = vmatpush1.msra.mxu0 %v355
    %653 = vmatprep.subr.mxu0 %v360
    %654 = vmatpush1.msra.mxu0 %v359
    %655 = vmatprep.subr.mxu0 %v364
    %656 = vmatpush1.msra.mxu0 %v363
    %657 = vmatprep.subr.mxu0 %v368
    %658 = vmatpush1.msra.mxu0 %v367
    %659 = vmatprep.subr.mxu0 %v372
    %660 = vmatpush1.msra.mxu0 %v371
    %661 = vmatprep.subr.mxu0 %v376
    %662 = vmatpush1.msra.mxu0 %v375
    %663 = vmatprep.subr.mxu0 %v380
    %664 = vmatpush1.msra.mxu0 %v379
    %665 = vmatprep.subr.mxu0 %v384
    %666 = vmatpush1.msra.mxu0 %v383
    %667 = vmatprep.subr.mxu0 %v388
    %668 = vmatpush1.msra.mxu0 %v387
    %669 = vmatprep.subr.mxu0 %v392
    %670 = vmatpush1.msra.mxu0 %v391
    %671 = vmatprep.subr.mxu0 %v396
    %672 = vmatpush1.msra.mxu0 %v395
    %673 = vmatprep.subr.mxu0 %v400
    %674 = vmatpush1.msra.mxu0 %v399
    %675 = vmatprep.subr.mxu0 %v404
    %676 = vmatpush1.msra.mxu0 %v403
    %677 = vmatprep.subr.mxu0 %v408
    %678 = vmatpush1.msra.mxu0 %v407
    %679 = vmatprep.subr.mxu0 %v412
    %680 = vmatpush1.msra.mxu0 %v411
    %681 = vmatprep.subr.mxu0 %v416
    %682 = vmatpush1.msra.mxu0 %v415
    %683 = vmatprep.subr.mxu0 %v420
    %684 = vmatpush1.msra.mxu0 %v419
    %685 = vmatprep.subr.mxu0 %v424
    %686 = vmatpush1.msra.mxu0 %v423
    %687 = vmatprep.subr.mxu0 %v428
    %688 = vmatpush1.msra.mxu0 %v427
    %689 = vmatprep.subr.mxu0 %v432
    %690 = vmatpush1.msra.mxu0 %v431
    %691 = vmatprep.mubr.f32.mxu0 0.0
    %692 = vmatmul.mubr.f32.gmra.mrb[0].mxu0 %v626
    %v693 = vpop.f32.mrb[0].mxu0
    %v694 = vadd.f32 %v440, %v693
    %v695 = vpop.f32.mrb[0].mxu0
    %v696 = vadd.f32 %v444, %v695
    %697 = vdwg.mxu0
    %698 = vmatprep.subr.mxu0 %v310
    %699 = vmatpush1.msra.mxu0 %v309
    %700 = vmatprep.subr.mxu0 %v314
    %701 = vmatpush1.msra.mxu0 %v313
    %702 = vmatprep.subr.mxu0 %v318
    %703 = vmatpush1.msra.mxu0 %v317
    %704 = vmatprep.subr.mxu0 %v322
    %705 = vmatpush1.msra.mxu0 %v321
    %706 = vmatprep.subr.mxu0 %v326
    %707 = vmatpush1.msra.mxu0 %v325
    %708 = vmatprep.subr.mxu0 %v330
    %709 = vmatpush1.msra.mxu0 %v329
    %710 = vmatprep.subr.mxu0 %v334
    %711 = vmatpush1.msra.mxu0 %v333
    %712 = vmatprep.subr.mxu0 %v338
    %713 = vmatpush1.msra.mxu0 %v337
    %714 = vmatprep.subr.mxu0 %v342
    %715 = vmatpush1.msra.mxu0 %v341
    %716 = vmatprep.subr.mxu0 %v346
    %717 = vmatpush1.msra.mxu0 %v345
    %718 = vmatprep.subr.mxu0 %v350
    %719 = vmatpush1.msra.mxu0 %v349
    %720 = vmatprep.subr.mxu0 %v354
    %721 = vmatpush1.msra.mxu0 %v353
    %722 = vmatprep.subr.mxu0 %v358
    %723 = vmatpush1.msra.mxu0 %v357
    %724 = vmatprep.subr.mxu0 %v362
    %725 = vmatpush1.msra.mxu0 %v361
    %726 = vmatprep.subr.mxu0 %v366
    %727 = vmatpush1.msra.mxu0 %v365
    %728 = vmatprep.subr.mxu0 %v370
    %729 = vmatpush1.msra.mxu0 %v369
    %730 = vmatprep.subr.mxu0 %v374
    %731 = vmatpush1.msra.mxu0 %v373
    %732 = vmatprep.subr.mxu0 %v378
    %733 = vmatpush1.msra.mxu0 %v377
    %734 = vmatprep.subr.mxu0 %v382
    %735 = vmatpush1.msra.mxu0 %v381
    %736 = vmatprep.subr.mxu0 %v386
    %737 = vmatpush1.msra.mxu0 %v385
    %738 = vmatprep.subr.mxu0 %v390
    %739 = vmatpush1.msra.mxu0 %v389
    %740 = vmatprep.subr.mxu0 %v394
    %741 = vmatpush1.msra.mxu0 %v393
    %742 = vmatprep.subr.mxu0 %v398
    %743 = vmatpush1.msra.mxu0 %v397
    %744 = vmatprep.subr.mxu0 %v402
    %745 = vmatpush1.msra.mxu0 %v401
    %746 = vmatprep.subr.mxu0 %v406
    %747 = vmatpush1.msra.mxu0 %v405
    %748 = vmatprep.subr.mxu0 %v410
    %749 = vmatpush1.msra.mxu0 %v409
    %750 = vmatprep.subr.mxu0 %v414
    %751 = vmatpush1.msra.mxu0 %v413
    %752 = vmatprep.subr.mxu0 %v418
    %753 = vmatpush1.msra.mxu0 %v417
    %754 = vmatprep.subr.mxu0 %v422
    %755 = vmatpush1.msra.mxu0 %v421
    %756 = vmatprep.subr.mxu0 %v426
    %757 = vmatpush1.msra.mxu0 %v425
    %758 = vmatprep.subr.mxu0 %v430
    %759 = vmatpush1.msra.mxu0 %v429
    %760 = vmatprep.subr.mxu0 %v434
    %761 = vmatpush1.msra.mxu0 %v433
    %762 = vmatprep.mubr.f32.mxu0 0.0
    %763 = vmatmul.mubr.f32.gmra.mrb[0].mxu0 %v626
    %v764 = vpop.f32.mrb[0].mxu0
    %v765 = vadd.f32 %v448, %v764
    %v766 = vpop.f32.mrb[0].mxu0
    %v767 = vadd.f32 %v452, %v766
    %768 = vdwg.mxu0
    %v769 = vxor.u32 %v694, 2147483648
    %v770 = vmul.f32 %v769, 1.442695
    %v771 = vpow.pop %v770
    %v772 = vadd.f32 %v771, 1.0
    %v773 = vrcp.pop %v772
    %v774 = vmul.f32 1.0, %v773
    %v775 = vxor.u32 %v696, 2147483648
    %v776 = vmul.f32 %v775, 1.442695
    %v777 = vpow.pop %v776
    %v778 = vadd.f32 %v777, 1.0
    %v779 = vrcp.pop %v778
    %v780 = vmul.f32 1.0, %v779
    %v781 = vtanh.pop %v765
    %v782 = vxor.u32 %v767, 2147483648
    %v783 = vmul.f32 %v782, 1.442695
    %v784 = vpow.pop %v783
    %v785 = vadd.f32 %v784, 1.0
    %v786 = vrcp.pop %v785
    %v787 = vmul.f32 1.0, %v786
    %v788 = vmul.f32 %v780, 0.0
    %v789 = vmul.f32 %v774, %v781
    %v790 = vadd.f32 %v788, %v789
    %v791 = vtanh.pop %v790
    %v792 = vmul.f32 %v787, %v791
    %793 = vmatprep.subr.mxu0 %v244
    %794 = vmatpush1.msra.mxu0 %v243
    %795 = vmatprep.subr.mxu0 %v248
    %796 = vmatpush1.msra.mxu0 %v247
    %797 = vmatprep.subr.mxu0 %v252
    %798 = vmatpush1.msra.mxu0 %v251
    %799 = vmatprep.subr.mxu0 %v256
    %800 = vmatpush1.msra.mxu0 %v255
    %801 = vmatprep.subr.mxu0 %v260
    %802 = vmatpush1.msra.mxu0 %v259
    %803 = vmatprep.subr.mxu0 %v264
    %804 = vmatpush1.msra.mxu0 %v263
    %805 = vmatprep.subr.mxu0 %v268
    %806 = vmatpush1.msra.mxu0 %v267
    %807 = vmatprep.subr.mxu0 %v272
    %808 = vmatpush1.msra.mxu0 %v271
    %809 = vmatprep.subr.mxu0 %v276
    %810 = vmatpush1.msra.mxu0 %v275
    %811 = vmatprep.subr.mxu0 %v280
    %812 = vmatpush1.msra.mxu0 %v279
    %813 = vmatprep.subr.mxu0 %v284
    %814 = vmatpush1.msra.mxu0 %v283
    %815 = vmatprep.subr.mxu0 %v288
    %816 = vmatpush1.msra.mxu0 %v287
    %817 = vmatprep.subr.mxu0 %v292
    %818 = vmatpush1.msra.mxu0 %v291
    %819 = vmatprep.subr.mxu0 %v296
    %820 = vmatpush1.msra.mxu0 %v295
    %821 = vmatprep.subr.mxu0 %v300
    %822 = vmatpush1.msra.mxu0 %v299
    %823 = vmatprep.subr.mxu0 %v304
    %824 = vmatpush1.msra.mxu0 %v303
    %825 = vmatprep.subr.mxu0 0.0
    %826 = vmatpush1.msra.mxu0 0.0
    %827 = vmatprep.subr.mxu0 0.0
    %828 = vmatpush1.msra.mxu0 0.0
    %829 = vmatprep.subr.mxu0 0.0
    %830 = vmatpush1.msra.mxu0 0.0
    %831 = vmatprep.subr.mxu0 0.0
    %832 = vmatpush1.msra.mxu0 0.0
    %833 = vmatprep.subr.mxu0 0.0
    %834 = vmatpush1.msra.mxu0 0.0
    %835 = vmatprep.subr.mxu0 0.0
    %836 = vmatpush1.msra.mxu0 0.0
    %837 = vmatprep.subr.mxu0 0.0
    %838 = vmatpush1.msra.mxu0 0.0
    %839 = vmatprep.subr.mxu0 0.0
    %840 = vmatpush1.msra.mxu0 0.0
    %841 = vmatprep.subr.mxu0 0.0
    %842 = vmatpush1.msra.mxu0 0.0
    %843 = vmatprep.subr.mxu0 0.0
    %844 = vmatpush1.msra.mxu0 0.0
    %845 = vmatprep.subr.mxu0 0.0
    %846 = vmatpush1.msra.mxu0 0.0
    %847 = vmatprep.subr.mxu0 0.0
    %848 = vmatpush1.msra.mxu0 0.0
    %849 = vmatprep.subr.mxu0 0.0
    %850 = vmatpush1.msra.mxu0 0.0
    %851 = vmatprep.subr.mxu0 0.0
    %852 = vmatpush1.msra.mxu0 0.0
    %853 = vmatprep.subr.mxu0 0.0
    %854 = vmatpush1.msra.mxu0 0.0
    %855 = vmatprep.subr.mxu0 0.0
    %856 = vmatpush1.msra.mxu0 0.0
    %857 = vmatprep.mubr.f32.mxu0 0.0
    %858 = vmatmul.mubr.f32.gmra.mrb[0].mxu0 %v626
    %v859 = vpop.f32.mrb[0].mxu0
    %v860 = vadd.f32 0.0, %v859
    %v861 = vpop.f32.mrb[0].mxu0
    %v862 = vadd.f32 0.0, %v861
    %863 = vdwg.mxu0
    %864 = vmatprep.subr.mxu0 %v246
    %865 = vmatpush1.msra.mxu0 %v245
    %866 = vmatprep.subr.mxu0 %v250
    %867 = vmatpush1.msra.mxu0 %v249
    %868 = vmatprep.subr.mxu0 %v254
    %869 = vmatpush1.msra.mxu0 %v253
    %870 = vmatprep.subr.mxu0 %v258
    %871 = vmatpush1.msra.mxu0 %v257
    %872 = vmatprep.subr.mxu0 %v262
    %873 = vmatpush1.msra.mxu0 %v261
    %874 = vmatprep.subr.mxu0 %v266
    %875 = vmatpush1.msra.mxu0 %v265
    %876 = vmatprep.subr.mxu0 %v270
    %877 = vmatpush1.msra.mxu0 %v269
    %878 = vmatprep.subr.mxu0 %v274
    %879 = vmatpush1.msra.mxu0 %v273
    %880 = vmatprep.subr.mxu0 %v278
    %881 = vmatpush1.msra.mxu0 %v277
    %882 = vmatprep.subr.mxu0 %v282
    %883 = vmatpush1.msra.mxu0 %v281
    %884 = vmatprep.subr.mxu0 %v286
    %885 = vmatpush1.msra.mxu0 %v285
    %886 = vmatprep.subr.mxu0 %v290
    %887 = vmatpush1.msra.mxu0 %v289
    %888 = vmatprep.subr.mxu0 %v294
    %889 = vmatpush1.msra.mxu0 %v293
    %890 = vmatprep.subr.mxu0 %v298
    %891 = vmatpush1.msra.mxu0 %v297
    %892 = vmatprep.subr.mxu0 %v302
    %893 = vmatpush1.msra.mxu0 %v301
    %894 = vmatprep.subr.mxu0 %v306
    %895 = vmatpush1.msra.mxu0 %v305
    %896 = vmatprep.subr.mxu0 0.0
    %897 = vmatpush1.msra.mxu0 0.0
    %898 = vmatprep.subr.mxu0 0.0
    %899 = vmatpush1.msra.mxu0 0.0
    %900 = vmatprep.subr.mxu0 0.0
    %901 = vmatpush1.msra.mxu0 0.0
    %902 = vmatprep.subr.mxu0 0.0
    %903 = vmatpush1.msra.mxu0 0.0
    %904 = vmatprep.subr.mxu0 0.0
    %905 = vmatpush1.msra.mxu0 0.0
    %906 = vmatprep.subr.mxu0 0.0
    %907 = vmatpush1.msra.mxu0 0.0
    %908 = vmatprep.subr.mxu0 0.0
    %909 = vmatpush1.msra.mxu0 0.0
    %910 = vmatprep.subr.mxu0 0.0
    %911 = vmatpush1.msra.mxu0 0.0
    %912 = vmatprep.subr.mxu0 0.0
    %913 = vmatpush1.msra.mxu0 0.0
    %914 = vmatprep.subr.mxu0 0.0
    %915 = vmatpush1.msra.mxu0 0.0
    %916 = vmatprep.subr.mxu0 0.0
    %917 = vmatpush1.msra.mxu0 0.0
    %918 = vmatprep.subr.mxu0 0.0
    %919 = vmatpush1.msra.mxu0 0.0
    %920 = vmatprep.subr.mxu0 0.0
    %921 = vmatpush1.msra.mxu0 0.0
    %922 = vmatprep.subr.mxu0 0.0
    %923 = vmatpush1.msra.mxu0 0.0
    %924 = vmatprep.subr.mxu0 0.0
    %925 = vmatpush1.msra.mxu0 0.0
    %926 = vmatprep.subr.mxu0 0.0
    %927 = vmatpush1.msra.mxu0 0.0
    %928 = vmatprep.mubr.f32.mxu0 0.0
    %929 = vmatmul.mubr.f32.gmra.mrb[0].mxu0 %v626
    %v930 = vpop.f32.mrb[0].mxu0
    %v931 = vadd.f32 0.0, %v930
    %v932 = vpop.f32.mrb[0].mxu0
    %v933 = vadd.f32 0.0, %v932
    %934 = vdwg.mxu0
    %v939 = vrot.slane %v860, 6
    %v940 = vrot.slane %v862, 6
    %v941 = vrot.slane %v931, 6
    %v942 = vrot.slane %v933, 6
    %v947 = vadd.f32 %v156, %v939
    %v948 = vadd.f32 %v158, %v940
    %v949 = vadd.f32 %v233, %v941
    %v950 = vadd.f32 %v235, %v942
    %v951 = vxor.u32 %v947, 2147483648
    %v952 = vmul.f32 %v951, 1.442695
    %v953 = vpow.pop %v952
    %v954 = vadd.f32 %v953, 1.0
    %v955 = vrcp.pop %v954
    %v956 = vmul.f32 1.0, %v955
    %v957 = vxor.u32 %v948, 2147483648
    %v958 = vmul.f32 %v957, 1.442695
    %v959 = vpow.pop %v958
    %v960 = vadd.f32 %v959, 1.0
    %v961 = vrcp.pop %v960
    %v962 = vmul.f32 1.0, %v961
    %v963 = vtanh.pop %v949
    %v964 = vxor.u32 %v950, 2147483648
    %v965 = vmul.f32 %v964, 1.442695
    %v966 = vpow.pop %v965
    %v967 = vadd.f32 %v966, 1.0
    %v968 = vrcp.pop %v967
    %v969 = vmul.f32 1.0, %v968
    %v971 = vrot.slane %v624, 6
    %v973 = vmul.f32 %v962, %v971
    %v974 = vmul.f32 %v956, %v963
    %v975 = vadd.f32 %v973, %v974
    %v976 = vtanh.pop %v975
    %v977 = vmul.f32 %v969, %v976
    %v979 = vrot.slane %v792, 6
    %v981 = vrot.slane %v977, 2
    %v982 = vrot.slane %v979, 2
    %985 = vmatprep.subr.mxu0 %v308
    %986 = vmatpush1.msra.mxu0 %v307
    %987 = vmatprep.subr.mxu0 %v312
    %988 = vmatpush1.msra.mxu0 %v311
    %989 = vmatprep.subr.mxu0 %v316
    %990 = vmatpush1.msra.mxu0 %v315
    %991 = vmatprep.subr.mxu0 %v320
    %992 = vmatpush1.msra.mxu0 %v319
    %993 = vmatprep.subr.mxu0 %v324
    %994 = vmatpush1.msra.mxu0 %v323
    %995 = vmatprep.subr.mxu0 %v328
    %996 = vmatpush1.msra.mxu0 %v327
    %997 = vmatprep.subr.mxu0 %v332
    %998 = vmatpush1.msra.mxu0 %v331
    %999 = vmatprep.subr.mxu0 %v336
    %1000 = vmatpush1.msra.mxu0 %v335
    %1001 = vmatprep.subr.mxu0 %v340
    %1002 = vmatpush1.msra.mxu0 %v339
    %1003 = vmatprep.subr.mxu0 %v344
    %1004 = vmatpush1.msra.mxu0 %v343
    %1005 = vmatprep.subr.mxu0 %v348
    %1006 = vmatpush1.msra.mxu0 %v347
    %1007 = vmatprep.subr.mxu0 %v352
    %1008 = vmatpush1.msra.mxu0 %v351
    %1009 = vmatprep.subr.mxu0 %v356
    %1010 = vmatpush1.msra.mxu0 %v355
    %1011 = vmatprep.subr.mxu0 %v360
    %1012 = vmatpush1.msra.mxu0 %v359
    %1013 = vmatprep.subr.mxu0 %v364
    %1014 = vmatpush1.msra.mxu0 %v363
    %1015 = vmatprep.subr.mxu0 %v368
    %1016 = vmatpush1.msra.mxu0 %v367
    %1017 = vmatprep.subr.mxu0 %v372
    %1018 = vmatpush1.msra.mxu0 %v371
    %1019 = vmatprep.subr.mxu0 %v376
    %1020 = vmatpush1.msra.mxu0 %v375
    %1021 = vmatprep.subr.mxu0 %v380
    %1022 = vmatpush1.msra.mxu0 %v379
    %1023 = vmatprep.subr.mxu0 %v384
    %1024 = vmatpush1.msra.mxu0 %v383
    %1025 = vmatprep.subr.mxu0 %v388
    %1026 = vmatpush1.msra.mxu0 %v387
    %1027 = vmatprep.subr.mxu0 %v392
    %1028 = vmatpush1.msra.mxu0 %v391
    %1029 = vmatprep.subr.mxu0 %v396
    %1030 = vmatpush1.msra.mxu0 %v395
    %1031 = vmatprep.subr.mxu0 %v400
    %1032 = vmatpush1.msra.mxu0 %v399
    %1033 = vmatprep.subr.mxu0 %v404
    %1034 = vmatpush1.msra.mxu0 %v403
    %1035 = vmatprep.subr.mxu0 %v408
    %1036 = vmatpush1.msra.mxu0 %v407
    %1037 = vmatprep.subr.mxu0 %v412
    %1038 = vmatpush1.msra.mxu0 %v411
    %1039 = vmatprep.subr.mxu0 %v416
    %1040 = vmatpush1.msra.mxu0 %v415
    %1041 = vmatprep.subr.mxu0 %v420
    %1042 = vmatpush1.msra.mxu0 %v419
    %1043 = vmatprep.subr.mxu0 %v424
    %1044 = vmatpush1.msra.mxu0 %v423
    %1045 = vmatprep.subr.mxu0 %v428
    %1046 = vmatpush1.msra.mxu0 %v427
    %1047 = vmatprep.subr.mxu0 %v432
    %1048 = vmatpush1.msra.mxu0 %v431
    %1049 = vmatprep.mubr.f32.mxu0 %v982
    %1050 = vmatmul.mubr.f32.gmra.mrb[0].mxu0 %v981
    %v1051 = vpop.f32.mrb[0].mxu0
    %v1052 = vadd.f32 %v440, %v1051
    %v1053 = vpop.f32.mrb[0].mxu0
    %v1054 = vadd.f32 %v444, %v1053
    %1055 = vdwg.mxu0
    %1056 = vmatprep.subr.mxu0 %v310
    %1057 = vmatpush1.msra.mxu0 %v309
    %1058 = vmatprep.subr.mxu0 %v314
    %1059 = vmatpush1.msra.mxu0 %v313
    %1060 = vmatprep.subr.mxu0 %v318
    %1061 = vmatpush1.msra.mxu0 %v317
    %1062 = vmatprep.subr.mxu0 %v322
    %1063 = vmatpush1.msra.mxu0 %v321
    %1064 = vmatprep.subr.mxu0 %v326
    %1065 = vmatpush1.msra.mxu0 %v325
    %1066 = vmatprep.subr.mxu0 %v330
    %1067 = vmatpush1.msra.mxu0 %v329
    %1068 = vmatprep.subr.mxu0 %v334
    %1069 = vmatpush1.msra.mxu0 %v333
    %1070 = vmatprep.subr.mxu0 %v338
    %1071 = vmatpush1.msra.mxu0 %v337
    %1072 = vmatprep.subr.mxu0 %v342
    %1073 = vmatpush1.msra.mxu0 %v341
    %1074 = vmatprep.subr.mxu0 %v346
    %1075 = vmatpush1.msra.mxu0 %v345
    %1076 = vmatprep.subr.mxu0 %v350
    %1077 = vmatpush1.msra.mxu0 %v349
    %1078 = vmatprep.subr.mxu0 %v354
    %1079 = vmatpush1.msra.mxu0 %v353
    %1080 = vmatprep.subr.mxu0 %v358
    %1081 = vmatpush1.msra.mxu0 %v357
    %1082 = vmatprep.subr.mxu0 %v362
    %1083 = vmatpush1.msra.mxu0 %v361
    %1084 = vmatprep.subr.mxu0 %v366
    %1085 = vmatpush1.msra.mxu0 %v365
    %1086 = vmatprep.subr.mxu0 %v370
    %1087 = vmatpush1.msra.mxu0 %v369
    %1088 = vmatprep.subr.mxu0 %v374
    %1089 = vmatpush1.msra.mxu0 %v373
    %1090 = vmatprep.subr.mxu0 %v378
    %1091 = vmatpush1.msra.mxu0 %v377
    %1092 = vmatprep.subr.mxu0 %v382
    %1093 = vmatpush1.msra.mxu0 %v381
    %1094 = vmatprep.subr.mxu0 %v386
    %1095 = vmatpush1.msra.mxu0 %v385
    %1096 = vmatprep.subr.mxu0 %v390
    %1097 = vmatpush1.msra.mxu0 %v389
    %1098 = vmatprep.subr.mxu0 %v394
    %1099 = vmatpush1.msra.mxu0 %v393
    %1100 = vmatprep.subr.mxu0 %v398
    %1101 = vmatpush1.msra.mxu0 %v397
    %1102 = vmatprep.subr.mxu0 %v402
    %1103 = vmatpush1.msra.mxu0 %v401
    %1104 = vmatprep.subr.mxu0 %v406
    %1105 = vmatpush1.msra.mxu0 %v405
    %1106 = vmatprep.subr.mxu0 %v410
    %1107 = vmatpush1.msra.mxu0 %v409
    %1108 = vmatprep.subr.mxu0 %v414
    %1109 = vmatpush1.msra.mxu0 %v413
    %1110 = vmatprep.subr.mxu0 %v418
    %1111 = vmatpush1.msra.mxu0 %v417
    %1112 = vmatprep.subr.mxu0 %v422
    %1113 = vmatpush1.msra.mxu0 %v421
    %1114 = vmatprep.subr.mxu0 %v426
    %1115 = vmatpush1.msra.mxu0 %v425
    %1116 = vmatprep.subr.mxu0 %v430
    %1117 = vmatpush1.msra.mxu0 %v429
    %1118 = vmatprep.subr.mxu0 %v434
    %1119 = vmatpush1.msra.mxu0 %v433
    %1120 = vmatprep.mubr.f32.mxu0 %v982
    %1121 = vmatmul.mubr.f32.gmra.mrb[0].mxu0 %v981
    %v1122 = vpop.f32.mrb[0].mxu0
    %v1123 = vadd.f32 %v448, %v1122
    %v1124 = vpop.f32.mrb[0].mxu0
    %v1125 = vadd.f32 %v452, %v1124
    %1126 = vdwg.mxu0
    %v1127 = vxor.u32 %v1052, 2147483648
    %v1128 = vmul.f32 %v1127, 1.442695
    %v1129 = vpow.pop %v1128
    %v1130 = vadd.f32 %v1129, 1.0
    %v1131 = vrcp.pop %v1130
    %v1132 = vmul.f32 1.0, %v1131
    %v1133 = vxor.u32 %v1054, 2147483648
    %v1134 = vmul.f32 %v1133, 1.442695
    %v1135 = vpow.pop %v1134
    %v1136 = vadd.f32 %v1135, 1.0
    %v1137 = vrcp.pop %v1136
    %v1138 = vmul.f32 1.0, %v1137
    %v1139 = vtanh.pop %v1123
    %v1140 = vxor.u32 %v1125, 2147483648
    %v1141 = vmul.f32 %v1140, 1.442695
    %v1142 = vpow.pop %v1141
    %v1143 = vadd.f32 %v1142, 1.0
    %v1144 = vrcp.pop %v1143
    %v1145 = vmul.f32 1.0, %v1144
    %v1146 = vmul.f32 %v1138, %v790
    %v1147 = vmul.f32 %v1132, %v1139
    %v1148 = vadd.f32 %v1146, %v1147
    %v1149 = vtanh.pop %v1148
    %v1150 = vmul.f32 %v1145, %v1149
    %1151 = vmatprep.subr.mxu0 %v244
    %1152 = vmatpush1.msra.mxu0 %v243
    %1153 = vmatprep.subr.mxu0 %v248
    %1154 = vmatpush1.msra.mxu0 %v247
    %1155 = vmatprep.subr.mxu0 %v252
    %1156 = vmatpush1.msra.mxu0 %v251
    %1157 = vmatprep.subr.mxu0 %v256
    %1158 = vmatpush1.msra.mxu0 %v255
    %1159 = vmatprep.subr.mxu0 %v260
    %1160 = vmatpush1.msra.mxu0 %v259
    %1161 = vmatprep.subr.mxu0 %v264
    %1162 = vmatpush1.msra.mxu0 %v263
    %1163 = vmatprep.subr.mxu0 %v268
    %1164 = vmatpush1.msra.mxu0 %v267
    %1165 = vmatprep.subr.mxu0 %v272
    %1166 = vmatpush1.msra.mxu0 %v271
    %1167 = vmatprep.subr.mxu0 %v276
    %1168 = vmatpush1.msra.mxu0 %v275
    %1169 = vmatprep.subr.mxu0 %v280
    %1170 = vmatpush1.msra.mxu0 %v279
    %1171 = vmatprep.subr.mxu0 %v284
    %1172 = vmatpush1.msra.mxu0 %v283
    %1173 = vmatprep.subr.mxu0 %v288
    %1174 = vmatpush1.msra.mxu0 %v287
    %1175 = vmatprep.subr.mxu0 %v292
    %1176 = vmatpush1.msra.mxu0 %v291
    %1177 = vmatprep.subr.mxu0 %v296
    %1178 = vmatpush1.msra.mxu0 %v295
    %1179 = vmatprep.subr.mxu0 %v300
    %1180 = vmatpush1.msra.mxu0 %v299
    %1181 = vmatprep.subr.mxu0 %v304
    %1182 = vmatpush1.msra.mxu0 %v303
    %1183 = vmatprep.subr.mxu0 0.0
    %1184 = vmatpush1.msra.mxu0 0.0
    %1185 = vmatprep.subr.mxu0 0.0
    %1186 = vmatpush1.msra.mxu0 0.0
    %1187 = vmatprep.subr.mxu0 0.0
    %1188 = vmatpush1.msra.mxu0 0.0
    %1189 = vmatprep.subr.mxu0 0.0
    %1190 = vmatpush1.msra.mxu0 0.0
    %1191 = vmatprep.subr.mxu0 0.0
    %1192 = vmatpush1.msra.mxu0 0.0
    %1193 = vmatprep.subr.mxu0 0.0
    %1194 = vmatpush1.msra.mxu0 0.0
    %1195 = vmatprep.subr.mxu0 0.0
    %1196 = vmatpush1.msra.mxu0 0.0
    %1197 = vmatprep.subr.mxu0 0.0
    %1198 = vmatpush1.msra.mxu0 0.0
    %1199 = vmatprep.subr.mxu0 0.0
    %1200 = vmatpush1.msra.mxu0 0.0
    %1201 = vmatprep.subr.mxu0 0.0
    %1202 = vmatpush1.msra.mxu0 0.0
    %1203 = vmatprep.subr.mxu0 0.0
    %1204 = vmatpush1.msra.mxu0 0.0
    %1205 = vmatprep.subr.mxu0 0.0
    %1206 = vmatpush1.msra.mxu0 0.0
    %1207 = vmatprep.subr.mxu0 0.0
    %1208 = vmatpush1.msra.mxu0 0.0
    %1209 = vmatprep.subr.mxu0 0.0
    %1210 = vmatpush1.msra.mxu0 0.0
    %1211 = vmatprep.subr.mxu0 0.0
    %1212 = vmatpush1.msra.mxu0 0.0
    %1213 = vmatprep.subr.mxu0 0.0
    %1214 = vmatpush1.msra.mxu0 0.0
    %1215 = vmatprep.mubr.f32.mxu0 0.0
    %1216 = vmatmul.mubr.f32.gmra.mrb[0].mxu0 %v981
    %v1217 = vpop.f32.mrb[0].mxu0
    %v1218 = vadd.f32 0.0, %v1217
    %v1219 = vpop.f32.mrb[0].mxu0
    %v1220 = vadd.f32 0.0, %v1219
    %1221 = vdwg.mxu0
    %1222 = vmatprep.subr.mxu0 %v246
    %1223 = vmatpush1.msra.mxu0 %v245
    %1224 = vmatprep.subr.mxu0 %v250
    %1225 = vmatpush1.msra.mxu0 %v249
    %1226 = vmatprep.subr.mxu0 %v254
    %1227 = vmatpush1.msra.mxu0 %v253
    %1228 = vmatprep.subr.mxu0 %v258
    %1229 = vmatpush1.msra.mxu0 %v257
    %1230 = vmatprep.subr.mxu0 %v262
    %1231 = vmatpush1.msra.mxu0 %v261
    %1232 = vmatprep.subr.mxu0 %v266
    %1233 = vmatpush1.msra.mxu0 %v265
    %1234 = vmatprep.subr.mxu0 %v270
    %1235 = vmatpush1.msra.mxu0 %v269
    %1236 = vmatprep.subr.mxu0 %v274
    %1237 = vmatpush1.msra.mxu0 %v273
    %1238 = vmatprep.subr.mxu0 %v278
    %1239 = vmatpush1.msra.mxu0 %v277
    %1240 = vmatprep.subr.mxu0 %v282
    %1241 = vmatpush1.msra.mxu0 %v281
    %1242 = vmatprep.subr.mxu0 %v286
    %1243 = vmatpush1.msra.mxu0 %v285
    %1244 = vmatprep.subr.mxu0 %v290
    %1245 = vmatpush1.msra.mxu0 %v289
    %1246 = vmatprep.subr.mxu0 %v294
    %1247 = vmatpush1.msra.mxu0 %v293
    %1248 = vmatprep.subr.mxu0 %v298
    %1249 = vmatpush1.msra.mxu0 %v297
    %1250 = vmatprep.subr.mxu0 %v302
    %1251 = vmatpush1.msra.mxu0 %v301
    %1252 = vmatprep.subr.mxu0 %v306
    %1253 = vmatpush1.msra.mxu0 %v305
    %1254 = vmatprep.subr.mxu0 0.0
    %1255 = vmatpush1.msra.mxu0 0.0
    %1256 = vmatprep.subr.mxu0 0.0
    %1257 = vmatpush1.msra.mxu0 0.0
    %1258 = vmatprep.subr.mxu0 0.0
    %1259 = vmatpush1.msra.mxu0 0.0
    %1260 = vmatprep.subr.mxu0 0.0
    %1261 = vmatpush1.msra.mxu0 0.0
    %1262 = vmatprep.subr.mxu0 0.0
    %1263 = vmatpush1.msra.mxu0 0.0
    %1264 = vmatprep.subr.mxu0 0.0
    %1265 = vmatpush1.msra.mxu0 0.0
    %1266 = vmatprep.subr.mxu0 0.0
    %1267 = vmatpush1.msra.mxu0 0.0
    %1268 = vmatprep.subr.mxu0 0.0
    %1269 = vmatpush1.msra.mxu0 0.0
    %1270 = vmatprep.subr.mxu0 0.0
    %1271 = vmatpush1.msra.mxu0 0.0
    %1272 = vmatprep.subr.mxu0 0.0
    %1273 = vmatpush1.msra.mxu0 0.0
    %1274 = vmatprep.subr.mxu0 0.0
    %1275 = vmatpush1.msra.mxu0 0.0
    %1276 = vmatprep.subr.mxu0 0.0
    %1277 = vmatpush1.msra.mxu0 0.0
    %1278 = vmatprep.subr.mxu0 0.0
    %1279 = vmatpush1.msra.mxu0 0.0
    %1280 = vmatprep.subr.mxu0 0.0
    %1281 = vmatpush1.msra.mxu0 0.0
    %1282 = vmatprep.subr.mxu0 0.0
    %1283 = vmatpush1.msra.mxu0 0.0
    %1284 = vmatprep.subr.mxu0 0.0
    %1285 = vmatpush1.msra.mxu0 0.0
    %1286 = vmatprep.mubr.f32.mxu0 0.0
    %1287 = vmatmul.mubr.f32.gmra.mrb[0].mxu0 %v981
    %v1288 = vpop.f32.mrb[0].mxu0
    %v1289 = vadd.f32 0.0, %v1288
    %v1290 = vpop.f32.mrb[0].mxu0
    %v1291 = vadd.f32 0.0, %v1290
    %1292 = vdwg.mxu0
    %v1297 = vrot.slane %v1218, 4
    %v1298 = vrot.slane %v1220, 4
    %v1299 = vrot.slane %v1289, 4
    %v1300 = vrot.slane %v1291, 4
    %v1305 = vadd.f32 %v156, %v1297
    %v1306 = vadd.f32 %v158, %v1298
    %v1307 = vadd.f32 %v233, %v1299
    %v1308 = vadd.f32 %v235, %v1300
    %v1309 = vxor.u32 %v1305, 2147483648
    %v1310 = vmul.f32 %v1309, 1.442695
    %v1311 = vpow.pop %v1310
    %v1312 = vadd.f32 %v1311, 1.0
    %v1313 = vrcp.pop %v1312
    %v1314 = vmul.f32 1.0, %v1313
    %v1315 = vxor.u32 %v1306, 2147483648
    %v1316 = vmul.f32 %v1315, 1.442695
    %v1317 = vpow.pop %v1316
    %v1318 = vadd.f32 %v1317, 1.0
    %v1319 = vrcp.pop %v1318
    %v1320 = vmul.f32 1.0, %v1319
    %v1321 = vtanh.pop %v1307
    %v1322 = vxor.u32 %v1308, 2147483648
    %v1323 = vmul.f32 %v1322, 1.442695
    %v1324 = vpow.pop %v1323
    %v1325 = vadd.f32 %v1324, 1.0
    %v1326 = vrcp.pop %v1325
    %v1327 = vmul.f32 1.0, %v1326
    %v1329 = vrot.slane %v975, 6
    %v1331 = vmul.f32 %v1320, %v1329
    %v1332 = vmul.f32 %v1314, %v1321
    %v1333 = vadd.f32 %v1331, %v1332
    %v1334 = vtanh.pop %v1333
    %v1335 = vmul.f32 %v1327, %v1334
    %v1337 = vrot.slane %v1150, 4
    %v1339 = vrot.slane %v1335, 4
    %v1340 = vrot.slane %v1337, 4
    %1343 = vmatprep.subr.mxu0 %v308
    %1344 = vmatpush1.msra.mxu0 %v307
    %1345 = vmatprep.subr.mxu0 %v312
    %1346 = vmatpush1.msra.mxu0 %v311
    %1347 = vmatprep.subr.mxu0 %v316
    %1348 = vmatpush1.msra.mxu0 %v315
    %1349 = vmatprep.subr.mxu0 %v320
    %1350 = vmatpush1.msra.mxu0 %v319
    %1351 = vmatprep.subr.mxu0 %v324
    %1352 = vmatpush1.msra.mxu0 %v323
    %1353 = vmatprep.subr.mxu0 %v328
    %1354 = vmatpush1.msra.mxu0 %v327
    %1355 = vmatprep.subr.mxu0 %v332
    %1356 = vmatpush1.msra.mxu0 %v331
    %1357 = vmatprep.subr.mxu0 %v336
    %1358 = vmatpush1.msra.mxu0 %v335
    %1359 = vmatprep.subr.mxu0 %v340
    %1360 = vmatpush1.msra.mxu0 %v339
    %1361 = vmatprep.subr.mxu0 %v344
    %1362 = vmatpush1.msra.mxu0 %v343
    %1363 = vmatprep.subr.mxu0 %v348
    %1364 = vmatpush1.msra.mxu0 %v347
    %1365 = vmatprep.subr.mxu0 %v352
    %1366 = vmatpush1.msra.mxu0 %v351
    %1367 = vmatprep.subr.mxu0 %v356
    %1368 = vmatpush1.msra.mxu0 %v355
    %1369 = vmatprep.subr.mxu0 %v360
    %1370 = vmatpush1.msra.mxu0 %v359
    %1371 = vmatprep.subr.mxu0 %v364
    %1372 = vmatpush1.msra.mxu0 %v363
    %1373 = vmatprep.subr.mxu0 %v368
    %1374 = vmatpush1.msra.mxu0 %v367
    %1375 = vmatprep.subr.mxu0 %v372
    %1376 = vmatpush1.msra.mxu0 %v371
    %1377 = vmatprep.subr.mxu0 %v376
    %1378 = vmatpush1.msra.mxu0 %v375
    %1379 = vmatprep.subr.mxu0 %v380
    %1380 = vmatpush1.msra.mxu0 %v379
    %1381 = vmatprep.subr.mxu0 %v384
    %1382 = vmatpush1.msra.mxu0 %v383
    %1383 = vmatprep.subr.mxu0 %v388
    %1384 = vmatpush1.msra.mxu0 %v387
    %1385 = vmatprep.subr.mxu0 %v392
    %1386 = vmatpush1.msra.mxu0 %v391
    %1387 = vmatprep.subr.mxu0 %v396
    %1388 = vmatpush1.msra.mxu0 %v395
    %1389 = vmatprep.subr.mxu0 %v400
    %1390 = vmatpush1.msra.mxu0 %v399
    %1391 = vmatprep.subr.mxu0 %v404
    %1392 = vmatpush1.msra.mxu0 %v403
    %1393 = vmatprep.subr.mxu0 %v408
    %1394 = vmatpush1.msra.mxu0 %v407
    %1395 = vmatprep.subr.mxu0 %v412
    %1396 = vmatpush1.msra.mxu0 %v411
    %1397 = vmatprep.subr.mxu0 %v416
    %1398 = vmatpush1.msra.mxu0 %v415
    %1399 = vmatprep.subr.mxu0 %v420
    %1400 = vmatpush1.msra.mxu0 %v419
    %1401 = vmatprep.subr.mxu0 %v424
    %1402 = vmatpush1.msra.mxu0 %v423
    %1403 = vmatprep.subr.mxu0 %v428
    %1404 = vmatpush1.msra.mxu0 %v427
    %1405 = vmatprep.subr.mxu0 %v432
    %1406 = vmatpush1.msra.mxu0 %v431
    %1407 = vmatprep.mubr.f32.mxu0 %v1340
    %1408 = vmatmul.mubr.f32.gmra.mrb[0].mxu0 %v1339
    %v1409 = vpop.f32.mrb[0].mxu0
    %v1410 = vadd.f32 %v440, %v1409
    %v1411 = vpop.f32.mrb[0].mxu0
    %v1412 = vadd.f32 %v444, %v1411
    %1413 = vdwg.mxu0
    %1414 = vmatprep.subr.mxu0 %v310
    %1415 = vmatpush1.msra.mxu0 %v309
    %1416 = vmatprep.subr.mxu0 %v314
    %1417 = vmatpush1.msra.mxu0 %v313
    %1418 = vmatprep.subr.mxu0 %v318
    %1419 = vmatpush1.msra.mxu0 %v317
    %1420 = vmatprep.subr.mxu0 %v322
    %1421 = vmatpush1.msra.mxu0 %v321
    %1422 = vmatprep.subr.mxu0 %v326
    %1423 = vmatpush1.msra.mxu0 %v325
    %1424 = vmatprep.subr.mxu0 %v330
    %1425 = vmatpush1.msra.mxu0 %v329
    %1426 = vmatprep.subr.mxu0 %v334
    %1427 = vmatpush1.msra.mxu0 %v333
    %1428 = vmatprep.subr.mxu0 %v338
    %1429 = vmatpush1.msra.mxu0 %v337
    %1430 = vmatprep.subr.mxu0 %v342
    %1431 = vmatpush1.msra.mxu0 %v341
    %1432 = vmatprep.subr.mxu0 %v346
    %1433 = vmatpush1.msra.mxu0 %v345
    %1434 = vmatprep.subr.mxu0 %v350
    %1435 = vmatpush1.msra.mxu0 %v349
    %1436 = vmatprep.subr.mxu0 %v354
    %1437 = vmatpush1.msra.mxu0 %v353
    %1438 = vmatprep.subr.mxu0 %v358
    %1439 = vmatpush1.msra.mxu0 %v357
    %1440 = vmatprep.subr.mxu0 %v362
    %1441 = vmatpush1.msra.mxu0 %v361
    %1442 = vmatprep.subr.mxu0 %v366
    %1443 = vmatpush1.msra.mxu0 %v365
    %1444 = vmatprep.subr.mxu0 %v370
    %1445 = vmatpush1.msra.mxu0 %v369
    %1446 = vmatprep.subr.mxu0 %v374
    %1447 = vmatpush1.msra.mxu0 %v373
    %1448 = vmatprep.subr.mxu0 %v378
    %1449 = vmatpush1.msra.mxu0 %v377
    %1450 = vmatprep.subr.mxu0 %v382
    %1451 = vmatpush1.msra.mxu0 %v381
    %1452 = vmatprep.subr.mxu0 %v386
    %1453 = vmatpush1.msra.mxu0 %v385
    %1454 = vmatprep.subr.mxu0 %v390
    %1455 = vmatpush1.msra.mxu0 %v389
    %1456 = vmatprep.subr.mxu0 %v394
    %1457 = vmatpush1.msra.mxu0 %v393
    %1458 = vmatprep.subr.mxu0 %v398
    %1459 = vmatpush1.msra.mxu0 %v397
    %1460 = vmatprep.subr.mxu0 %v402
    %1461 = vmatpush1.msra.mxu0 %v401
    %1462 = vmatprep.subr.mxu0 %v406
    %1463 = vmatpush1.msra.mxu0 %v405
    %1464 = vmatprep.subr.mxu0 %v410
    %1465 = vmatpush1.msra.mxu0 %v409
    %1466 = vmatprep.subr.mxu0 %v414
    %1467 = vmatpush1.msra.mxu0 %v413
    %1468 = vmatprep.subr.mxu0 %v418
    %1469 = vmatpush1.msra.mxu0 %v417
    %1470 = vmatprep.subr.mxu0 %v422
    %1471 = vmatpush1.msra.mxu0 %v421
    %1472 = vmatprep.subr.mxu0 %v426
    %1473 = vmatpush1.msra.mxu0 %v425
    %1474 = vmatprep.subr.mxu0 %v430
    %1475 = vmatpush1.msra.mxu0 %v429
    %1476 = vmatprep.subr.mxu0 %v434
    %1477 = vmatpush1.msra.mxu0 %v433
    %1478 = vmatprep.mubr.f32.mxu0 %v1340
    %1479 = vmatmul.mubr.f32.gmra.mrb[0].mxu0 %v1339
    %v1480 = vpop.f32.mrb[0].mxu0
    %v1481 = vadd.f32 %v448, %v1480
    %v1482 = vpop.f32.mrb[0].mxu0
    %v1483 = vadd.f32 %v452, %v1482
    %1484 = vdwg.mxu0
    %v1485 = vxor.u32 %v1410, 2147483648
    %v1486 = vmul.f32 %v1485, 1.442695
    %v1487 = vpow.pop %v1486
    %v1488 = vadd.f32 %v1487, 1.0
    %v1489 = vrcp.pop %v1488
    %v1490 = vmul.f32 1.0, %v1489
    %v1491 = vxor.u32 %v1412, 2147483648
    %v1492 = vmul.f32 %v1491, 1.442695
    %v1493 = vpow.pop %v1492
    %v1494 = vadd.f32 %v1493, 1.0
    %v1495 = vrcp.pop %v1494
    %v1496 = vmul.f32 1.0, %v1495
    %v1497 = vtanh.pop %v1481
    %v1498 = vxor.u32 %v1483, 2147483648
    %v1499 = vmul.f32 %v1498, 1.442695
    %v1500 = vpow.pop %v1499
    %v1501 = vadd.f32 %v1500, 1.0
    %v1502 = vrcp.pop %v1501
    %v1503 = vmul.f32 1.0, %v1502
    %v1504 = vmul.f32 %v1496, %v1148
    %v1505 = vmul.f32 %v1490, %v1497
    %v1506 = vadd.f32 %v1504, %v1505
    %v1507 = vtanh.pop %v1506
    %v1508 = vmul.f32 %v1503, %v1507
    %1509 = vmatprep.subr.mxu0 %v244
    %1510 = vmatpush1.msra.mxu0 %v243
    %1511 = vmatprep.subr.mxu0 %v248
    %1512 = vmatpush1.msra.mxu0 %v247
    %1513 = vmatprep.subr.mxu0 %v252
    %1514 = vmatpush1.msra.mxu0 %v251
    %1515 = vmatprep.subr.mxu0 %v256
    %1516 = vmatpush1.msra.mxu0 %v255
    %1517 = vmatprep.subr.mxu0 %v260
    %1518 = vmatpush1.msra.mxu0 %v259
    %1519 = vmatprep.subr.mxu0 %v264
    %1520 = vmatpush1.msra.mxu0 %v263
    %1521 = vmatprep.subr.mxu0 %v268
    %1522 = vmatpush1.msra.mxu0 %v267
    %1523 = vmatprep.subr.mxu0 %v272
    %1524 = vmatpush1.msra.mxu0 %v271
    %1525 = vmatprep.subr.mxu0 %v276
    %1526 = vmatpush1.msra.mxu0 %v275
    %1527 = vmatprep.subr.mxu0 %v280
    %1528 = vmatpush1.msra.mxu0 %v279
    %1529 = vmatprep.subr.mxu0 %v284
    %1530 = vmatpush1.msra.mxu0 %v283
    %1531 = vmatprep.subr.mxu0 %v288
    %1532 = vmatpush1.msra.mxu0 %v287
    %1533 = vmatprep.subr.mxu0 %v292
    %1534 = vmatpush1.msra.mxu0 %v291
    %1535 = vmatprep.subr.mxu0 %v296
    %1536 = vmatpush1.msra.mxu0 %v295
    %1537 = vmatprep.subr.mxu0 %v300
    %1538 = vmatpush1.msra.mxu0 %v299
    %1539 = vmatprep.subr.mxu0 %v304
    %1540 = vmatpush1.msra.mxu0 %v303
    %1541 = vmatprep.subr.mxu0 0.0
    %1542 = vmatpush1.msra.mxu0 0.0
    %1543 = vmatprep.subr.mxu0 0.0
    %1544 = vmatpush1.msra.mxu0 0.0
    %1545 = vmatprep.subr.mxu0 0.0
    %1546 = vmatpush1.msra.mxu0 0.0
    %1547 = vmatprep.subr.mxu0 0.0
    %1548 = vmatpush1.msra.mxu0 0.0
    %1549 = vmatprep.subr.mxu0 0.0
    %1550 = vmatpush1.msra.mxu0 0.0
    %1551 = vmatprep.subr.mxu0 0.0
    %1552 = vmatpush1.msra.mxu0 0.0
    %1553 = vmatprep.subr.mxu0 0.0
    %1554 = vmatpush1.msra.mxu0 0.0
    %1555 = vmatprep.subr.mxu0 0.0
    %1556 = vmatpush1.msra.mxu0 0.0
    %1557 = vmatprep.subr.mxu0 0.0
    %1558 = vmatpush1.msra.mxu0 0.0
    %1559 = vmatprep.subr.mxu0 0.0
    %1560 = vmatpush1.msra.mxu0 0.0
    %1561 = vmatprep.subr.mxu0 0.0
    %1562 = vmatpush1.msra.mxu0 0.0
    %1563 = vmatprep.subr.mxu0 0.0
    %1564 = vmatpush1.msra.mxu0 0.0
    %1565 = vmatprep.subr.mxu0 0.0
    %1566 = vmatpush1.msra.mxu0 0.0
    %1567 = vmatprep.subr.mxu0 0.0
    %1568 = vmatpush1.msra.mxu0 0.0
    %1569 = vmatprep.subr.mxu0 0.0
    %1570 = vmatpush1.msra.mxu0 0.0
    %1571 = vmatprep.subr.mxu0 0.0
    %1572 = vmatpush1.msra.mxu0 0.0
    %1573 = vmatprep.mubr.f32.mxu0 0.0
    %1574 = vmatmul.mubr.f32.gmra.mrb[0].mxu0 %v1339
    %v1575 = vpop.f32.mrb[0].mxu0
    %v1576 = vadd.f32 0.0, %v1575
    %v1577 = vpop.f32.mrb[0].mxu0
    %v1578 = vadd.f32 0.0, %v1577
    %1579 = vdwg.mxu0
    %1580 = vmatprep.subr.mxu0 %v246
    %1581 = vmatpush1.msra.mxu0 %v245
    %1582 = vmatprep.subr.mxu0 %v250
    %1583 = vmatpush1.msra.mxu0 %v249
    %1584 = vmatprep.subr.mxu0 %v254
    %1585 = vmatpush1.msra.mxu0 %v253
    %1586 = vmatprep.subr.mxu0 %v258
    %1587 = vmatpush1.msra.mxu0 %v257
    %1588 = vmatprep.subr.mxu0 %v262
    %1589 = vmatpush1.msra.mxu0 %v261
    %1590 = vmatprep.subr.mxu0 %v266
    %1591 = vmatpush1.msra.mxu0 %v265
    %1592 = vmatprep.subr.mxu0 %v270
    %1593 = vmatpush1.msra.mxu0 %v269
    %1594 = vmatprep.subr.mxu0 %v274
    %1595 = vmatpush1.msra.mxu0 %v273
    %1596 = vmatprep.subr.mxu0 %v278
    %1597 = vmatpush1.msra.mxu0 %v277
    %1598 = vmatprep.subr.mxu0 %v282
    %1599 = vmatpush1.msra.mxu0 %v281
    %1600 = vmatprep.subr.mxu0 %v286
    %1601 = vmatpush1.msra.mxu0 %v285
    %1602 = vmatprep.subr.mxu0 %v290
    %1603 = vmatpush1.msra.mxu0 %v289
    %1604 = vmatprep.subr.mxu0 %v294
    %1605 = vmatpush1.msra.mxu0 %v293
    %1606 = vmatprep.subr.mxu0 %v298
    %1607 = vmatpush1.msra.mxu0 %v297
    %1608 = vmatprep.subr.mxu0 %v302
    %1609 = vmatpush1.msra.mxu0 %v301
    %1610 = vmatprep.subr.mxu0 %v306
    %1611 = vmatpush1.msra.mxu0 %v305
    %1612 = vmatprep.subr.mxu0 0.0
    %1613 = vmatpush1.msra.mxu0 0.0
    %1614 = vmatprep.subr.mxu0 0.0
    %1615 = vmatpush1.msra.mxu0 0.0
    %1616 = vmatprep.subr.mxu0 0.0
    %1617 = vmatpush1.msra.mxu0 0.0
    %1618 = vmatprep.subr.mxu0 0.0
    %1619 = vmatpush1.msra.mxu0 0.0
    %1620 = vmatprep.subr.mxu0 0.0
    %1621 = vmatpush1.msra.mxu0 0.0
    %1622 = vmatprep.subr.mxu0 0.0
    %1623 = vmatpush1.msra.mxu0 0.0
    %1624 = vmatprep.subr.mxu0 0.0
    %1625 = vmatpush1.msra.mxu0 0.0
    %1626 = vmatprep.subr.mxu0 0.0
    %1627 = vmatpush1.msra.mxu0 0.0
    %1628 = vmatprep.subr.mxu0 0.0
    %1629 = vmatpush1.msra.mxu0 0.0
    %1630 = vmatprep.subr.mxu0 0.0
    %1631 = vmatpush1.msra.mxu0 0.0
    %1632 = vmatprep.subr.mxu0 0.0
    %1633 = vmatpush1.msra.mxu0 0.0
    %1634 = vmatprep.subr.mxu0 0.0
    %1635 = vmatpush1.msra.mxu0 0.0
    %1636 = vmatprep.subr.mxu0 0.0
    %1637 = vmatpush1.msra.mxu0 0.0
    %1638 = vmatprep.subr.mxu0 0.0
    %1639 = vmatpush1.msra.mxu0 0.0
    %1640 = vmatprep.subr.mxu0 0.0
    %1641 = vmatpush1.msra.mxu0 0.0
    %1642 = vmatprep.subr.mxu0 0.0
    %1643 = vmatpush1.msra.mxu0 0.0
    %1644 = vmatprep.mubr.f32.mxu0 0.0
    %1645 = vmatmul.mubr.f32.gmra.mrb[0].mxu0 %v1339
    %v1646 = vpop.f32.mrb[0].mxu0
    %v1647 = vadd.f32 0.0, %v1646
    %v1648 = vpop.f32.mrb[0].mxu0
    %v1649 = vadd.f32 0.0, %v1648
    %1650 = vdwg.mxu0
    %v1655 = vrot.slane %v1576, 2
    %v1656 = vrot.slane %v1578, 2
    %v1657 = vrot.slane %v1647, 2
    %v1658 = vrot.slane %v1649, 2
    %v1663 = vadd.f32 %v156, %v1655
    %v1664 = vadd.f32 %v158, %v1656
    %v1665 = vadd.f32 %v233, %v1657
    %v1666 = vadd.f32 %v235, %v1658
    %v1667 = vxor.u32 %v1663, 2147483648
    %v1668 = vmul.f32 %v1667, 1.442695
    %v1669 = vpow.pop %v1668
    %v1670 = vadd.f32 %v1669, 1.0
    %v1671 = vrcp.pop %v1670
    %v1672 = vmul.f32 1.0, %v1671
    %v1673 = vxor.u32 %v1664, 2147483648
    %v1674 = vmul.f32 %v1673, 1.442695
    %v1675 = vpow.pop %v1674
    %v1676 = vadd.f32 %v1675, 1.0
    %v1677 = vrcp.pop %v1676
    %v1678 = vmul.f32 1.0, %v1677
    %v1679 = vtanh.pop %v1665
    %v1680 = vxor.u32 %v1666, 2147483648
    %v1681 = vmul.f32 %v1680, 1.442695
    %v1682 = vpow.pop %v1681
    %v1683 = vadd.f32 %v1682, 1.0
    %v1684 = vrcp.pop %v1683
    %v1685 = vmul.f32 1.0, %v1684
    %v1687 = vrot.slane %v1333, 6
    %v1689 = vmul.f32 %v1678, %v1687
    %v1690 = vmul.f32 %v1672, %v1679
    %v1691 = vadd.f32 %v1689, %v1690
    %v1692 = vtanh.pop %v1691
    %v1693 = vmul.f32 %v1685, %v1692
    %v1695 = vrot.slane %v1508, 2
    %v1697 = vrot.slane %v1693, 6
    %v1698 = vrot.slane %v1695, 6
    %1701 = vmatprep.subr.mxu0 %v308
    %1702 = vmatpush1.msra.mxu0 %v307
    %1703 = vmatprep.subr.mxu0 %v312
    %1704 = vmatpush1.msra.mxu0 %v311
    %1705 = vmatprep.subr.mxu0 %v316
    %1706 = vmatpush1.msra.mxu0 %v315
    %1707 = vmatprep.subr.mxu0 %v320
    %1708 = vmatpush1.msra.mxu0 %v319
    %1709 = vmatprep.subr.mxu0 %v324
    %1710 = vmatpush1.msra.mxu0 %v323
    %1711 = vmatprep.subr.mxu0 %v328
    %1712 = vmatpush1.msra.mxu0 %v327
    %1713 = vmatprep.subr.mxu0 %v332
    %1714 = vmatpush1.msra.mxu0 %v331
    %1715 = vmatprep.subr.mxu0 %v336
    %1716 = vmatpush1.msra.mxu0 %v335
    %1717 = vmatprep.subr.mxu0 %v340
    %1718 = vmatpush1.msra.mxu0 %v339
    %1719 = vmatprep.subr.mxu0 %v344
    %1720 = vmatpush1.msra.mxu0 %v343
    %1721 = vmatprep.subr.mxu0 %v348
    %1722 = vmatpush1.msra.mxu0 %v347
    %1723 = vmatprep.subr.mxu0 %v352
    %1724 = vmatpush1.msra.mxu0 %v351
    %1725 = vmatprep.subr.mxu0 %v356
    %1726 = vmatpush1.msra.mxu0 %v355
    %1727 = vmatprep.subr.mxu0 %v360
    %1728 = vmatpush1.msra.mxu0 %v359
    %1729 = vmatprep.subr.mxu0 %v364
    %1730 = vmatpush1.msra.mxu0 %v363
    %1731 = vmatprep.subr.mxu0 %v368
    %1732 = vmatpush1.msra.mxu0 %v367
    %1733 = vmatprep.subr.mxu0 %v372
    %1734 = vmatpush1.msra.mxu0 %v371
    %1735 = vmatprep.subr.mxu0 %v376
    %1736 = vmatpush1.msra.mxu0 %v375
    %1737 = vmatprep.subr.mxu0 %v380
    %1738 = vmatpush1.msra.mxu0 %v379
    %1739 = vmatprep.subr.mxu0 %v384
    %1740 = vmatpush1.msra.mxu0 %v383
    %1741 = vmatprep.subr.mxu0 %v388
    %1742 = vmatpush1.msra.mxu0 %v387
    %1743 = vmatprep.subr.mxu0 %v392
    %1744 = vmatpush1.msra.mxu0 %v391
    %1745 = vmatprep.subr.mxu0 %v396
    %1746 = vmatpush1.msra.mxu0 %v395
    %1747 = vmatprep.subr.mxu0 %v400
    %1748 = vmatpush1.msra.mxu0 %v399
    %1749 = vmatprep.subr.mxu0 %v404
    %1750 = vmatpush1.msra.mxu0 %v403
    %1751 = vmatprep.subr.mxu0 %v408
    %1752 = vmatpush1.msra.mxu0 %v407
    %1753 = vmatprep.subr.mxu0 %v412
    %1754 = vmatpush1.msra.mxu0 %v411
    %1755 = vmatprep.subr.mxu0 %v416
    %1756 = vmatpush1.msra.mxu0 %v415
    %1757 = vmatprep.subr.mxu0 %v420
    %1758 = vmatpush1.msra.mxu0 %v419
    %1759 = vmatprep.subr.mxu0 %v424
    %1760 = vmatpush1.msra.mxu0 %v423
    %1761 = vmatprep.subr.mxu0 %v428
    %1762 = vmatpush1.msra.mxu0 %v427
    %1763 = vmatprep.subr.mxu0 %v432
    %1764 = vmatpush1.msra.mxu0 %v431
    %1765 = vmatprep.mubr.f32.mxu0 %v1698
    %1766 = vmatmul.mubr.f32.gmra.mrb[0].mxu0 %v1697
    %v1767 = vpop.f32.mrb[0].mxu0
    %v1768 = vadd.f32 %v440, %v1767
    %v1769 = vpop.f32.mrb[0].mxu0
    %v1770 = vadd.f32 %v444, %v1769
    %1771 = vdwg.mxu0
    %1772 = vmatprep.subr.mxu0 %v310
    %1773 = vmatpush1.msra.mxu0 %v309
    %1774 = vmatprep.subr.mxu0 %v314
    %1775 = vmatpush1.msra.mxu0 %v313
    %1776 = vmatprep.subr.mxu0 %v318
    %1777 = vmatpush1.msra.mxu0 %v317
    %1778 = vmatprep.subr.mxu0 %v322
    %1779 = vmatpush1.msra.mxu0 %v321
    %1780 = vmatprep.subr.mxu0 %v326
    %1781 = vmatpush1.msra.mxu0 %v325
    %1782 = vmatprep.subr.mxu0 %v330
    %1783 = vmatpush1.msra.mxu0 %v329
    %1784 = vmatprep.subr.mxu0 %v334
    %1785 = vmatpush1.msra.mxu0 %v333
    %1786 = vmatprep.subr.mxu0 %v338
    %1787 = vmatpush1.msra.mxu0 %v337
    %1788 = vmatprep.subr.mxu0 %v342
    %1789 = vmatpush1.msra.mxu0 %v341
    %1790 = vmatprep.subr.mxu0 %v346
    %1791 = vmatpush1.msra.mxu0 %v345
    %1792 = vmatprep.subr.mxu0 %v350
    %1793 = vmatpush1.msra.mxu0 %v349
    %1794 = vmatprep.subr.mxu0 %v354
    %1795 = vmatpush1.msra.mxu0 %v353
    %1796 = vmatprep.subr.mxu0 %v358
    %1797 = vmatpush1.msra.mxu0 %v357
    %1798 = vmatprep.subr.mxu0 %v362
    %1799 = vmatpush1.msra.mxu0 %v361
    %1800 = vmatprep.subr.mxu0 %v366
    %1801 = vmatpush1.msra.mxu0 %v365
    %1802 = vmatprep.subr.mxu0 %v370
    %1803 = vmatpush1.msra.mxu0 %v369
    %1804 = vmatprep.subr.mxu0 %v374
    %1805 = vmatpush1.msra.mxu0 %v373
    %1806 = vmatprep.subr.mxu0 %v378
    %1807 = vmatpush1.msra.mxu0 %v377
    %1808 = vmatprep.subr.mxu0 %v382
    %1809 = vmatpush1.msra.mxu0 %v381
    %1810 = vmatprep.subr.mxu0 %v386
    %1811 = vmatpush1.msra.mxu0 %v385
    %1812 = vmatprep.subr.mxu0 %v390
    %1813 = vmatpush1.msra.mxu0 %v389
    %1814 = vmatprep.subr.mxu0 %v394
    %1815 = vmatpush1.msra.mxu0 %v393
    %1816 = vmatprep.subr.mxu0 %v398
    %1817 = vmatpush1.msra.mxu0 %v397
    %1818 = vmatprep.subr.mxu0 %v402
    %1819 = vmatpush1.msra.mxu0 %v401
    %1820 = vmatprep.subr.mxu0 %v406
    %1821 = vmatpush1.msra.mxu0 %v405
    %1822 = vmatprep.subr.mxu0 %v410
    %1823 = vmatpush1.msra.mxu0 %v409
    %1824 = vmatprep.subr.mxu0 %v414
    %1825 = vmatpush1.msra.mxu0 %v413
    %1826 = vmatprep.subr.mxu0 %v418
    %1827 = vmatpush1.msra.mxu0 %v417
    %1828 = vmatprep.subr.mxu0 %v422
    %1829 = vmatpush1.msra.mxu0 %v421
    %1830 = vmatprep.subr.mxu0 %v426
    %1831 = vmatpush1.msra.mxu0 %v425
    %1832 = vmatprep.subr.mxu0 %v430
    %1833 = vmatpush1.msra.mxu0 %v429
    %1834 = vmatprep.subr.mxu0 %v434
    %1835 = vmatpush1.msra.mxu0 %v433
    %1836 = vmatprep.mubr.f32.mxu0 %v1698
    %1837 = vmatmul.mubr.f32.gmra.mrb[0].mxu0 %v1697
    %v1838 = vpop.f32.mrb[0].mxu0
    %v1839 = vadd.f32 %v448, %v1838
    %v1840 = vpop.f32.mrb[0].mxu0
    %v1841 = vadd.f32 %v452, %v1840
    %1842 = vdwg.mxu0
    %v1843 = vxor.u32 %v1768, 2147483648
    %v1844 = vmul.f32 %v1843, 1.442695
    %v1845 = vpow.pop %v1844
    %v1846 = vadd.f32 %v1845, 1.0
    %v1847 = vrcp.pop %v1846
    %v1848 = vmul.f32 1.0, %v1847
    %v1849 = vxor.u32 %v1770, 2147483648
    %v1850 = vmul.f32 %v1849, 1.442695
    %v1851 = vpow.pop %v1850
    %v1852 = vadd.f32 %v1851, 1.0
    %v1853 = vrcp.pop %v1852
    %v1854 = vmul.f32 1.0, %v1853
    %v1855 = vtanh.pop %v1839
    %v1856 = vxor.u32 %v1841, 2147483648
    %v1857 = vmul.f32 %v1856, 1.442695
    %v1858 = vpow.pop %v1857
    %v1859 = vadd.f32 %v1858, 1.0
    %v1860 = vrcp.pop %v1859
    %v1861 = vmul.f32 1.0, %v1860
    %v1862 = vmul.f32 %v1854, %v1506
    %v1863 = vmul.f32 %v1848, %v1855
    %v1864 = vadd.f32 %v1862, %v1863
    %v1865 = vtanh.pop %v1864
    %v1866 = vmul.f32 %v1861, %v1865
    %1867 = vmatprep.subr.mxu0 %v244
    %1868 = vmatpush1.msra.mxu0 %v243
    %1869 = vmatprep.subr.mxu0 %v248
    %1870 = vmatpush1.msra.mxu0 %v247
    %1871 = vmatprep.subr.mxu0 %v252
    %1872 = vmatpush1.msra.mxu0 %v251
    %1873 = vmatprep.subr.mxu0 %v256
    %1874 = vmatpush1.msra.mxu0 %v255
    %1875 = vmatprep.subr.mxu0 %v260
    %1876 = vmatpush1.msra.mxu0 %v259
    %1877 = vmatprep.subr.mxu0 %v264
    %1878 = vmatpush1.msra.mxu0 %v263
    %1879 = vmatprep.subr.mxu0 %v268
    %1880 = vmatpush1.msra.mxu0 %v267
    %1881 = vmatprep.subr.mxu0 %v272
    %1882 = vmatpush1.msra.mxu0 %v271
    %1883 = vmatprep.subr.mxu0 %v276
    %1884 = vmatpush1.msra.mxu0 %v275
    %1885 = vmatprep.subr.mxu0 %v280
    %1886 = vmatpush1.msra.mxu0 %v279
    %1887 = vmatprep.subr.mxu0 %v284
    %1888 = vmatpush1.msra.mxu0 %v283
    %1889 = vmatprep.subr.mxu0 %v288
    %1890 = vmatpush1.msra.mxu0 %v287
    %1891 = vmatprep.subr.mxu0 %v292
    %1892 = vmatpush1.msra.mxu0 %v291
    %1893 = vmatprep.subr.mxu0 %v296
    %1894 = vmatpush1.msra.mxu0 %v295
    %1895 = vmatprep.subr.mxu0 %v300
    %1896 = vmatpush1.msra.mxu0 %v299
    %1897 = vmatprep.subr.mxu0 %v304
    %1898 = vmatpush1.msra.mxu0 %v303
    %1899 = vmatprep.subr.mxu0 0.0
    %1900 = vmatpush1.msra.mxu0 0.0
    %1901 = vmatprep.subr.mxu0 0.0
    %1902 = vmatpush1.msra.mxu0 0.0
    %1903 = vmatprep.subr.mxu0 0.0
    %1904 = vmatpush1.msra.mxu0 0.0
    %1905 = vmatprep.subr.mxu0 0.0
    %1906 = vmatpush1.msra.mxu0 0.0
    %1907 = vmatprep.subr.mxu0 0.0
    %1908 = vmatpush1.msra.mxu0 0.0
    %1909 = vmatprep.subr.mxu0 0.0
    %1910 = vmatpush1.msra.mxu0 0.0
    %1911 = vmatprep.subr.mxu0 0.0
    %1912 = vmatpush1.msra.mxu0 0.0
    %1913 = vmatprep.subr.mxu0 0.0
    %1914 = vmatpush1.msra.mxu0 0.0
    %1915 = vmatprep.subr.mxu0 0.0
    %1916 = vmatpush1.msra.mxu0 0.0
    %1917 = vmatprep.subr.mxu0 0.0
    %1918 = vmatpush1.msra.mxu0 0.0
    %1919 = vmatprep.subr.mxu0 0.0
    %1920 = vmatpush1.msra.mxu0 0.0
    %1921 = vmatprep.subr.mxu0 0.0
    %1922 = vmatpush1.msra.mxu0 0.0
    %1923 = vmatprep.subr.mxu0 0.0
    %1924 = vmatpush1.msra.mxu0 0.0
    %1925 = vmatprep.subr.mxu0 0.0
    %1926 = vmatpush1.msra.mxu0 0.0
    %1927 = vmatprep.subr.mxu0 0.0
    %1928 = vmatpush1.msra.mxu0 0.0
    %1929 = vmatprep.subr.mxu0 0.0
    %1930 = vmatpush1.msra.mxu0 0.0
    %1931 = vmatprep.mubr.f32.mxu0 0.0
    %1932 = vmatmul.mubr.f32.gmra.mrb[0].mxu0 %v1697
    %v1933 = vpop.f32.mrb[0].mxu0
    %v1934 = vadd.f32 0.0, %v1933
    %v1935 = vpop.f32.mrb[0].mxu0
    %v1936 = vadd.f32 0.0, %v1935
    %1937 = vdwg.mxu0
    %1938 = vmatprep.subr.mxu0 %v246
    %1939 = vmatpush1.msra.mxu0 %v245
    %1940 = vmatprep.subr.mxu0 %v250
    %1941 = vmatpush1.msra.mxu0 %v249
    %1942 = vmatprep.subr.mxu0 %v254
    %1943 = vmatpush1.msra.mxu0 %v253
    %1944 = vmatprep.subr.mxu0 %v258
    %1945 = vmatpush1.msra.mxu0 %v257
    %1946 = vmatprep.subr.mxu0 %v262
    %1947 = vmatpush1.msra.mxu0 %v261
    %1948 = vmatprep.subr.mxu0 %v266
    %1949 = vmatpush1.msra.mxu0 %v265
    %1950 = vmatprep.subr.mxu0 %v270
    %1951 = vmatpush1.msra.mxu0 %v269
    %1952 = vmatprep.subr.mxu0 %v274
    %1953 = vmatpush1.msra.mxu0 %v273
    %1954 = vmatprep.subr.mxu0 %v278
    %1955 = vmatpush1.msra.mxu0 %v277
    %1956 = vmatprep.subr.mxu0 %v282
    %1957 = vmatpush1.msra.mxu0 %v281
    %1958 = vmatprep.subr.mxu0 %v286
    %1959 = vmatpush1.msra.mxu0 %v285
    %1960 = vmatprep.subr.mxu0 %v290
    %1961 = vmatpush1.msra.mxu0 %v289
    %1962 = vmatprep.subr.mxu0 %v294
    %1963 = vmatpush1.msra.mxu0 %v293
    %1964 = vmatprep.subr.mxu0 %v298
    %1965 = vmatpush1.msra.mxu0 %v297
    %1966 = vmatprep.subr.mxu0 %v302
    %1967 = vmatpush1.msra.mxu0 %v301
    %1968 = vmatprep.subr.mxu0 %v306
    %1969 = vmatpush1.msra.mxu0 %v305
    %1970 = vmatprep.subr.mxu0 0.0
    %1971 = vmatpush1.msra.mxu0 0.0
    %1972 = vmatprep.subr.mxu0 0.0
    %1973 = vmatpush1.msra.mxu0 0.0
    %1974 = vmatprep.subr.mxu0 0.0
    %1975 = vmatpush1.msra.mxu0 0.0
    %1976 = vmatprep.subr.mxu0 0.0
    %1977 = vmatpush1.msra.mxu0 0.0
    %1978 = vmatprep.subr.mxu0 0.0
    %1979 = vmatpush1.msra.mxu0 0.0
    %1980 = vmatprep.subr.mxu0 0.0
    %1981 = vmatpush1.msra.mxu0 0.0
    %1982 = vmatprep.subr.mxu0 0.0
    %1983 = vmatpush1.msra.mxu0 0.0
    %1984 = vmatprep.subr.mxu0 0.0
    %1985 = vmatpush1.msra.mxu0 0.0
    %1986 = vmatprep.subr.mxu0 0.0
    %1987 = vmatpush1.msra.mxu0 0.0
    %1988 = vmatprep.subr.mxu0 0.0
    %1989 = vmatpush1.msra.mxu0 0.0
    %1990 = vmatprep.subr.mxu0 0.0
    %1991 = vmatpush1.msra.mxu0 0.0
    %1992 = vmatprep.subr.mxu0 0.0
    %1993 = vmatpush1.msra.mxu0 0.0
    %1994 = vmatprep.subr.mxu0 0.0
    %1995 = vmatpush1.msra.mxu0 0.0
    %1996 = vmatprep.subr.mxu0 0.0
    %1997 = vmatpush1.msra.mxu0 0.0
    %1998 = vmatprep.subr.mxu0 0.0
    %1999 = vmatpush1.msra.mxu0 0.0
    %2000 = vmatprep.subr.mxu0 0.0
    %2001 = vmatpush1.msra.mxu0 0.0
    %2002 = vmatprep.mubr.f32.mxu0 0.0
    %2003 = vmatmul.mubr.f32.gmra.mrb[0].mxu0 %v1697
    %v2004 = vpop.f32.mrb[0].mxu0
    %v2005 = vadd.f32 0.0, %v2004
    %v2006 = vpop.f32.mrb[0].mxu0
    %v2007 = vadd.f32 0.0, %v2006
    %2008 = vdwg.mxu0
    %v2009 = vadd.f32 %v162, %v1934
    %v2010 = vadd.f32 %v164, %v1936
    %v2011 = vadd.f32 %v239, %v2005
    %v2012 = vadd.f32 %v241, %v2007
    %v2013 = vxor.u32 %v2009, 2147483648
    %v2014 = vmul.f32 %v2013, 1.442695
    %v2015 = vpow.pop %v2014
    %v2016 = vadd.f32 %v2015, 1.0
    %v2017 = vrcp.pop %v2016
    %v2018 = vmul.f32 1.0, %v2017
    %v2019 = vxor.u32 %v2010, 2147483648
    %v2020 = vmul.f32 %v2019, 1.442695
    %v2021 = vpow.pop %v2020
    %v2022 = vadd.f32 %v2021, 1.0
    %v2023 = vrcp.pop %v2022
    %v2024 = vmul.f32 1.0, %v2023
    %v2025 = vtanh.pop %v2011
    %v2026 = vxor.u32 %v2012, 2147483648
    %v2027 = vmul.f32 %v2026, 1.442695
    %v2028 = vpow.pop %v2027
    %v2029 = vadd.f32 %v2028, 1.0
    %v2030 = vrcp.pop %v2029
    %v2031 = vmul.f32 1.0, %v2030
    %v2033 = vrot.slane %v1691, 6
    %v2035 = vmul.f32 %v2024, %v2033
    %v2036 = vmul.f32 %v2018, %v2025
    %v2037 = vadd.f32 %v2035, %v2036
    %v2038 = vtanh.pop %v2037
    %v2039 = vmul.f32 %v2031, %v2038
    %2040 = vmatprep.subr.mxu0 %v308
    %2041 = vmatpush1.msra.mxu0 %v307
    %2042 = vmatprep.subr.mxu0 %v312
    %2043 = vmatpush1.msra.mxu0 %v311
    %2044 = vmatprep.subr.mxu0 %v316
    %2045 = vmatpush1.msra.mxu0 %v315
    %2046 = vmatprep.subr.mxu0 %v320
    %2047 = vmatpush1.msra.mxu0 %v319
    %2048 = vmatprep.subr.mxu0 %v324
    %2049 = vmatpush1.msra.mxu0 %v323
    %2050 = vmatprep.subr.mxu0 %v328
    %2051 = vmatpush1.msra.mxu0 %v327
    %2052 = vmatprep.subr.mxu0 %v332
    %2053 = vmatpush1.msra.mxu0 %v331
    %2054 = vmatprep.subr.mxu0 %v336
    %2055 = vmatpush1.msra.mxu0 %v335
    %2056 = vmatprep.subr.mxu0 %v340
    %2057 = vmatpush1.msra.mxu0 %v339
    %2058 = vmatprep.subr.mxu0 %v344
    %2059 = vmatpush1.msra.mxu0 %v343
    %2060 = vmatprep.subr.mxu0 %v348
    %2061 = vmatpush1.msra.mxu0 %v347
    %2062 = vmatprep.subr.mxu0 %v352
    %2063 = vmatpush1.msra.mxu0 %v351
    %2064 = vmatprep.subr.mxu0 %v356
    %2065 = vmatpush1.msra.mxu0 %v355
    %2066 = vmatprep.subr.mxu0 %v360
    %2067 = vmatpush1.msra.mxu0 %v359
    %2068 = vmatprep.subr.mxu0 %v364
    %2069 = vmatpush1.msra.mxu0 %v363
    %2070 = vmatprep.subr.mxu0 %v368
    %2071 = vmatpush1.msra.mxu0 %v367
    %2072 = vmatprep.subr.mxu0 %v372
    %2073 = vmatpush1.msra.mxu0 %v371
    %2074 = vmatprep.subr.mxu0 %v376
    %2075 = vmatpush1.msra.mxu0 %v375
    %2076 = vmatprep.subr.mxu0 %v380
    %2077 = vmatpush1.msra.mxu0 %v379
    %2078 = vmatprep.subr.mxu0 %v384
    %2079 = vmatpush1.msra.mxu0 %v383
    %2080 = vmatprep.subr.mxu0 %v388
    %2081 = vmatpush1.msra.mxu0 %v387
    %2082 = vmatprep.subr.mxu0 %v392
    %2083 = vmatpush1.msra.mxu0 %v391
    %2084 = vmatprep.subr.mxu0 %v396
    %2085 = vmatpush1.msra.mxu0 %v395
    %2086 = vmatprep.subr.mxu0 %v400
    %2087 = vmatpush1.msra.mxu0 %v399
    %2088 = vmatprep.subr.mxu0 %v404
    %2089 = vmatpush1.msra.mxu0 %v403
    %2090 = vmatprep.subr.mxu0 %v408
    %2091 = vmatpush1.msra.mxu0 %v407
    %2092 = vmatprep.subr.mxu0 %v412
    %2093 = vmatpush1.msra.mxu0 %v411
    %2094 = vmatprep.subr.mxu0 %v416
    %2095 = vmatpush1.msra.mxu0 %v415
    %2096 = vmatprep.subr.mxu0 %v420
    %2097 = vmatpush1.msra.mxu0 %v419
    %2098 = vmatprep.subr.mxu0 %v424
    %2099 = vmatpush1.msra.mxu0 %v423
    %2100 = vmatprep.subr.mxu0 %v428
    %2101 = vmatpush1.msra.mxu0 %v427
    %2102 = vmatprep.subr.mxu0 %v432
    %2103 = vmatpush1.msra.mxu0 %v431
    %2104 = vmatprep.mubr.f32.mxu0 %v1866
    %2105 = vmatmul.mubr.f32.gmra.mrb[0].mxu0 %v2039
    %v2106 = vpop.f32.mrb[0].mxu0
    %v2107 = vadd.f32 %v440, %v2106
    %v2108 = vpop.f32.mrb[0].mxu0
    %v2109 = vadd.f32 %v444, %v2108
    %2110 = vdwg.mxu0
    %2111 = vmatprep.subr.mxu0 %v310
    %2112 = vmatpush1.msra.mxu0 %v309
    %2113 = vmatprep.subr.mxu0 %v314
    %2114 = vmatpush1.msra.mxu0 %v313
    %2115 = vmatprep.subr.mxu0 %v318
    %2116 = vmatpush1.msra.mxu0 %v317
    %2117 = vmatprep.subr.mxu0 %v322
    %2118 = vmatpush1.msra.mxu0 %v321
    %2119 = vmatprep.subr.mxu0 %v326
    %2120 = vmatpush1.msra.mxu0 %v325
    %2121 = vmatprep.subr.mxu0 %v330
    %2122 = vmatpush1.msra.mxu0 %v329
    %2123 = vmatprep.subr.mxu0 %v334
    %2124 = vmatpush1.msra.mxu0 %v333
    %2125 = vmatprep.subr.mxu0 %v338
    %2126 = vmatpush1.msra.mxu0 %v337
    %2127 = vmatprep.subr.mxu0 %v342
    %2128 = vmatpush1.msra.mxu0 %v341
    %2129 = vmatprep.subr.mxu0 %v346
    %2130 = vmatpush1.msra.mxu0 %v345
    %2131 = vmatprep.subr.mxu0 %v350
    %2132 = vmatpush1.msra.mxu0 %v349
    %2133 = vmatprep.subr.mxu0 %v354
    %2134 = vmatpush1.msra.mxu0 %v353
    %2135 = vmatprep.subr.mxu0 %v358
    %2136 = vmatpush1.msra.mxu0 %v357
    %2137 = vmatprep.subr.mxu0 %v362
    %2138 = vmatpush1.msra.mxu0 %v361
    %2139 = vmatprep.subr.mxu0 %v366
    %2140 = vmatpush1.msra.mxu0 %v365
    %2141 = vmatprep.subr.mxu0 %v370
    %2142 = vmatpush1.msra.mxu0 %v369
    %2143 = vmatprep.subr.mxu0 %v374
    %2144 = vmatpush1.msra.mxu0 %v373
    %2145 = vmatprep.subr.mxu0 %v378
    %2146 = vmatpush1.msra.mxu0 %v377
    %2147 = vmatprep.subr.mxu0 %v382
    %2148 = vmatpush1.msra.mxu0 %v381
    %2149 = vmatprep.subr.mxu0 %v386
    %2150 = vmatpush1.msra.mxu0 %v385
    %2151 = vmatprep.subr.mxu0 %v390
    %2152 = vmatpush1.msra.mxu0 %v389
    %2153 = vmatprep.subr.mxu0 %v394
    %2154 = vmatpush1.msra.mxu0 %v393
    %2155 = vmatprep.subr.mxu0 %v398
    %2156 = vmatpush1.msra.mxu0 %v397
    %2157 = vmatprep.subr.mxu0 %v402
    %2158 = vmatpush1.msra.mxu0 %v401
    %2159 = vmatprep.subr.mxu0 %v406
    %2160 = vmatpush1.msra.mxu0 %v405
    %2161 = vmatprep.subr.mxu0 %v410
    %2162 = vmatpush1.msra.mxu0 %v409
    %2163 = vmatprep.subr.mxu0 %v414
    %2164 = vmatpush1.msra.mxu0 %v413
    %2165 = vmatprep.subr.mxu0 %v418
    %2166 = vmatpush1.msra.mxu0 %v417
    %2167 = vmatprep.subr.mxu0 %v422
    %2168 = vmatpush1.msra.mxu0 %v421
    %2169 = vmatprep.subr.mxu0 %v426
    %2170 = vmatpush1.msra.mxu0 %v425
    %2171 = vmatprep.subr.mxu0 %v430
    %2172 = vmatpush1.msra.mxu0 %v429
    %2173 = vmatprep.subr.mxu0 %v434
    %2174 = vmatpush1.msra.mxu0 %v433
    %2175 = vmatprep.mubr.f32.mxu0 %v1866
    %2176 = vmatmul.mubr.f32.gmra.mrb[0].mxu0 %v2039
    %v2177 = vpop.f32.mrb[0].mxu0
    %v2178 = vadd.f32 %v448, %v2177
    %v2179 = vpop.f32.mrb[0].mxu0
    %v2180 = vadd.f32 %v452, %v2179
    %2181 = vdwg.mxu0
    %v2182 = vxor.u32 %v2107, 2147483648
    %v2183 = vmul.f32 %v2182, 1.442695
    %v2184 = vpow.pop %v2183
    %v2185 = vadd.f32 %v2184, 1.0
    %v2186 = vrcp.pop %v2185
    %v2187 = vmul.f32 1.0, %v2186
    %v2188 = vxor.u32 %v2109, 2147483648
    %v2189 = vmul.f32 %v2188, 1.442695
    %v2190 = vpow.pop %v2189
    %v2191 = vadd.f32 %v2190, 1.0
    %v2192 = vrcp.pop %v2191
    %v2193 = vmul.f32 1.0, %v2192
    %v2194 = vtanh.pop %v2178
    %v2195 = vxor.u32 %v2180, 2147483648
    %v2196 = vmul.f32 %v2195, 1.442695
    %v2197 = vpow.pop %v2196
    %v2198 = vadd.f32 %v2197, 1.0
    %v2199 = vrcp.pop %v2198
    %v2200 = vmul.f32 1.0, %v2199
    %v2201 = vmul.f32 %v2193, %v1864
    %v2202 = vmul.f32 %v2187, %v2194
    %v2203 = vadd.f32 %v2201, %v2202
    %v2204 = vtanh.pop %v2203
    %v2205 = vmul.f32 %v2200, %v2204
    %2206 = vmatprep.subr.mxu0 %v244
    %2207 = vmatpush1.msra.mxu0 %v243
    %2208 = vmatprep.subr.mxu0 %v248
    %2209 = vmatpush1.msra.mxu0 %v247
    %2210 = vmatprep.subr.mxu0 %v252
    %2211 = vmatpush1.msra.mxu0 %v251
    %2212 = vmatprep.subr.mxu0 %v256
    %2213 = vmatpush1.msra.mxu0 %v255
    %2214 = vmatprep.subr.mxu0 %v260
    %2215 = vmatpush1.msra.mxu0 %v259
    %2216 = vmatprep.subr.mxu0 %v264
    %2217 = vmatpush1.msra.mxu0 %v263
    %2218 = vmatprep.subr.mxu0 %v268
    %2219 = vmatpush1.msra.mxu0 %v267
    %2220 = vmatprep.subr.mxu0 %v272
    %2221 = vmatpush1.msra.mxu0 %v271
    %2222 = vmatprep.subr.mxu0 %v276
    %2223 = vmatpush1.msra.mxu0 %v275
    %2224 = vmatprep.subr.mxu0 %v280
    %2225 = vmatpush1.msra.mxu0 %v279
    %2226 = vmatprep.subr.mxu0 %v284
    %2227 = vmatpush1.msra.mxu0 %v283
    %2228 = vmatprep.subr.mxu0 %v288
    %2229 = vmatpush1.msra.mxu0 %v287
    %2230 = vmatprep.subr.mxu0 %v292
    %2231 = vmatpush1.msra.mxu0 %v291
    %2232 = vmatprep.subr.mxu0 %v296
    %2233 = vmatpush1.msra.mxu0 %v295
    %2234 = vmatprep.subr.mxu0 %v300
    %2235 = vmatpush1.msra.mxu0 %v299
    %2236 = vmatprep.subr.mxu0 %v304
    %2237 = vmatpush1.msra.mxu0 %v303
    %2238 = vmatprep.subr.mxu0 0.0
    %2239 = vmatpush1.msra.mxu0 0.0
    %2240 = vmatprep.subr.mxu0 0.0
    %2241 = vmatpush1.msra.mxu0 0.0
    %2242 = vmatprep.subr.mxu0 0.0
    %2243 = vmatpush1.msra.mxu0 0.0
    %2244 = vmatprep.subr.mxu0 0.0
    %2245 = vmatpush1.msra.mxu0 0.0
    %2246 = vmatprep.subr.mxu0 0.0
    %2247 = vmatpush1.msra.mxu0 0.0
    %2248 = vmatprep.subr.mxu0 0.0
    %2249 = vmatpush1.msra.mxu0 0.0
    %2250 = vmatprep.subr.mxu0 0.0
    %2251 = vmatpush1.msra.mxu0 0.0
    %2252 = vmatprep.subr.mxu0 0.0
    %2253 = vmatpush1.msra.mxu0 0.0
    %2254 = vmatprep.subr.mxu0 0.0
    %2255 = vmatpush1.msra.mxu0 0.0
    %2256 = vmatprep.subr.mxu0 0.0
    %2257 = vmatpush1.msra.mxu0 0.0
    %2258 = vmatprep.subr.mxu0 0.0
    %2259 = vmatpush1.msra.mxu0 0.0
    %2260 = vmatprep.subr.mxu0 0.0
    %2261 = vmatpush1.msra.mxu0 0.0
    %2262 = vmatprep.subr.mxu0 0.0
    %2263 = vmatpush1.msra.mxu0 0.0
    %2264 = vmatprep.subr.mxu0 0.0
    %2265 = vmatpush1.msra.mxu0 0.0
    %2266 = vmatprep.subr.mxu0 0.0
    %2267 = vmatpush1.msra.mxu0 0.0
    %2268 = vmatprep.subr.mxu0 0.0
    %2269 = vmatpush1.msra.mxu0 0.0
    %2270 = vmatprep.mubr.f32.mxu0 0.0
    %2271 = vmatmul.mubr.f32.gmra.mrb[0].mxu0 %v2039
    %v2272 = vpop.f32.mrb[0].mxu0
    %v2273 = vadd.f32 0.0, %v2272
    %v2274 = vpop.f32.mrb[0].mxu0
    %v2275 = vadd.f32 0.0, %v2274
    %2276 = vdwg.mxu0
    %2277 = vmatprep.subr.mxu0 %v246
    %2278 = vmatpush1.msra.mxu0 %v245
    %2279 = vmatprep.subr.mxu0 %v250
    %2280 = vmatpush1.msra.mxu0 %v249
    %2281 = vmatprep.subr.mxu0 %v254
    %2282 = vmatpush1.msra.mxu0 %v253
    %2283 = vmatprep.subr.mxu0 %v258
    %2284 = vmatpush1.msra.mxu0 %v257
    %2285 = vmatprep.subr.mxu0 %v262
    %2286 = vmatpush1.msra.mxu0 %v261
    %2287 = vmatprep.subr.mxu0 %v266
    %2288 = vmatpush1.msra.mxu0 %v265
    %2289 = vmatprep.subr.mxu0 %v270
    %2290 = vmatpush1.msra.mxu0 %v269
    %2291 = vmatprep.subr.mxu0 %v274
    %2292 = vmatpush1.msra.mxu0 %v273
    %2293 = vmatprep.subr.mxu0 %v278
    %2294 = vmatpush1.msra.mxu0 %v277
    %2295 = vmatprep.subr.mxu0 %v282
    %2296 = vmatpush1.msra.mxu0 %v281
    %2297 = vmatprep.subr.mxu0 %v286
    %2298 = vmatpush1.msra.mxu0 %v285
    %2299 = vmatprep.subr.mxu0 %v290
    %2300 = vmatpush1.msra.mxu0 %v289
    %2301 = vmatprep.subr.mxu0 %v294
    %2302 = vmatpush1.msra.mxu0 %v293
    %2303 = vmatprep.subr.mxu0 %v298
    %2304 = vmatpush1.msra.mxu0 %v297
    %2305 = vmatprep.subr.mxu0 %v302
    %2306 = vmatpush1.msra.mxu0 %v301
    %2307 = vmatprep.subr.mxu0 %v306
    %2308 = vmatpush1.msra.mxu0 %v305
    %2309 = vmatprep.subr.mxu0 0.0
    %2310 = vmatpush1.msra.mxu0 0.0
    %2311 = vmatprep.subr.mxu0 0.0
    %2312 = vmatpush1.msra.mxu0 0.0
    %2313 = vmatprep.subr.mxu0 0.0
    %2314 = vmatpush1.msra.mxu0 0.0
    %2315 = vmatprep.subr.mxu0 0.0
    %2316 = vmatpush1.msra.mxu0 0.0
    %2317 = vmatprep.subr.mxu0 0.0
    %2318 = vmatpush1.msra.mxu0 0.0
    %2319 = vmatprep.subr.mxu0 0.0
    %2320 = vmatpush1.msra.mxu0 0.0
    %2321 = vmatprep.subr.mxu0 0.0
    %2322 = vmatpush1.msra.mxu0 0.0
    %2323 = vmatprep.subr.mxu0 0.0
    %2324 = vmatpush1.msra.mxu0 0.0
    %2325 = vmatprep.subr.mxu0 0.0
    %2326 = vmatpush1.msra.mxu0 0.0
    %2327 = vmatprep.subr.mxu0 0.0
    %2328 = vmatpush1.msra.mxu0 0.0
    %2329 = vmatprep.subr.mxu0 0.0
    %2330 = vmatpush1.msra.mxu0 0.0
    %2331 = vmatprep.subr.mxu0 0.0
    %2332 = vmatpush1.msra.mxu0 0.0
    %2333 = vmatprep.subr.mxu0 0.0
    %2334 = vmatpush1.msra.mxu0 0.0
    %2335 = vmatprep.subr.mxu0 0.0
    %2336 = vmatpush1.msra.mxu0 0.0
    %2337 = vmatprep.subr.mxu0 0.0
    %2338 = vmatpush1.msra.mxu0 0.0
    %2339 = vmatprep.subr.mxu0 0.0
    %2340 = vmatpush1.msra.mxu0 0.0
    %2341 = vmatprep.mubr.f32.mxu0 0.0
    %2342 = vmatmul.mubr.f32.gmra.mrb[0].mxu0 %v2039
    %v2343 = vpop.f32.mrb[0].mxu0
    %v2344 = vadd.f32 0.0, %v2343
    %v2345 = vpop.f32.mrb[0].mxu0
    %v2346 = vadd.f32 0.0, %v2345
    %2347 = vdwg.mxu0
    %v2352 = vrot.slane %v2273, 6
    %v2353 = vrot.slane %v2275, 6
    %v2354 = vrot.slane %v2344, 6
    %v2355 = vrot.slane %v2346, 6
    %v2360 = vadd.f32 %v162, %v2352
    %v2361 = vadd.f32 %v164, %v2353
    %v2362 = vadd.f32 %v239, %v2354
    %v2363 = vadd.f32 %v241, %v2355
    %v2364 = vxor.u32 %v2360, 2147483648
    %v2365 = vmul.f32 %v2364, 1.442695
    %v2366 = vpow.pop %v2365
    %v2367 = vadd.f32 %v2366, 1.0
    %v2368 = vrcp.pop %v2367
    %v2369 = vmul.f32 1.0, %v2368
    %v2370 = vxor.u32 %v2361, 2147483648
    %v2371 = vmul.f32 %v2370, 1.442695
    %v2372 = vpow.pop %v2371
    %v2373 = vadd.f32 %v2372, 1.0
    %v2374 = vrcp.pop %v2373
    %v2375 = vmul.f32 1.0, %v2374
    %v2376 = vtanh.pop %v2362
    %v2377 = vxor.u32 %v2363, 2147483648
    %v2378 = vmul.f32 %v2377, 1.442695
    %v2379 = vpow.pop %v2378
    %v2380 = vadd.f32 %v2379, 1.0
    %v2381 = vrcp.pop %v2380
    %v2382 = vmul.f32 1.0, %v2381
    %v2384 = vrot.slane %v2037, 6
    %v2386 = vmul.f32 %v2375, %v2384
    %v2387 = vmul.f32 %v2369, %v2376
    %v2388 = vadd.f32 %v2386, %v2387
    %v2389 = vtanh.pop %v2388
    %v2390 = vmul.f32 %v2382, %v2389
    %v2392 = vrot.slane %v2205, 6
    %v2394 = vrot.slane %v2390, 2
    %v2395 = vrot.slane %v2392, 2
    %2398 = vmatprep.subr.mxu0 %v308
    %2399 = vmatpush1.msra.mxu0 %v307
    %2400 = vmatprep.subr.mxu0 %v312
    %2401 = vmatpush1.msra.mxu0 %v311
    %2402 = vmatprep.subr.mxu0 %v316
    %2403 = vmatpush1.msra.mxu0 %v315
    %2404 = vmatprep.subr.mxu0 %v320
    %2405 = vmatpush1.msra.mxu0 %v319
    %2406 = vmatprep.subr.mxu0 %v324
    %2407 = vmatpush1.msra.mxu0 %v323
    %2408 = vmatprep.subr.mxu0 %v328
    %2409 = vmatpush1.msra.mxu0 %v327
    %2410 = vmatprep.subr.mxu0 %v332
    %2411 = vmatpush1.msra.mxu0 %v331
    %2412 = vmatprep.subr.mxu0 %v336
    %2413 = vmatpush1.msra.mxu0 %v335
    %2414 = vmatprep.subr.mxu0 %v340
    %2415 = vmatpush1.msra.mxu0 %v339
    %2416 = vmatprep.subr.mxu0 %v344
    %2417 = vmatpush1.msra.mxu0 %v343
    %2418 = vmatprep.subr.mxu0 %v348
    %2419 = vmatpush1.msra.mxu0 %v347
    %2420 = vmatprep.subr.mxu0 %v352
    %2421 = vmatpush1.msra.mxu0 %v351
    %2422 = vmatprep.subr.mxu0 %v356
    %2423 = vmatpush1.msra.mxu0 %v355
    %2424 = vmatprep.subr.mxu0 %v360
    %2425 = vmatpush1.msra.mxu0 %v359
    %2426 = vmatprep.subr.mxu0 %v364
    %2427 = vmatpush1.msra.mxu0 %v363
    %2428 = vmatprep.subr.mxu0 %v368
    %2429 = vmatpush1.msra.mxu0 %v367
    %2430 = vmatprep.subr.mxu0 %v372
    %2431 = vmatpush1.msra.mxu0 %v371
    %2432 = vmatprep.subr.mxu0 %v376
    %2433 = vmatpush1.msra.mxu0 %v375
    %2434 = vmatprep.subr.mxu0 %v380
    %2435 = vmatpush1.msra.mxu0 %v379
    %2436 = vmatprep.subr.mxu0 %v384
    %2437 = vmatpush1.msra.mxu0 %v383
    %2438 = vmatprep.subr.mxu0 %v388
    %2439 = vmatpush1.msra.mxu0 %v387
    %2440 = vmatprep.subr.mxu0 %v392
    %2441 = vmatpush1.msra.mxu0 %v391
    %2442 = vmatprep.subr.mxu0 %v396
    %2443 = vmatpush1.msra.mxu0 %v395
    %2444 = vmatprep.subr.mxu0 %v400
    %2445 = vmatpush1.msra.mxu0 %v399
    %2446 = vmatprep.subr.mxu0 %v404
    %2447 = vmatpush1.msra.mxu0 %v403
    %2448 = vmatprep.subr.mxu0 %v408
    %2449 = vmatpush1.msra.mxu0 %v407
    %2450 = vmatprep.subr.mxu0 %v412
    %2451 = vmatpush1.msra.mxu0 %v411
    %2452 = vmatprep.subr.mxu0 %v416
    %2453 = vmatpush1.msra.mxu0 %v415
    %2454 = vmatprep.subr.mxu0 %v420
    %2455 = vmatpush1.msra.mxu0 %v419
    %2456 = vmatprep.subr.mxu0 %v424
    %2457 = vmatpush1.msra.mxu0 %v423
    %2458 = vmatprep.subr.mxu0 %v428
    %2459 = vmatpush1.msra.mxu0 %v427
    %2460 = vmatprep.subr.mxu0 %v432
    %2461 = vmatpush1.msra.mxu0 %v431
    %2462 = vmatprep.mubr.f32.mxu0 %v2395
    %2463 = vmatmul.mubr.f32.gmra.mrb[0].mxu0 %v2394
    %v2464 = vpop.f32.mrb[0].mxu0
    %v2465 = vadd.f32 %v440, %v2464
    %v2466 = vpop.f32.mrb[0].mxu0
    %v2467 = vadd.f32 %v444, %v2466
    %2468 = vdwg.mxu0
    %2469 = vmatprep.subr.mxu0 %v310
    %2470 = vmatpush1.msra.mxu0 %v309
    %2471 = vmatprep.subr.mxu0 %v314
    %2472 = vmatpush1.msra.mxu0 %v313
    %2473 = vmatprep.subr.mxu0 %v318
    %2474 = vmatpush1.msra.mxu0 %v317
    %2475 = vmatprep.subr.mxu0 %v322
    %2476 = vmatpush1.msra.mxu0 %v321
    %2477 = vmatprep.subr.mxu0 %v326
    %2478 = vmatpush1.msra.mxu0 %v325
    %2479 = vmatprep.subr.mxu0 %v330
    %2480 = vmatpush1.msra.mxu0 %v329
    %2481 = vmatprep.subr.mxu0 %v334
    %2482 = vmatpush1.msra.mxu0 %v333
    %2483 = vmatprep.subr.mxu0 %v338
    %2484 = vmatpush1.msra.mxu0 %v337
    %2485 = vmatprep.subr.mxu0 %v342
    %2486 = vmatpush1.msra.mxu0 %v341
    %2487 = vmatprep.subr.mxu0 %v346
    %2488 = vmatpush1.msra.mxu0 %v345
    %2489 = vmatprep.subr.mxu0 %v350
    %2490 = vmatpush1.msra.mxu0 %v349
    %2491 = vmatprep.subr.mxu0 %v354
    %2492 = vmatpush1.msra.mxu0 %v353
    %2493 = vmatprep.subr.mxu0 %v358
    %2494 = vmatpush1.msra.mxu0 %v357
    %2495 = vmatprep.subr.mxu0 %v362
    %2496 = vmatpush1.msra.mxu0 %v361
    %2497 = vmatprep.subr.mxu0 %v366
    %2498 = vmatpush1.msra.mxu0 %v365
    %2499 = vmatprep.subr.mxu0 %v370
    %2500 = vmatpush1.msra.mxu0 %v369
    %2501 = vmatprep.subr.mxu0 %v374
    %2502 = vmatpush1.msra.mxu0 %v373
    %2503 = vmatprep.subr.mxu0 %v378
    %2504 = vmatpush1.msra.mxu0 %v377
    %2505 = vmatprep.subr.mxu0 %v382
    %2506 = vmatpush1.msra.mxu0 %v381
    %2507 = vmatprep.subr.mxu0 %v386
    %2508 = vmatpush1.msra.mxu0 %v385
    %2509 = vmatprep.subr.mxu0 %v390
    %2510 = vmatpush1.msra.mxu0 %v389
    %2511 = vmatprep.subr.mxu0 %v394
    %2512 = vmatpush1.msra.mxu0 %v393
    %2513 = vmatprep.subr.mxu0 %v398
    %2514 = vmatpush1.msra.mxu0 %v397
    %2515 = vmatprep.subr.mxu0 %v402
    %2516 = vmatpush1.msra.mxu0 %v401
    %2517 = vmatprep.subr.mxu0 %v406
    %2518 = vmatpush1.msra.mxu0 %v405
    %2519 = vmatprep.subr.mxu0 %v410
    %2520 = vmatpush1.msra.mxu0 %v409
    %2521 = vmatprep.subr.mxu0 %v414
    %2522 = vmatpush1.msra.mxu0 %v413
    %2523 = vmatprep.subr.mxu0 %v418
    %2524 = vmatpush1.msra.mxu0 %v417
    %2525 = vmatprep.subr.mxu0 %v422
    %2526 = vmatpush1.msra.mxu0 %v421
    %2527 = vmatprep.subr.mxu0 %v426
    %2528 = vmatpush1.msra.mxu0 %v425
    %2529 = vmatprep.subr.mxu0 %v430
    %2530 = vmatpush1.msra.mxu0 %v429
    %2531 = vmatprep.subr.mxu0 %v434
    %2532 = vmatpush1.msra.mxu0 %v433
    %2533 = vmatprep.mubr.f32.mxu0 %v2395
    %2534 = vmatmul.mubr.f32.gmra.mrb[0].mxu0 %v2394
    %v2535 = vpop.f32.mrb[0].mxu0
    %v2536 = vadd.f32 %v448, %v2535
    %v2537 = vpop.f32.mrb[0].mxu0
    %v2538 = vadd.f32 %v452, %v2537
    %2539 = vdwg.mxu0
    %v2540 = vxor.u32 %v2465, 2147483648
    %v2541 = vmul.f32 %v2540, 1.442695
    %v2542 = vpow.pop %v2541
    %v2543 = vadd.f32 %v2542, 1.0
    %v2544 = vrcp.pop %v2543
    %v2545 = vmul.f32 1.0, %v2544
    %v2546 = vxor.u32 %v2467, 2147483648
    %v2547 = vmul.f32 %v2546, 1.442695
    %v2548 = vpow.pop %v2547
    %v2549 = vadd.f32 %v2548, 1.0
    %v2550 = vrcp.pop %v2549
    %v2551 = vmul.f32 1.0, %v2550
    %v2552 = vtanh.pop %v2536
    %v2553 = vxor.u32 %v2538, 2147483648
    %v2554 = vmul.f32 %v2553, 1.442695
    %v2555 = vpow.pop %v2554
    %v2556 = vadd.f32 %v2555, 1.0
    %v2557 = vrcp.pop %v2556
    %v2558 = vmul.f32 1.0, %v2557
    %v2559 = vmul.f32 %v2551, %v2203
    %v2560 = vmul.f32 %v2545, %v2552
    %v2561 = vadd.f32 %v2559, %v2560
    %v2562 = vtanh.pop %v2561
    %v2563 = vmul.f32 %v2558, %v2562
    %2564 = vmatprep.subr.mxu0 %v244
    %2565 = vmatpush1.msra.mxu0 %v243
    %2566 = vmatprep.subr.mxu0 %v248
    %2567 = vmatpush1.msra.mxu0 %v247
    %2568 = vmatprep.subr.mxu0 %v252
    %2569 = vmatpush1.msra.mxu0 %v251
    %2570 = vmatprep.subr.mxu0 %v256
    %2571 = vmatpush1.msra.mxu0 %v255
    %2572 = vmatprep.subr.mxu0 %v260
    %2573 = vmatpush1.msra.mxu0 %v259
    %2574 = vmatprep.subr.mxu0 %v264
    %2575 = vmatpush1.msra.mxu0 %v263
    %2576 = vmatprep.subr.mxu0 %v268
    %2577 = vmatpush1.msra.mxu0 %v267
    %2578 = vmatprep.subr.mxu0 %v272
    %2579 = vmatpush1.msra.mxu0 %v271
    %2580 = vmatprep.subr.mxu0 %v276
    %2581 = vmatpush1.msra.mxu0 %v275
    %2582 = vmatprep.subr.mxu0 %v280
    %2583 = vmatpush1.msra.mxu0 %v279
    %2584 = vmatprep.subr.mxu0 %v284
    %2585 = vmatpush1.msra.mxu0 %v283
    %2586 = vmatprep.subr.mxu0 %v288
    %2587 = vmatpush1.msra.mxu0 %v287
    %2588 = vmatprep.subr.mxu0 %v292
    %2589 = vmatpush1.msra.mxu0 %v291
    %2590 = vmatprep.subr.mxu0 %v296
    %2591 = vmatpush1.msra.mxu0 %v295
    %2592 = vmatprep.subr.mxu0 %v300
    %2593 = vmatpush1.msra.mxu0 %v299
    %2594 = vmatprep.subr.mxu0 %v304
    %2595 = vmatpush1.msra.mxu0 %v303
    %2596 = vmatprep.subr.mxu0 0.0
    %2597 = vmatpush1.msra.mxu0 0.0
    %2598 = vmatprep.subr.mxu0 0.0
    %2599 = vmatpush1.msra.mxu0 0.0
    %2600 = vmatprep.subr.mxu0 0.0
    %2601 = vmatpush1.msra.mxu0 0.0
    %2602 = vmatprep.subr.mxu0 0.0
    %2603 = vmatpush1.msra.mxu0 0.0
    %2604 = vmatprep.subr.mxu0 0.0
    %2605 = vmatpush1.msra.mxu0 0.0
    %2606 = vmatprep.subr.mxu0 0.0
    %2607 = vmatpush1.msra.mxu0 0.0
    %2608 = vmatprep.subr.mxu0 0.0
    %2609 = vmatpush1.msra.mxu0 0.0
    %2610 = vmatprep.subr.mxu0 0.0
    %2611 = vmatpush1.msra.mxu0 0.0
    %2612 = vmatprep.subr.mxu0 0.0
    %2613 = vmatpush1.msra.mxu0 0.0
    %2614 = vmatprep.subr.mxu0 0.0
    %2615 = vmatpush1.msra.mxu0 0.0
    %2616 = vmatprep.subr.mxu0 0.0
    %2617 = vmatpush1.msra.mxu0 0.0
    %2618 = vmatprep.subr.mxu0 0.0
    %2619 = vmatpush1.msra.mxu0 0.0
    %2620 = vmatprep.subr.mxu0 0.0
    %2621 = vmatpush1.msra.mxu0 0.0
    %2622 = vmatprep.subr.mxu0 0.0
    %2623 = vmatpush1.msra.mxu0 0.0
    %2624 = vmatprep.subr.mxu0 0.0
    %2625 = vmatpush1.msra.mxu0 0.0
    %2626 = vmatprep.subr.mxu0 0.0
    %2627 = vmatpush1.msra.mxu0 0.0
    %2628 = vmatprep.mubr.f32.mxu0 0.0
    %2629 = vmatmul.mubr.f32.gmra.mrb[0].mxu0 %v2394
    %v2630 = vpop.f32.mrb[0].mxu0
    %v2631 = vadd.f32 0.0, %v2630
    %v2632 = vpop.f32.mrb[0].mxu0
    %v2633 = vadd.f32 0.0, %v2632
    %2634 = vdwg.mxu0
    %2635 = vmatprep.subr.mxu0 %v246
    %2636 = vmatpush1.msra.mxu0 %v245
    %2637 = vmatprep.subr.mxu0 %v250
    %2638 = vmatpush1.msra.mxu0 %v249
    %2639 = vmatprep.subr.mxu0 %v254
    %2640 = vmatpush1.msra.mxu0 %v253
    %2641 = vmatprep.subr.mxu0 %v258
    %2642 = vmatpush1.msra.mxu0 %v257
    %2643 = vmatprep.subr.mxu0 %v262
    %2644 = vmatpush1.msra.mxu0 %v261
    %2645 = vmatprep.subr.mxu0 %v266
    %2646 = vmatpush1.msra.mxu0 %v265
    %2647 = vmatprep.subr.mxu0 %v270
    %2648 = vmatpush1.msra.mxu0 %v269
    %2649 = vmatprep.subr.mxu0 %v274
    %2650 = vmatpush1.msra.mxu0 %v273
    %2651 = vmatprep.subr.mxu0 %v278
    %2652 = vmatpush1.msra.mxu0 %v277
    %2653 = vmatprep.subr.mxu0 %v282
    %2654 = vmatpush1.msra.mxu0 %v281
    %2655 = vmatprep.subr.mxu0 %v286
    %2656 = vmatpush1.msra.mxu0 %v285
    %2657 = vmatprep.subr.mxu0 %v290
    %2658 = vmatpush1.msra.mxu0 %v289
    %2659 = vmatprep.subr.mxu0 %v294
    %2660 = vmatpush1.msra.mxu0 %v293
    %2661 = vmatprep.subr.mxu0 %v298
    %2662 = vmatpush1.msra.mxu0 %v297
    %2663 = vmatprep.subr.mxu0 %v302
    %2664 = vmatpush1.msra.mxu0 %v301
    %2665 = vmatprep.subr.mxu0 %v306
    %2666 = vmatpush1.msra.mxu0 %v305
    %2667 = vmatprep.subr.mxu0 0.0
    %2668 = vmatpush1.msra.mxu0 0.0
    %2669 = vmatprep.subr.mxu0 0.0
    %2670 = vmatpush1.msra.mxu0 0.0
    %2671 = vmatprep.subr.mxu0 0.0
    %2672 = vmatpush1.msra.mxu0 0.0
    %2673 = vmatprep.subr.mxu0 0.0
    %2674 = vmatpush1.msra.mxu0 0.0
    %2675 = vmatprep.subr.mxu0 0.0
    %2676 = vmatpush1.msra.mxu0 0.0
    %2677 = vmatprep.subr.mxu0 0.0
    %2678 = vmatpush1.msra.mxu0 0.0
    %2679 = vmatprep.subr.mxu0 0.0
    %2680 = vmatpush1.msra.mxu0 0.0
    %2681 = vmatprep.subr.mxu0 0.0
    %2682 = vmatpush1.msra.mxu0 0.0
    %2683 = vmatprep.subr.mxu0 0.0
    %2684 = vmatpush1.msra.mxu0 0.0
    %2685 = vmatprep.subr.mxu0 0.0
    %2686 = vmatpush1.msra.mxu0 0.0
    %2687 = vmatprep.subr.mxu0 0.0
    %2688 = vmatpush1.msra.mxu0 0.0
    %2689 = vmatprep.subr.mxu0 0.0
    %2690 = vmatpush1.msra.mxu0 0.0
    %2691 = vmatprep.subr.mxu0 0.0
    %2692 = vmatpush1.msra.mxu0 0.0
    %2693 = vmatprep.subr.mxu0 0.0
    %2694 = vmatpush1.msra.mxu0 0.0
    %2695 = vmatprep.subr.mxu0 0.0
    %2696 = vmatpush1.msra.mxu0 0.0
    %2697 = vmatprep.subr.mxu0 0.0
    %2698 = vmatpush1.msra.mxu0 0.0
    %2699 = vmatprep.mubr.f32.mxu0 0.0
    %2700 = vmatmul.mubr.f32.gmra.mrb[0].mxu0 %v2394
    %v2701 = vpop.f32.mrb[0].mxu0
    %v2702 = vadd.f32 0.0, %v2701
    %v2703 = vpop.f32.mrb[0].mxu0
    %v2704 = vadd.f32 0.0, %v2703
    %2705 = vdwg.mxu0
    %v2710 = vrot.slane %v2631, 4
    %v2711 = vrot.slane %v2633, 4
    %v2712 = vrot.slane %v2702, 4
    %v2713 = vrot.slane %v2704, 4
    %v2718 = vadd.f32 %v162, %v2710
    %v2719 = vadd.f32 %v164, %v2711
    %v2720 = vadd.f32 %v239, %v2712
    %v2721 = vadd.f32 %v241, %v2713
    %v2722 = vxor.u32 %v2718, 2147483648
    %v2723 = vmul.f32 %v2722, 1.442695
    %v2724 = vpow.pop %v2723
    %v2725 = vadd.f32 %v2724, 1.0
    %v2726 = vrcp.pop %v2725
    %v2727 = vmul.f32 1.0, %v2726
    %v2728 = vxor.u32 %v2719, 2147483648
    %v2729 = vmul.f32 %v2728, 1.442695
    %v2730 = vpow.pop %v2729
    %v2731 = vadd.f32 %v2730, 1.0
    %v2732 = vrcp.pop %v2731
    %v2733 = vmul.f32 1.0, %v2732
    %v2734 = vtanh.pop %v2720
    %v2735 = vxor.u32 %v2721, 2147483648
    %v2736 = vmul.f32 %v2735, 1.442695
    %v2737 = vpow.pop %v2736
    %v2738 = vadd.f32 %v2737, 1.0
    %v2739 = vrcp.pop %v2738
    %v2740 = vmul.f32 1.0, %v2739
    %v2742 = vrot.slane %v2388, 6
    %v2744 = vmul.f32 %v2733, %v2742
    %v2745 = vmul.f32 %v2727, %v2734
    %v2746 = vadd.f32 %v2744, %v2745
    %v2747 = vtanh.pop %v2746
    %v2748 = vmul.f32 %v2740, %v2747
    %v2750 = vrot.slane %v2563, 4
    %v2752 = vrot.slane %v2748, 4
    %v2753 = vrot.slane %v2750, 4
    %2756 = vmatprep.subr.mxu0 %v308
    %2757 = vmatpush1.msra.mxu0 %v307
    %2758 = vmatprep.subr.mxu0 %v312
    %2759 = vmatpush1.msra.mxu0 %v311
    %2760 = vmatprep.subr.mxu0 %v316
    %2761 = vmatpush1.msra.mxu0 %v315
    %2762 = vmatprep.subr.mxu0 %v320
    %2763 = vmatpush1.msra.mxu0 %v319
    %2764 = vmatprep.subr.mxu0 %v324
    %2765 = vmatpush1.msra.mxu0 %v323
    %2766 = vmatprep.subr.mxu0 %v328
    %2767 = vmatpush1.msra.mxu0 %v327
    %2768 = vmatprep.subr.mxu0 %v332
    %2769 = vmatpush1.msra.mxu0 %v331
    %2770 = vmatprep.subr.mxu0 %v336
    %2771 = vmatpush1.msra.mxu0 %v335
    %2772 = vmatprep.subr.mxu0 %v340
    %2773 = vmatpush1.msra.mxu0 %v339
    %2774 = vmatprep.subr.mxu0 %v344
    %2775 = vmatpush1.msra.mxu0 %v343
    %2776 = vmatprep.subr.mxu0 %v348
    %2777 = vmatpush1.msra.mxu0 %v347
    %2778 = vmatprep.subr.mxu0 %v352
    %2779 = vmatpush1.msra.mxu0 %v351
    %2780 = vmatprep.subr.mxu0 %v356
    %2781 = vmatpush1.msra.mxu0 %v355
    %2782 = vmatprep.subr.mxu0 %v360
    %2783 = vmatpush1.msra.mxu0 %v359
    %2784 = vmatprep.subr.mxu0 %v364
    %2785 = vmatpush1.msra.mxu0 %v363
    %2786 = vmatprep.subr.mxu0 %v368
    %2787 = vmatpush1.msra.mxu0 %v367
    %2788 = vmatprep.subr.mxu0 %v372
    %2789 = vmatpush1.msra.mxu0 %v371
    %2790 = vmatprep.subr.mxu0 %v376
    %2791 = vmatpush1.msra.mxu0 %v375
    %2792 = vmatprep.subr.mxu0 %v380
    %2793 = vmatpush1.msra.mxu0 %v379
    %2794 = vmatprep.subr.mxu0 %v384
    %2795 = vmatpush1.msra.mxu0 %v383
    %2796 = vmatprep.subr.mxu0 %v388
    %2797 = vmatpush1.msra.mxu0 %v387
    %2798 = vmatprep.subr.mxu0 %v392
    %2799 = vmatpush1.msra.mxu0 %v391
    %2800 = vmatprep.subr.mxu0 %v396
    %2801 = vmatpush1.msra.mxu0 %v395
    %2802 = vmatprep.subr.mxu0 %v400
    %2803 = vmatpush1.msra.mxu0 %v399
    %2804 = vmatprep.subr.mxu0 %v404
    %2805 = vmatpush1.msra.mxu0 %v403
    %2806 = vmatprep.subr.mxu0 %v408
    %2807 = vmatpush1.msra.mxu0 %v407
    %2808 = vmatprep.subr.mxu0 %v412
    %2809 = vmatpush1.msra.mxu0 %v411
    %2810 = vmatprep.subr.mxu0 %v416
    %2811 = vmatpush1.msra.mxu0 %v415
    %2812 = vmatprep.subr.mxu0 %v420
    %2813 = vmatpush1.msra.mxu0 %v419
    %2814 = vmatprep.subr.mxu0 %v424
    %2815 = vmatpush1.msra.mxu0 %v423
    %2816 = vmatprep.subr.mxu0 %v428
    %2817 = vmatpush1.msra.mxu0 %v427
    %2818 = vmatprep.subr.mxu0 %v432
    %2819 = vmatpush1.msra.mxu0 %v431
    %2820 = vmatprep.mubr.f32.mxu0 %v2753
    %2821 = vmatmul.mubr.f32.gmra.mrb[0].mxu0 %v2752
    %v2822 = vpop.f32.mrb[0].mxu0
    %v2823 = vadd.f32 %v440, %v2822
    %v2824 = vpop.f32.mrb[0].mxu0
    %v2825 = vadd.f32 %v444, %v2824
    %2826 = vdwg.mxu0
    %2827 = vmatprep.subr.mxu0 %v310
    %2828 = vmatpush1.msra.mxu0 %v309
    %2829 = vmatprep.subr.mxu0 %v314
    %2830 = vmatpush1.msra.mxu0 %v313
    %2831 = vmatprep.subr.mxu0 %v318
    %2832 = vmatpush1.msra.mxu0 %v317
    %2833 = vmatprep.subr.mxu0 %v322
    %2834 = vmatpush1.msra.mxu0 %v321
    %2835 = vmatprep.subr.mxu0 %v326
    %2836 = vmatpush1.msra.mxu0 %v325
    %2837 = vmatprep.subr.mxu0 %v330
    %2838 = vmatpush1.msra.mxu0 %v329
    %2839 = vmatprep.subr.mxu0 %v334
    %2840 = vmatpush1.msra.mxu0 %v333
    %2841 = vmatprep.subr.mxu0 %v338
    %2842 = vmatpush1.msra.mxu0 %v337
    %2843 = vmatprep.subr.mxu0 %v342
    %2844 = vmatpush1.msra.mxu0 %v341
    %2845 = vmatprep.subr.mxu0 %v346
    %2846 = vmatpush1.msra.mxu0 %v345
    %2847 = vmatprep.subr.mxu0 %v350
    %2848 = vmatpush1.msra.mxu0 %v349
    %2849 = vmatprep.subr.mxu0 %v354
    %2850 = vmatpush1.msra.mxu0 %v353
    %2851 = vmatprep.subr.mxu0 %v358
    %2852 = vmatpush1.msra.mxu0 %v357
    %2853 = vmatprep.subr.mxu0 %v362
    %2854 = vmatpush1.msra.mxu0 %v361
    %2855 = vmatprep.subr.mxu0 %v366
    %2856 = vmatpush1.msra.mxu0 %v365
    %2857 = vmatprep.subr.mxu0 %v370
    %2858 = vmatpush1.msra.mxu0 %v369
    %2859 = vmatprep.subr.mxu0 %v374
    %2860 = vmatpush1.msra.mxu0 %v373
    %2861 = vmatprep.subr.mxu0 %v378
    %2862 = vmatpush1.msra.mxu0 %v377
    %2863 = vmatprep.subr.mxu0 %v382
    %2864 = vmatpush1.msra.mxu0 %v381
    %2865 = vmatprep.subr.mxu0 %v386
    %2866 = vmatpush1.msra.mxu0 %v385
    %2867 = vmatprep.subr.mxu0 %v390
    %2868 = vmatpush1.msra.mxu0 %v389
    %2869 = vmatprep.subr.mxu0 %v394
    %2870 = vmatpush1.msra.mxu0 %v393
    %2871 = vmatprep.subr.mxu0 %v398
    %2872 = vmatpush1.msra.mxu0 %v397
    %2873 = vmatprep.subr.mxu0 %v402
    %2874 = vmatpush1.msra.mxu0 %v401
    %2875 = vmatprep.subr.mxu0 %v406
    %2876 = vmatpush1.msra.mxu0 %v405
    %2877 = vmatprep.subr.mxu0 %v410
    %2878 = vmatpush1.msra.mxu0 %v409
    %2879 = vmatprep.subr.mxu0 %v414
    %2880 = vmatpush1.msra.mxu0 %v413
    %2881 = vmatprep.subr.mxu0 %v418
    %2882 = vmatpush1.msra.mxu0 %v417
    %2883 = vmatprep.subr.mxu0 %v422
    %2884 = vmatpush1.msra.mxu0 %v421
    %2885 = vmatprep.subr.mxu0 %v426
    %2886 = vmatpush1.msra.mxu0 %v425
    %2887 = vmatprep.subr.mxu0 %v430
    %2888 = vmatpush1.msra.mxu0 %v429
    %2889 = vmatprep.subr.mxu0 %v434
    %2890 = vmatpush1.msra.mxu0 %v433
    %2891 = vmatprep.mubr.f32.mxu0 %v2753
    %2892 = vmatmul.mubr.f32.gmra.mrb[0].mxu0 %v2752
    %v2893 = vpop.f32.mrb[0].mxu0
    %v2894 = vadd.f32 %v448, %v2893
    %v2895 = vpop.f32.mrb[0].mxu0
    %v2896 = vadd.f32 %v452, %v2895
    %2897 = vdwg.mxu0
    %v2898 = vxor.u32 %v2823, 2147483648
    %v2899 = vmul.f32 %v2898, 1.442695
    %v2900 = vpow.pop %v2899
    %v2901 = vadd.f32 %v2900, 1.0
    %v2902 = vrcp.pop %v2901
    %v2903 = vmul.f32 1.0, %v2902
    %v2904 = vxor.u32 %v2825, 2147483648
    %v2905 = vmul.f32 %v2904, 1.442695
    %v2906 = vpow.pop %v2905
    %v2907 = vadd.f32 %v2906, 1.0
    %v2908 = vrcp.pop %v2907
    %v2909 = vmul.f32 1.0, %v2908
    %v2910 = vtanh.pop %v2894
    %v2911 = vxor.u32 %v2896, 2147483648
    %v2912 = vmul.f32 %v2911, 1.442695
    %v2913 = vpow.pop %v2912
    %v2914 = vadd.f32 %v2913, 1.0
    %v2915 = vrcp.pop %v2914
    %v2916 = vmul.f32 1.0, %v2915
    %v2917 = vmul.f32 %v2909, %v2561
    %v2918 = vmul.f32 %v2903, %v2910
    %v2919 = vadd.f32 %v2917, %v2918
    %v2920 = vtanh.pop %v2919
    %v2921 = vmul.f32 %v2916, %v2920
    %2922 = vmatprep.subr.mxu0 %v244
    %2923 = vmatpush1.msra.mxu0 %v243
    %2924 = vmatprep.subr.mxu0 %v248
    %2925 = vmatpush1.msra.mxu0 %v247
    %2926 = vmatprep.subr.mxu0 %v252
    %2927 = vmatpush1.msra.mxu0 %v251
    %2928 = vmatprep.subr.mxu0 %v256
    %2929 = vmatpush1.msra.mxu0 %v255
    %2930 = vmatprep.subr.mxu0 %v260
    %2931 = vmatpush1.msra.mxu0 %v259
    %2932 = vmatprep.subr.mxu0 %v264
    %2933 = vmatpush1.msra.mxu0 %v263
    %2934 = vmatprep.subr.mxu0 %v268
    %2935 = vmatpush1.msra.mxu0 %v267
    %2936 = vmatprep.subr.mxu0 %v272
    %2937 = vmatpush1.msra.mxu0 %v271
    %2938 = vmatprep.subr.mxu0 %v276
    %2939 = vmatpush1.msra.mxu0 %v275
    %2940 = vmatprep.subr.mxu0 %v280
    %2941 = vmatpush1.msra.mxu0 %v279
    %2942 = vmatprep.subr.mxu0 %v284
    %2943 = vmatpush1.msra.mxu0 %v283
    %2944 = vmatprep.subr.mxu0 %v288
    %2945 = vmatpush1.msra.mxu0 %v287
    %2946 = vmatprep.subr.mxu0 %v292
    %2947 = vmatpush1.msra.mxu0 %v291
    %2948 = vmatprep.subr.mxu0 %v296
    %2949 = vmatpush1.msra.mxu0 %v295
    %2950 = vmatprep.subr.mxu0 %v300
    %2951 = vmatpush1.msra.mxu0 %v299
    %2952 = vmatprep.subr.mxu0 %v304
    %2953 = vmatpush1.msra.mxu0 %v303
    %2954 = vmatprep.subr.mxu0 0.0
    %2955 = vmatpush1.msra.mxu0 0.0
    %2956 = vmatprep.subr.mxu0 0.0
    %2957 = vmatpush1.msra.mxu0 0.0
    %2958 = vmatprep.subr.mxu0 0.0
    %2959 = vmatpush1.msra.mxu0 0.0
    %2960 = vmatprep.subr.mxu0 0.0
    %2961 = vmatpush1.msra.mxu0 0.0
    %2962 = vmatprep.subr.mxu0 0.0
    %2963 = vmatpush1.msra.mxu0 0.0
    %2964 = vmatprep.subr.mxu0 0.0
    %2965 = vmatpush1.msra.mxu0 0.0
    %2966 = vmatprep.subr.mxu0 0.0
    %2967 = vmatpush1.msra.mxu0 0.0
    %2968 = vmatprep.subr.mxu0 0.0
    %2969 = vmatpush1.msra.mxu0 0.0
    %2970 = vmatprep.subr.mxu0 0.0
    %2971 = vmatpush1.msra.mxu0 0.0
    %2972 = vmatprep.subr.mxu0 0.0
    %2973 = vmatpush1.msra.mxu0 0.0
    %2974 = vmatprep.subr.mxu0 0.0
    %2975 = vmatpush1.msra.mxu0 0.0
    %2976 = vmatprep.subr.mxu0 0.0
    %2977 = vmatpush1.msra.mxu0 0.0
    %2978 = vmatprep.subr.mxu0 0.0
    %2979 = vmatpush1.msra.mxu0 0.0
    %2980 = vmatprep.subr.mxu0 0.0
    %2981 = vmatpush1.msra.mxu0 0.0
    %2982 = vmatprep.subr.mxu0 0.0
    %2983 = vmatpush1.msra.mxu0 0.0
    %2984 = vmatprep.subr.mxu0 0.0
    %2985 = vmatpush1.msra.mxu0 0.0
    %2986 = vmatprep.mubr.f32.mxu0 0.0
    %2987 = vmatmul.mubr.f32.gmra.mrb[0].mxu0 %v2752
    %v2988 = vpop.f32.mrb[0].mxu0
    %v2989 = vadd.f32 0.0, %v2988
    %v2990 = vpop.f32.mrb[0].mxu0
    %v2991 = vadd.f32 0.0, %v2990
    %2992 = vdwg.mxu0
    %2993 = vmatprep.subr.mxu0 %v246
    %2994 = vmatpush1.msra.mxu0 %v245
    %2995 = vmatprep.subr.mxu0 %v250
    %2996 = vmatpush1.msra.mxu0 %v249
    %2997 = vmatprep.subr.mxu0 %v254
    %2998 = vmatpush1.msra.mxu0 %v253
    %2999 = vmatprep.subr.mxu0 %v258
    %3000 = vmatpush1.msra.mxu0 %v257
    %3001 = vmatprep.subr.mxu0 %v262
    %3002 = vmatpush1.msra.mxu0 %v261
    %3003 = vmatprep.subr.mxu0 %v266
    %3004 = vmatpush1.msra.mxu0 %v265
    %3005 = vmatprep.subr.mxu0 %v270
    %3006 = vmatpush1.msra.mxu0 %v269
    %3007 = vmatprep.subr.mxu0 %v274
    %3008 = vmatpush1.msra.mxu0 %v273
    %3009 = vmatprep.subr.mxu0 %v278
    %3010 = vmatpush1.msra.mxu0 %v277
    %3011 = vmatprep.subr.mxu0 %v282
    %3012 = vmatpush1.msra.mxu0 %v281
    %3013 = vmatprep.subr.mxu0 %v286
    %3014 = vmatpush1.msra.mxu0 %v285
    %3015 = vmatprep.subr.mxu0 %v290
    %3016 = vmatpush1.msra.mxu0 %v289
    %3017 = vmatprep.subr.mxu0 %v294
    %3018 = vmatpush1.msra.mxu0 %v293
    %3019 = vmatprep.subr.mxu0 %v298
    %3020 = vmatpush1.msra.mxu0 %v297
    %3021 = vmatprep.subr.mxu0 %v302
    %3022 = vmatpush1.msra.mxu0 %v301
    %3023 = vmatprep.subr.mxu0 %v306
    %3024 = vmatpush1.msra.mxu0 %v305
    %3025 = vmatprep.subr.mxu0 0.0
    %3026 = vmatpush1.msra.mxu0 0.0
    %3027 = vmatprep.subr.mxu0 0.0
    %3028 = vmatpush1.msra.mxu0 0.0
    %3029 = vmatprep.subr.mxu0 0.0
    %3030 = vmatpush1.msra.mxu0 0.0
    %3031 = vmatprep.subr.mxu0 0.0
    %3032 = vmatpush1.msra.mxu0 0.0
    %3033 = vmatprep.subr.mxu0 0.0
    %3034 = vmatpush1.msra.mxu0 0.0
    %3035 = vmatprep.subr.mxu0 0.0
    %3036 = vmatpush1.msra.mxu0 0.0
    %3037 = vmatprep.subr.mxu0 0.0
    %3038 = vmatpush1.msra.mxu0 0.0
    %3039 = vmatprep.subr.mxu0 0.0
    %3040 = vmatpush1.msra.mxu0 0.0
    %3041 = vmatprep.subr.mxu0 0.0
    %3042 = vmatpush1.msra.mxu0 0.0
    %3043 = vmatprep.subr.mxu0 0.0
    %3044 = vmatpush1.msra.mxu0 0.0
    %3045 = vmatprep.subr.mxu0 0.0
    %3046 = vmatpush1.msra.mxu0 0.0
    %3047 = vmatprep.subr.mxu0 0.0
    %3048 = vmatpush1.msra.mxu0 0.0
    %3049 = vmatprep.subr.mxu0 0.0
    %3050 = vmatpush1.msra.mxu0 0.0
    %3051 = vmatprep.subr.mxu0 0.0
    %3052 = vmatpush1.msra.mxu0 0.0
    %3053 = vmatprep.subr.mxu0 0.0
    %3054 = vmatpush1.msra.mxu0 0.0
    %3055 = vmatprep.subr.mxu0 0.0
    %3056 = vmatpush1.msra.mxu0 0.0
    %3057 = vmatprep.mubr.f32.mxu0 0.0
    %3058 = vmatmul.mubr.f32.gmra.mrb[0].mxu0 %v2752
    %v3059 = vpop.f32.mrb[0].mxu0
    %v3060 = vadd.f32 0.0, %v3059
    %v3061 = vpop.f32.mrb[0].mxu0
    %v3062 = vadd.f32 0.0, %v3061
    %3063 = vdwg.mxu0
    %v3068 = vrot.slane %v2989, 2
    %v3069 = vrot.slane %v2991, 2
    %v3070 = vrot.slane %v3060, 2
    %v3071 = vrot.slane %v3062, 2
    %v3076 = vadd.f32 %v162, %v3068
    %v3077 = vadd.f32 %v164, %v3069
    %v3078 = vadd.f32 %v239, %v3070
    %v3079 = vadd.f32 %v241, %v3071
    %v3080 = vxor.u32 %v3076, 2147483648
    %v3081 = vmul.f32 %v3080, 1.442695
    %v3082 = vpow.pop %v3081
    %v3083 = vadd.f32 %v3082, 1.0
    %v3084 = vrcp.pop %v3083
    %v3085 = vmul.f32 1.0, %v3084
    %v3086 = vxor.u32 %v3077, 2147483648
    %v3087 = vmul.f32 %v3086, 1.442695
    %v3088 = vpow.pop %v3087
    %v3089 = vadd.f32 %v3088, 1.0
    %v3090 = vrcp.pop %v3089
    %v3091 = vmul.f32 1.0, %v3090
    %v3092 = vtanh.pop %v3078
    %v3093 = vxor.u32 %v3079, 2147483648
    %v3094 = vmul.f32 %v3093, 1.442695
    %v3095 = vpow.pop %v3094
    %v3096 = vadd.f32 %v3095, 1.0
    %v3097 = vrcp.pop %v3096
    %v3098 = vmul.f32 1.0, %v3097
    %v3100 = vrot.slane %v2746, 6
    %v3102 = vmul.f32 %v3091, %v3100
    %v3103 = vmul.f32 %v3085, %v3092
    %v3104 = vadd.f32 %v3102, %v3103
    %v3105 = vtanh.pop %v3104
    %v3106 = vmul.f32 %v3098, %v3105
    %v3108 = vrot.slane %v2921, 2
    %v3110 = vrot.slane %v3106, 6
    %v3111 = vrot.slane %v3108, 6
    %3114 = vmatprep.subr.mxu0 %v308
    %3115 = vmatpush1.msra.mxu0 %v307
    %3116 = vmatprep.subr.mxu0 %v312
    %3117 = vmatpush1.msra.mxu0 %v311
    %3118 = vmatprep.subr.mxu0 %v316
    %3119 = vmatpush1.msra.mxu0 %v315
    %3120 = vmatprep.subr.mxu0 %v320
    %3121 = vmatpush1.msra.mxu0 %v319
    %3122 = vmatprep.subr.mxu0 %v324
    %3123 = vmatpush1.msra.mxu0 %v323
    %3124 = vmatprep.subr.mxu0 %v328
    %3125 = vmatpush1.msra.mxu0 %v327
    %3126 = vmatprep.subr.mxu0 %v332
    %3127 = vmatpush1.msra.mxu0 %v331
    %3128 = vmatprep.subr.mxu0 %v336
    %3129 = vmatpush1.msra.mxu0 %v335
    %3130 = vmatprep.subr.mxu0 %v340
    %3131 = vmatpush1.msra.mxu0 %v339
    %3132 = vmatprep.subr.mxu0 %v344
    %3133 = vmatpush1.msra.mxu0 %v343
    %3134 = vmatprep.subr.mxu0 %v348
    %3135 = vmatpush1.msra.mxu0 %v347
    %3136 = vmatprep.subr.mxu0 %v352
    %3137 = vmatpush1.msra.mxu0 %v351
    %3138 = vmatprep.subr.mxu0 %v356
    %3139 = vmatpush1.msra.mxu0 %v355
    %3140 = vmatprep.subr.mxu0 %v360
    %3141 = vmatpush1.msra.mxu0 %v359
    %3142 = vmatprep.subr.mxu0 %v364
    %3143 = vmatpush1.msra.mxu0 %v363
    %3144 = vmatprep.subr.mxu0 %v368
    %3145 = vmatpush1.msra.mxu0 %v367
    %3146 = vmatprep.subr.mxu0 %v372
    %3147 = vmatpush1.msra.mxu0 %v371
    %3148 = vmatprep.subr.mxu0 %v376
    %3149 = vmatpush1.msra.mxu0 %v375
    %3150 = vmatprep.subr.mxu0 %v380
    %3151 = vmatpush1.msra.mxu0 %v379
    %3152 = vmatprep.subr.mxu0 %v384
    %3153 = vmatpush1.msra.mxu0 %v383
    %3154 = vmatprep.subr.mxu0 %v388
    %3155 = vmatpush1.msra.mxu0 %v387
    %3156 = vmatprep.subr.mxu0 %v392
    %3157 = vmatpush1.msra.mxu0 %v391
    %3158 = vmatprep.subr.mxu0 %v396
    %3159 = vmatpush1.msra.mxu0 %v395
    %3160 = vmatprep.subr.mxu0 %v400
    %3161 = vmatpush1.msra.mxu0 %v399
    %3162 = vmatprep.subr.mxu0 %v404
    %3163 = vmatpush1.msra.mxu0 %v403
    %3164 = vmatprep.subr.mxu0 %v408
    %3165 = vmatpush1.msra.mxu0 %v407
    %3166 = vmatprep.subr.mxu0 %v412
    %3167 = vmatpush1.msra.mxu0 %v411
    %3168 = vmatprep.subr.mxu0 %v416
    %3169 = vmatpush1.msra.mxu0 %v415
    %3170 = vmatprep.subr.mxu0 %v420
    %3171 = vmatpush1.msra.mxu0 %v419
    %3172 = vmatprep.subr.mxu0 %v424
    %3173 = vmatpush1.msra.mxu0 %v423
    %3174 = vmatprep.subr.mxu0 %v428
    %3175 = vmatpush1.msra.mxu0 %v427
    %3176 = vmatprep.subr.mxu0 %v432
    %3177 = vmatpush1.msra.mxu0 %v431
    %3178 = vmatprep.mubr.f32.mxu0 %v3111
    %3179 = vmatmul.mubr.f32.gmra.mrb[0].mxu0 %v3110
    %v3180 = vpop.f32.mrb[0].mxu0
    %v3181 = vadd.f32 %v440, %v3180
    %v3182 = vpop.f32.mrb[0].mxu0
    %v3183 = vadd.f32 %v444, %v3182
    %3184 = vdwg.mxu0
    %3185 = vmatprep.subr.mxu0 %v310
    %3186 = vmatpush1.msra.mxu0 %v309
    %3187 = vmatprep.subr.mxu0 %v314
    %3188 = vmatpush1.msra.mxu0 %v313
    %3189 = vmatprep.subr.mxu0 %v318
    %3190 = vmatpush1.msra.mxu0 %v317
    %3191 = vmatprep.subr.mxu0 %v322
    %3192 = vmatpush1.msra.mxu0 %v321
    %3193 = vmatprep.subr.mxu0 %v326
    %3194 = vmatpush1.msra.mxu0 %v325
    %3195 = vmatprep.subr.mxu0 %v330
    %3196 = vmatpush1.msra.mxu0 %v329
    %3197 = vmatprep.subr.mxu0 %v334
    %3198 = vmatpush1.msra.mxu0 %v333
    %3199 = vmatprep.subr.mxu0 %v338
    %3200 = vmatpush1.msra.mxu0 %v337
    %3201 = vmatprep.subr.mxu0 %v342
    %3202 = vmatpush1.msra.mxu0 %v341
    %3203 = vmatprep.subr.mxu0 %v346
    %3204 = vmatpush1.msra.mxu0 %v345
    %3205 = vmatprep.subr.mxu0 %v350
    %3206 = vmatpush1.msra.mxu0 %v349
    %3207 = vmatprep.subr.mxu0 %v354
    %3208 = vmatpush1.msra.mxu0 %v353
    %3209 = vmatprep.subr.mxu0 %v358
    %3210 = vmatpush1.msra.mxu0 %v357
    %3211 = vmatprep.subr.mxu0 %v362
    %3212 = vmatpush1.msra.mxu0 %v361
    %3213 = vmatprep.subr.mxu0 %v366
    %3214 = vmatpush1.msra.mxu0 %v365
    %3215 = vmatprep.subr.mxu0 %v370
    %3216 = vmatpush1.msra.mxu0 %v369
    %3217 = vmatprep.subr.mxu0 %v374
    %3218 = vmatpush1.msra.mxu0 %v373
    %3219 = vmatprep.subr.mxu0 %v378
    %3220 = vmatpush1.msra.mxu0 %v377
    %3221 = vmatprep.subr.mxu0 %v382
    %3222 = vmatpush1.msra.mxu0 %v381
    %3223 = vmatprep.subr.mxu0 %v386
    %3224 = vmatpush1.msra.mxu0 %v385
    %3225 = vmatprep.subr.mxu0 %v390
    %3226 = vmatpush1.msra.mxu0 %v389
    %3227 = vmatprep.subr.mxu0 %v394
    %3228 = vmatpush1.msra.mxu0 %v393
    %3229 = vmatprep.subr.mxu0 %v398
    %3230 = vmatpush1.msra.mxu0 %v397
    %3231 = vmatprep.subr.mxu0 %v402
    %3232 = vmatpush1.msra.mxu0 %v401
    %3233 = vmatprep.subr.mxu0 %v406
    %3234 = vmatpush1.msra.mxu0 %v405
    %3235 = vmatprep.subr.mxu0 %v410
    %3236 = vmatpush1.msra.mxu0 %v409
    %3237 = vmatprep.subr.mxu0 %v414
    %3238 = vmatpush1.msra.mxu0 %v413
    %3239 = vmatprep.subr.mxu0 %v418
    %3240 = vmatpush1.msra.mxu0 %v417
    %3241 = vmatprep.subr.mxu0 %v422
    %3242 = vmatpush1.msra.mxu0 %v421
    %3243 = vmatprep.subr.mxu0 %v426
    %3244 = vmatpush1.msra.mxu0 %v425
    %3245 = vmatprep.subr.mxu0 %v430
    %3246 = vmatpush1.msra.mxu0 %v429
    %3247 = vmatprep.subr.mxu0 %v434
    %3248 = vmatpush1.msra.mxu0 %v433
    %3249 = vmatprep.mubr.f32.mxu0 %v3111
    %3250 = vmatmul.mubr.f32.gmra.mrb[0].mxu0 %v3110
    %v3251 = vpop.f32.mrb[0].mxu0
    %v3252 = vadd.f32 %v448, %v3251
    %v3253 = vpop.f32.mrb[0].mxu0
    %v3254 = vadd.f32 %v452, %v3253
    %3255 = vdwg.mxu0
    %v3256 = vxor.u32 %v3181, 2147483648
    %v3257 = vmul.f32 %v3256, 1.442695
    %v3258 = vpow.pop %v3257
    %v3259 = vadd.f32 %v3258, 1.0
    %v3260 = vrcp.pop %v3259
    %v3261 = vmul.f32 1.0, %v3260
    %v3262 = vxor.u32 %v3183, 2147483648
    %v3263 = vmul.f32 %v3262, 1.442695
    %v3264 = vpow.pop %v3263
    %v3265 = vadd.f32 %v3264, 1.0
    %v3266 = vrcp.pop %v3265
    %v3267 = vmul.f32 1.0, %v3266
    %v3268 = vtanh.pop %v3252
    %v3269 = vxor.u32 %v3254, 2147483648
    %v3270 = vmul.f32 %v3269, 1.442695
    %v3271 = vpow.pop %v3270
    %v3272 = vadd.f32 %v3271, 1.0
    %v3273 = vrcp.pop %v3272
    %v3274 = vmul.f32 1.0, %v3273
    %v3275 = vmul.f32 %v3267, %v2919
    %v3276 = vmul.f32 %v3261, %v3268
    %v3277 = vadd.f32 %v3275, %v3276
    %v3278 = vtanh.pop %v3277
    %v3279 = vmul.f32 %v3274, %v3278
    %v3280 = vld [vmem:[%s6] sm:$0xff]
    %v3281 = vld [vmem:[%s6 + $0x8] sm:$0xff]
    %v3282 = vld [vmem:[%s6 + $0x10] sm:$0xff]
    %v3283 = vld [vmem:[%s6 + $0x18] sm:$0xff]
    %v3284 = vld [vmem:[%s6 + $0x20] sm:$0xff]
    %v3285 = vld [vmem:[%s6 + $0x28] sm:$0xff]
    %v3286 = vld [vmem:[%s6 + $0x30] sm:$0xff]
    %v3287 = vld [vmem:[%s6 + $0x38] sm:$0xff]
    %v3288 = vld [vmem:[%s6 + $0x40] sm:$0xff]
    %v3289 = vld [vmem:[%s6 + $0x48] sm:$0xff]
    %v3290 = vld [vmem:[%s6 + $0x50] sm:$0xff]
    %v3291 = vld [vmem:[%s6 + $0x58] sm:$0xff]
    %v3292 = vld [vmem:[%s6 + $0x60] sm:$0xff]
    %v3293 = vld [vmem:[%s6 + $0x68] sm:$0xff]
    %v3294 = vld [vmem:[%s6 + $0x70] sm:$0xff]
    %v3295 = vld [vmem:[%s6 + $0x78] sm:$0xff]
    %v3296 = vld [vmem:[%s7] sm:$0x1]
    %v3298 = vlaneseq
    %v3299 = vshrl.u32 %v3298, 7
    %v3300 = vsub.s32 0, %v3299
    %v3301 = vrot.slane %v3296, %v3300
    %3303 = vmatprep.subr.mxu0 0.0
    %3304 = vmatpush1.msra.mxu0 %v3280
    %3305 = vmatprep.subr.mxu0 0.0
    %3306 = vmatpush1.msra.mxu0 %v3281
    %3307 = vmatprep.subr.mxu0 0.0
    %3308 = vmatpush1.msra.mxu0 %v3282
    %3309 = vmatprep.subr.mxu0 0.0
    %3310 = vmatpush1.msra.mxu0 %v3283
    %3311 = vmatprep.subr.mxu0 0.0
    %3312 = vmatpush1.msra.mxu0 %v3284
    %3313 = vmatprep.subr.mxu0 0.0
    %3314 = vmatpush1.msra.mxu0 %v3285
    %3315 = vmatprep.subr.mxu0 0.0
    %3316 = vmatpush1.msra.mxu0 %v3286
    %3317 = vmatprep.subr.mxu0 0.0
    %3318 = vmatpush1.msra.mxu0 %v3287
    %3319 = vmatprep.subr.mxu0 0.0
    %3320 = vmatpush1.msra.mxu0 %v3288
    %3321 = vmatprep.subr.mxu0 0.0
    %3322 = vmatpush1.msra.mxu0 %v3289
    %3323 = vmatprep.subr.mxu0 0.0
    %3324 = vmatpush1.msra.mxu0 %v3290
    %3325 = vmatprep.subr.mxu0 0.0
    %3326 = vmatpush1.msra.mxu0 %v3291
    %3327 = vmatprep.subr.mxu0 0.0
    %3328 = vmatpush1.msra.mxu0 %v3292
    %3329 = vmatprep.subr.mxu0 0.0
    %3330 = vmatpush1.msra.mxu0 %v3293
    %3331 = vmatprep.subr.mxu0 0.0
    %3332 = vmatpush1.msra.mxu0 %v3294
    %3333 = vmatprep.subr.mxu0 0.0
    %3334 = vmatpush1.msra.mxu0 %v3295
    %3335 = vmatprep.subr.mxu0 0.0
    %3336 = vmatpush1.msra.mxu0 0.0
    %3337 = vmatprep.subr.mxu0 0.0
    %3338 = vmatpush1.msra.mxu0 0.0
    %3339 = vmatprep.subr.mxu0 0.0
    %3340 = vmatpush1.msra.mxu0 0.0
    %3341 = vmatprep.subr.mxu0 0.0
    %3342 = vmatpush1.msra.mxu0 0.0
    %3343 = vmatprep.subr.mxu0 0.0
    %3344 = vmatpush1.msra.mxu0 0.0
    %3345 = vmatprep.subr.mxu0 0.0
    %3346 = vmatpush1.msra.mxu0 0.0
    %3347 = vmatprep.subr.mxu0 0.0
    %3348 = vmatpush1.msra.mxu0 0.0
    %3349 = vmatprep.subr.mxu0 0.0
    %3350 = vmatpush1.msra.mxu0 0.0
    %3351 = vmatprep.subr.mxu0 0.0
    %3352 = vmatpush1.msra.mxu0 0.0
    %3353 = vmatprep.subr.mxu0 0.0
    %3354 = vmatpush1.msra.mxu0 0.0
    %3355 = vmatprep.subr.mxu0 0.0
    %3356 = vmatpush1.msra.mxu0 0.0
    %3357 = vmatprep.subr.mxu0 0.0
    %3358 = vmatpush1.msra.mxu0 0.0
    %3359 = vmatprep.subr.mxu0 0.0
    %3360 = vmatpush1.msra.mxu0 0.0
    %3361 = vmatprep.subr.mxu0 0.0
    %3362 = vmatpush1.msra.mxu0 0.0
    %3363 = vmatprep.subr.mxu0 0.0
    %3364 = vmatpush1.msra.mxu0 0.0
    %3365 = vmatprep.subr.mxu0 0.0
    %3366 = vmatpush1.msra.mxu0 0.0
    %3367 = vmatprep.mubr.f32.mxu0 0.0
    %3368 = vmatmul.mubr.f32.gmra.mrb[0].mxu0 %v3279
    %v3369 = vpop.f32.mrb[0].mxu0
    %v3370 = vadd.f32 %v3301, %v3369
    %v3371 = vpop.f32.mrb[0].mxu0
    %3372 = vdwg.mxu0
    %vm3373 = vcmask 9216
    %3374 = vst.msk [vmem:[#allocation2] sm:$0x3] %vm3373, %v3370
    // Predicated region
    $region34: #{lstm_forward.1} parent=1 // pred_check
      _
    $region35: #{lstm_forward.1} parent=1 // pred_check_branch
      %3376 = sbr.rel (0) target = $region37
    $region36: #{lstm_forward.1} parent=1 // pred_region
      %s3378 = ssub.s32 32, 32
      %3379 = vsyncadd [#allocation3], %s3378
      %s3381 = sshll.u32 [#allocation2], 4
      %s3382 = int_to_ptr.vmem [resolvable:$true] %s3381
      %3384 = dma.vmem_to_hbm [thread:$0]  %s3382, 32, %s8, [#allocation3]
    $region37: #{lstm_forward.1} parent=1 // pred_fallthru
      _
    // Predicated region
    $region38: #{lstm_forward.1} parent=1 // pred_check
      _
    $region39: #{lstm_forward.1} parent=1 // pred_check_branch
      %3386 = sbr.rel (0) target = $region41
    $region40: #{lstm_forward.1} parent=1 // pred_region
      %3387 = dma.done [#allocation3], 32
    $region41: #{lstm_forward.1} parent=1 // pred_fallthru
      _
    %3388 = vsyncpa [#allocation3], 1

</llo_original>
